<compile_context>
chip_gen: v7x
topology: tpu7x:2x2x1
jax: 0.10.0
libtpu: 0.0.40
codegen_flags: <defaults>
</compile_context>

<pallas_src>
import functools
import math

import jax
import jax.numpy as jnp
from jax.experimental import pallas as pl
from jax.experimental.pallas import tpu as pltpu


# ----------------------------------------------------------------------------
# Fused Pallas kernel: Q -> z (latent) and rotation-head 6D output (padded)
# ----------------------------------------------------------------------------
def _qtor_fused_kernel(
    # data / host-built plumbing
    q3_ref, bias_ref, pool_ref, repz_ref, repb_ref, bflat_ref,
    # packed parameter slabs
    fB_ref, inw_ref, wenc_ref, vecs_ref, encs_ref, rots_ref,
    # outputs
    z_ref, rot_ref,
    # scratch
    ctx_ref,
    *, num_heads, fourier_size, latent_dim):
    f32 = jnp.float32
    L, E, _ = wenc_ref.shape                  # layers, embed dim
    H = num_heads
    dh = E // H                               # head dim
    F = fourier_size
    lat = latent_dim
    hid = rots_ref.shape[0] - lat - 11        # rotation-head hidden dim
    pad = rot_ref.shape[1]                    # padded 6D output width (128)
    scale = 1.0 / math.sqrt(dh)

    def mm(a, b):
        return jnp.dot(a, b, preferred_element_type=f32)

    def ln(v, g, b, eps=1e-5):
        mu = jnp.mean(v, axis=-1, keepdims=True)
        var = jnp.mean((v - mu) ** 2, axis=-1, keepdims=True)
        return (v - mu) * jax.lax.rsqrt(var + eps) * g + b

    # ---- Fourier feature mapping + input projection (fused) -----------------
    q3 = q3_ref[...]                                               # (M, 3)
    proj = mm(q3, fB_ref[...])                                     # (M, F); fB pre-scaled by 2*pi
    x = (mm(q3, inw_ref[0:3, :])
         + mm(jnp.sin(proj), inw_ref[3:3 + F, :])
         + mm(jnp.cos(proj), inw_ref[3 + F:3 + 2 * F, :])
         + vecs_ref[0:1, :])                                       # (M, E)

    # ---- SetTransformer encoder layers ---------------------------------------
    # bias is a block-diagonal additive mask over the flattened B*N axis:
    # 0 for (same batch & key valid), -1e9 otherwise -> cross-batch / padded
    # keys get zero attention weight after softmax.
    bias = bias_ref[...]                                           # (M, M)
    for l in range(L):                                             # static unroll
        r0 = 1 + 10 * l                                            # row base in the vec slab
        qkv = mm(x, wenc_ref[l, :, 0:3 * E])                       # fused QKV: (M, 3E)
        q_all = qkv[:, 0:E] + vecs_ref[r0 + 0:r0 + 1, :]
        k_all = qkv[:, E:2 * E] + vecs_ref[r0 + 1:r0 + 2, :]
        v_all = qkv[:, 2 * E:3 * E] + vecs_ref[r0 + 2:r0 + 3, :]
        for h in range(H):                                         # static unroll
            c0 = h * dh
            qh = q_all[:, c0:c0 + dh]
            kh = k_all[:, c0:c0 + dh]
            vh = v_all[:, c0:c0 + dh]
            s = jax.lax.dot_general(qh, kh, (((1,), (1,)), ((), ())),
                                    preferred_element_type=f32) * scale + bias
            s = s - jnp.max(s, axis=-1, keepdims=True)
            p = jnp.exp(s)
            p = p * pl.reciprocal(jnp.sum(p, axis=-1, keepdims=True), approx=True)
            ctx_ref[:, c0:c0 + dh] = mm(p, vh)                     # lane-concat heads in VMEM
        # single (M,E) x (E,E) output projection over the concatenated heads
        att = mm(ctx_ref[...], wenc_ref[l, :, 3 * E:4 * E]) + vecs_ref[r0 + 3:r0 + 4, :]
        h1 = ln(x + att, vecs_ref[r0 + 4:r0 + 5, :], vecs_ref[r0 + 5:r0 + 6, :])
        ff = jnp.maximum(mm(h1, wenc_ref[l, :, 4 * E:5 * E])
                         + vecs_ref[r0 + 6:r0 + 7, :], 0.0)
        ff = mm(ff, wenc_ref[l, :, 5 * E:6 * E]) + vecs_ref[r0 + 7:r0 + 8, :]
        x = ln(h1 + ff, vecs_ref[r0 + 8:r0 + 9, :], vecs_ref[r0 + 9:r0 + 10, :])

    # ---- masked mean pooling + latent projection ------------------------------
    pool = pool_ref[...]                                           # (B, M)
    cnt = jnp.maximum(jnp.sum(pool, axis=-1, keepdims=True), 1.0)  # (B, 1)
    pooled = mm(pool, x) * pl.reciprocal(cnt, approx=True)         # (B, E)
    z = mm(pooled, encs_ref[0:E, :]) + encs_ref[E:E + 1, :]        # (B, lat)
    z_ref[...] = z

    # ---- rotation head: [LN(z) ++ 0.3*B_flat] -> MLP -> (padded) 6D ----------
    zn = ln(z, encs_ref[E + 1:E + 2, :], encs_ref[E + 2:E + 3, :])           # (B, lat)
    hz = mm(zn, rots_ref[0:lat, 0:hid]) + rots_ref[lat + 9:lat + 10, 0:hid]  # (B, hid)
    hB = mm(bflat_ref[...], rots_ref[lat:lat + 9, 0:hid])                    # (C, hid); bflat pre-scaled by 0.3
    h1r = jnp.maximum(mm(repz_ref[...], hz) + mm(repb_ref[...], hB), 0.0)    # (B*C, hid)
    rot_ref[...] = (mm(h1r, rots_ref[lat + 10:lat + 10 + hid, 0:pad])
                    + rots_ref[lat + 10 + hid:lat + 11 + hid, 0:pad])        # (B*C, pad) lane-dense


# ----------------------------------------------------------------------------
# Plain-JAX glue: tiny 3x3 math (unit cell, 6D -> rotation) and param packing
# ----------------------------------------------------------------------------
def _reciprocal_basis_from_cell(theta):
    # theta = (a, b, c, alpha, beta, gamma)
    a, b, c, al, be, ga = (theta[0], theta[1], theta[2],
                           theta[3], theta[4], theta[5])
    ca, cb, cg = jnp.cos(al), jnp.cos(be), jnp.cos(ga)
    sg = jnp.sin(ga)
    v1 = jnp.array([a, 0.0, 0.0])
    v2 = jnp.array([b * cg, b * sg, 0.0])
    cy = (ca - cb * cg) / sg
    cz = jnp.sqrt(jnp.maximum(1.0 - cb ** 2 - cy ** 2, 1e-8))
    v3 = c * jnp.array([cb, cy, cz])
    A = jnp.stack([v1, v2, v3], axis=0)          # direct lattice basis (rows)
    return jnp.linalg.inv(A).T                   # reciprocal basis


def unit_cell_candidates(thetas):
    return jax.vmap(_reciprocal_basis_from_cell)(thetas)   # (C, 3, 3)


def sixd_to_rotation(x6):
    a1, a2 = x6[..., :3], x6[..., 3:6]
    b1 = a1 / (jnp.linalg.norm(a1, axis=-1, keepdims=True) + 1e-8)
    a2p = a2 - jnp.sum(b1 * a2, axis=-1, keepdims=True) * b1
    b2 = a2p / (jnp.linalg.norm(a2p, axis=-1, keepdims=True) + 1e-8)
    b3 = jnp.cross(b1, b2)
    return jnp.stack([b1, b2, b3], axis=-2)                 # (..., 3, 3)


def init_params(key, *, latent_dim=64, encoder_hidden=128, rotation_hidden=128,
                num_heads=4, num_layers=2, fourier_mapping_size=16,
                fourier_scale=10.0, num_theta_samples=2, rot_out_pad=128):
    E, F, H, L = encoder_hidden, fourier_mapping_size, num_heads, num_layers
    keys = jax.random.split(key, 64)
    ki = iter(keys)

    def dense(fan_in, fan_out):
        w = jax.random.normal(next(ki), (fan_in, fan_out),
                              jnp.float32) / math.sqrt(fan_in)
        b = jnp.zeros((fan_out,), jnp.float32)
        return w, b

    params = {}

    # Fourier mapping (pre-scaled by 2*pi) + input projection slab.
    fourier_B = jax.random.normal(next(ki), (3, F), jnp.float32) * fourier_scale
    in_w, in_b = dense(3 + 2 * F, E)
    params["fourier_wB"] = (2.0 * math.pi) * fourier_B       # (3, F)
    params["in_w"] = in_w                                     # (3+2F, E): [wx; ws; wc]

    # Encoder layers: one (E, 6E) lane-dense weight slab per layer and one
    # (1+10L, E) row slab for every E-wide bias / LayerNorm vector.
    vec_rows = [in_b.reshape(1, E)]
    wenc_layers = []
    ones_e = jnp.ones((1, E), jnp.float32)
    zeros_e = jnp.zeros((1, E), jnp.float32)
    for _ in range(L):
        wq, bq = dense(E, E)
        wk, bk = dense(E, E)
        wv, bv = dense(E, E)
        wo, bo = dense(E, E)
        w1, b1 = dense(E, E)
        w2, b2 = dense(E, E)
        wenc_layers.append(jnp.concatenate([wq, wk, wv, wo, w1, w2], axis=1))
        vec_rows += [bq.reshape(1, E), bk.reshape(1, E), bv.reshape(1, E),
                     bo.reshape(1, E),
                     ones_e, zeros_e,                          # ln1 gamma/beta
                     b1.reshape(1, E), b2.reshape(1, E),
                     ones_e, zeros_e]                          # ln2 gamma/beta
    params["enc_wslab"] = jnp.stack(wenc_layers, axis=0)       # (L, E, 6E)
    params["vec_slab"] = jnp.concatenate(vec_rows, axis=0)     # (1+10L, E)

    # Encoder output projection + LayerNorm(z) slab (width = latent_dim).
    enc_w, enc_b = dense(E, latent_dim)
    params["enc_slab"] = jnp.concatenate(
        [enc_w, enc_b.reshape(1, latent_dim),
         jnp.ones((1, latent_dim), jnp.float32),
         jnp.zeros((1, latent_dim), jnp.float32)], axis=0)     # (E+3, latent)

    # Rotation head slab: [w1_z; w1_B; b1; w2_pad; b2_pad], width 128.
    rot_w1, rot_b1 = dense(latent_dim + 9, rotation_hidden)
    rot_w2, rot_b2 = dense(rotation_hidden, 6)
    rot_w2_pad = (jnp.zeros((rotation_hidden, rot_out_pad), jnp.float32)
                  .at[:, :6].set(rot_w2))
    rot_b2_pad = (jnp.zeros((1, rot_out_pad), jnp.float32)
                  .at[0, :6].set(rot_b2))
    W = max(rotation_hidden, rot_out_pad)

    def padw(a):
        return jnp.pad(a, ((0, 0), (0, W - a.shape[1])))

    params["rot_slab"] = jnp.concatenate(
        [padw(rot_w1[:latent_dim]),                    # (lat, W)
         padw(rot_w1[latent_dim:]),                    # (9, W)
         padw(rot_b1.reshape(1, rotation_hidden)),     # (1, W)
         padw(rot_w2_pad),                             # (hid, W)
         padw(rot_b2_pad)], axis=0)                    # total (lat+9+1+hid+1, W)

    # UnitCell: deterministic candidate cell parameters, candidates computed
    # ONCE at init (hoists the vmapped 3x3 inverse off the per-call path).
    mu = jnp.array([5.0, 6.0, 7.0, jnp.pi / 2, jnp.pi / 2, jnp.pi / 2], jnp.float32)
    diag_S = jnp.array([0.1, 0.1, 0.1, 0.01, 0.01, 0.01], jnp.float32)
    offs = (jnp.arange(num_theta_samples, dtype=jnp.float32)
            - (num_theta_samples - 1) / 2.0)
    theta = mu[None, :] + offs[:, None] * jnp.sqrt(diag_S)[None, :]
    B_cand = unit_cell_candidates(theta)                       # (C, 3, 3)
    params["theta"] = theta
    params["B_candidates"] = B_cand
    params["bflat_scaled"] = 0.3 * B_cand.reshape(num_theta_samples, 9)

    config = {
        "num_heads": H, "num_layers": L, "fourier_mapping_size": F,
        "latent_dim": latent_dim, "encoder_hidden": E,
        "rotation_hidden": rotation_hidden, "rot_out_pad": rot_out_pad,
        "num_theta_samples": num_theta_samples,
    }
    return params, config


def qtor_forward(params, Q, mask=None, *, config):
    B, N, _ = Q.shape
    M = B * N
    E = config["encoder_hidden"]
    latent = config["latent_dim"]
    C = config["num_theta_samples"]
    pad = config["rot_out_pad"]

    if mask is None:
        mask = jnp.ones((B, N), jnp.float32)
    else:
        mask = mask.astype(jnp.float32)
    flat_mask = mask.reshape(M)

    # Host-built lane/sublane-dense plumbing (constant-folds under jit when
    # mask is None):
    #   * block-diagonal additive attention mask over the flattened B*N axis
    #   * pooling matrix implementing the per-batch masked mean as one matmul
    #   * selection matrices replicating z / B_flat rows for the rotation head
    same_batch = jnp.kron(jnp.eye(B, dtype=jnp.float32),
                          jnp.ones((N, N), jnp.float32))          # (M, M)
    attn_bias = (1.0 - same_batch * flat_mask[None, :]) * (-1e9)
    batch_rows = jnp.kron(jnp.eye(B, dtype=jnp.float32),
                          jnp.ones((1, N), jnp.float32))          # (B, M)
    pool_mat = batch_rows * flat_mask[None, :]
    rep_z = jnp.repeat(jnp.eye(B, dtype=jnp.float32), C, axis=0)  # (B*C, B)
    rep_b = jnp.tile(jnp.eye(C, dtype=jnp.float32), (B, 1))       # (B*C, C)

    kernel = functools.partial(
        _qtor_fused_kernel,
        num_heads=config["num_heads"],
        fourier_size=config["fourier_mapping_size"],
        latent_dim=latent)

    z, rot_padded = pl.pallas_call(
        kernel,
        out_shape=(jax.ShapeDtypeStruct((B, latent), jnp.float32),
                   jax.ShapeDtypeStruct((B * C, pad), jnp.float32)),
        scratch_shapes=[pltpu.VMEM((M, E), jnp.float32)],          # head-concat ctx
        compiler_params=pltpu.CompilerParams(vmem_limit_bytes=4 * 1024 * 1024),
    )(
        Q.reshape(M, 3).astype(jnp.float32), attn_bias, pool_mat, rep_z, rep_b,
        params["bflat_scaled"],
        params["fourier_wB"], params["in_w"], params["enc_wslab"],
        params["vec_slab"], params["enc_slab"], params["rot_slab"],
    )

    out6 = rot_padded[:, :6]
    R = sixd_to_rotation(out6).reshape(B, C, 3, 3)
    return R, params["B_candidates"], z


if __name__ == "__main__":
    key = jax.random.PRNGKey(0)
    pkey, dkey = jax.random.split(key)
    params, config = init_params(pkey)

    Bsz, Nvec = 2, 8
    Q = jax.random.normal(dkey, (Bsz, Nvec, 3), jnp.float32)

    fwd = jax.jit(functools.partial(qtor_forward, config=config))
    R, B_cand, z = fwd(params, Q)
    jax.block_until_ready((R, B_cand, z))

    C = config["num_theta_samples"]
    assert R.shape == (Bsz, C, 3, 3), R.shape
    assert B_cand.shape == (C, 3, 3), B_cand.shape
    assert z.shape == (Bsz, config["latent_dim"]), z.shape
    assert bool(jnp.all(jnp.isfinite(R)))
    assert bool(jnp.all(jnp.isfinite(z)))
    # Gram-Schmidt head must produce (near-)orthonormal rotations.
    rrt = jnp.einsum("bcij,bckj->bcik", R, R)
    eye = jnp.eye(3, dtype=jnp.float32)[None, None]
    assert float(jnp.max(jnp.abs(rrt - eye))) < 1e-3
    print("KERNEL_OK")
</pallas_src>

<mosaic_0001>
module attributes {stable_mosaic.version = 11 : i64} {
  func.func @_qtor_fused_kernel(%arg0: memref<16x3xf32, #tpu.memory_space<vmem>>, %arg1: memref<16x16xf32, #tpu.memory_space<vmem>>, %arg2: memref<2x16xf32, #tpu.memory_space<vmem>>, %arg3: memref<4x2xf32, #tpu.memory_space<vmem>>, %arg4: memref<4x2xf32, #tpu.memory_space<vmem>>, %arg5: memref<2x9xf32, #tpu.memory_space<vmem>>, %arg6: memref<3x16xf32, #tpu.memory_space<vmem>>, %arg7: memref<35x128xf32, #tpu.memory_space<vmem>>, %arg8: memref<2x128x768xf32, #tpu.memory_space<vmem>>, %arg9: memref<21x128xf32, #tpu.memory_space<vmem>>, %arg10: memref<131x64xf32, #tpu.memory_space<vmem>>, %arg11: memref<203x128xf32, #tpu.memory_space<vmem>>, %arg12: memref<2x64xf32, #tpu.memory_space<vmem>>, %arg13: memref<4x128xf32, #tpu.memory_space<vmem>>, %arg14: memref<16x128xf32, #tpu.memory_space<vmem>>) attributes {dimension_semantics = [], scalar_prefetch = 0 : i64, scratch_operands = 1 : i64, tpu.core_type = #tpu.core_type<tc>} {
    %c0 = arith.constant 0 : index
    %c0_0 = arith.constant 0 : index
    %0 = vector.load %arg0[%c0, %c0_0] : memref<16x3xf32, #tpu.memory_space<vmem>>, vector<16x3xf32>
    %c0_1 = arith.constant 0 : index
    %c0_2 = arith.constant 0 : index
    %1 = vector.load %arg6[%c0_1, %c0_2] : memref<3x16xf32, #tpu.memory_space<vmem>>, vector<3x16xf32>
    %cst = arith.constant dense<0.000000e+00> : vector<16x16xf32>
    %2 = tpu.matmul %0, %1, %cst {dimension_numbers = #tpu.dot_dimension_numbers<[1], [0], [0], [1], [0, 0, 1, 1], [], []>} : vector<16x3xf32>, vector<3x16xf32>, vector<16x16xf32> -> vector<16x16xf32>
    %c0_3 = arith.constant 0 : index
    %c0_4 = arith.constant 0 : index
    %3 = vector.load %arg7[%c0_3, %c0_4] : memref<35x128xf32, #tpu.memory_space<vmem>>, vector<3x128xf32>
    %cst_5 = arith.constant dense<0.000000e+00> : vector<16x128xf32>
    %4 = tpu.matmul %0, %3, %cst_5 {dimension_numbers = #tpu.dot_dimension_numbers<[1], [0], [0], [1], [0, 0, 1, 1], [], []>} : vector<16x3xf32>, vector<3x128xf32>, vector<16x128xf32> -> vector<16x128xf32>
    %5 = math.sin %2 : vector<16x16xf32>
    %c3 = arith.constant 3 : index
    %c0_6 = arith.constant 0 : index
    %6 = vector.load %arg7[%c3, %c0_6] : memref<35x128xf32, #tpu.memory_space<vmem>>, vector<16x128xf32>
    %cst_7 = arith.constant dense<0.000000e+00> : vector<16x128xf32>
    %7 = tpu.matmul %5, %6, %cst_7 {dimension_numbers = #tpu.dot_dimension_numbers<[1], [0], [0], [1], [0, 0, 1, 1], [], []>} : vector<16x16xf32>, vector<16x128xf32>, vector<16x128xf32> -> vector<16x128xf32>
    %8 = arith.addf %4, %7 : vector<16x128xf32>
    %9 = math.cos %2 : vector<16x16xf32>
    %c19 = arith.constant 19 : index
    %c0_8 = arith.constant 0 : index
    %10 = vector.load %arg7[%c19, %c0_8] : memref<35x128xf32, #tpu.memory_space<vmem>>, vector<16x128xf32>
    %cst_9 = arith.constant dense<0.000000e+00> : vector<16x128xf32>
    %11 = tpu.matmul %9, %10, %cst_9 {dimension_numbers = #tpu.dot_dimension_numbers<[1], [0], [0], [1], [0, 0, 1, 1], [], []>} : vector<16x16xf32>, vector<16x128xf32>, vector<16x128xf32> -> vector<16x128xf32>
    %12 = arith.addf %8, %11 : vector<16x128xf32>
    %c0_10 = arith.constant 0 : index
    %c0_11 = arith.constant 0 : index
    %13 = vector.load %arg9[%c0_10, %c0_11] : memref<21x128xf32, #tpu.memory_space<vmem>>, vector<1x128xf32>
    %14 = vector.broadcast %13 : vector<1x128xf32> to vector<16x128xf32>
    %15 = arith.addf %12, %14 : vector<16x128xf32>
    %c0_12 = arith.constant 0 : index
    %c0_13 = arith.constant 0 : index
    %16 = vector.load %arg1[%c0_12, %c0_13] : memref<16x16xf32, #tpu.memory_space<vmem>>, vector<16x16xf32>
    %c0_14 = arith.constant 0 : index
    %c0_15 = arith.constant 0 : index
    %c0_16 = arith.constant 0 : index
    %17 = vector.load %arg8[%c0_14, %c0_15, %c0_16] : memref<2x128x768xf32, #tpu.memory_space<vmem>>, vector<1x128x384xf32>
    %18 = vector.shape_cast %17 : vector<1x128x384xf32> to vector<128x384xf32>
    %cst_17 = arith.constant dense<0.000000e+00> : vector<16x384xf32>
    %19 = tpu.matmul %15, %18, %cst_17 {dimension_numbers = #tpu.dot_dimension_numbers<[1], [0], [0], [1], [0, 0, 1, 1], [], []>} : vector<16x128xf32>, vector<128x384xf32>, vector<16x384xf32> -> vector<16x384xf32>
    %20 = vector.extract_strided_slice %19 {offsets = [0, 0], sizes = [16, 128], strides = [1, 1]} : vector<16x384xf32> to vector<16x128xf32>
    %c1 = arith.constant 1 : index
    %c0_18 = arith.constant 0 : index
    %21 = vector.load %arg9[%c1, %c0_18] : memref<21x128xf32, #tpu.memory_space<vmem>>, vector<1x128xf32>
    %22 = vector.broadcast %21 : vector<1x128xf32> to vector<16x128xf32>
    %23 = arith.addf %20, %22 : vector<16x128xf32>
    %24 = vector.extract_strided_slice %19 {offsets = [0, 128], sizes = [16, 128], strides = [1, 1]} : vector<16x384xf32> to vector<16x128xf32>
    %c2 = arith.constant 2 : index
    %c0_19 = arith.constant 0 : index
    %25 = vector.load %arg9[%c2, %c0_19] : memref<21x128xf32, #tpu.memory_space<vmem>>, vector<1x128xf32>
    %26 = vector.broadcast %25 : vector<1x128xf32> to vector<16x128xf32>
    %27 = arith.addf %24, %26 : vector<16x128xf32>
    %28 = vector.extract_strided_slice %19 {offsets = [0, 256], sizes = [16, 128], strides = [1, 1]} : vector<16x384xf32> to vector<16x128xf32>
    %c3_20 = arith.constant 3 : index
    %c0_21 = arith.constant 0 : index
    %29 = vector.load %arg9[%c3_20, %c0_21] : memref<21x128xf32, #tpu.memory_space<vmem>>, vector<1x128xf32>
    %30 = vector.broadcast %29 : vector<1x128xf32> to vector<16x128xf32>
    %31 = arith.addf %28, %30 : vector<16x128xf32>
    %32 = vector.extract_strided_slice %23 {offsets = [0, 0], sizes = [16, 32], strides = [1, 1]} : vector<16x128xf32> to vector<16x32xf32>
    %33 = vector.extract_strided_slice %27 {offsets = [0, 0], sizes = [16, 32], strides = [1, 1]} : vector<16x128xf32> to vector<16x32xf32>
    %34 = vector.extract_strided_slice %31 {offsets = [0, 0], sizes = [16, 32], strides = [1, 1]} : vector<16x128xf32> to vector<16x32xf32>
    %cst_22 = arith.constant dense<0.000000e+00> : vector<16x16xf32>
    %35 = tpu.matmul %32, %33, %cst_22 {dimension_numbers = #tpu.dot_dimension_numbers<[1], [1], [0], [0], [0, 0, 1, 0], [], []>} : vector<16x32xf32>, vector<16x32xf32>, vector<16x16xf32> -> vector<16x16xf32>
    %cst_23 = arith.constant 0.176776692 : f32
    %36 = vector.broadcast %cst_23 : f32 to vector<16x16xf32>
    %37 = arith.mulf %35, %36 : vector<16x16xf32>
    %38 = arith.addf %37, %16 : vector<16x16xf32>
    %cst_24 = arith.constant dense<0xFF800000> : vector<16xf32>
    %39 = vector.multi_reduction <maximumf>, %38, %cst_24 [1] : vector<16x16xf32> to vector<16xf32>
    %40 = vector.shape_cast %39 : vector<16xf32> to vector<16x1xf32>
    %41 = vector.broadcast %40 : vector<16x1xf32> to vector<16x16xf32>
    %42 = arith.subf %38, %41 : vector<16x16xf32>
    %43 = math.exp %42 : vector<16x16xf32>
    %cst_25 = arith.constant dense<0.000000e+00> : vector<16xf32>
    %44 = vector.multi_reduction <add>, %43, %cst_25 [1] : vector<16x16xf32> to vector<16xf32>
    %45 = vector.shape_cast %44 : vector<16xf32> to vector<16x1xf32>
    %46 = tpu.reciprocal %45 {approx = true} : vector<16x1xf32> -> vector<16x1xf32>
    %47 = vector.broadcast %46 : vector<16x1xf32> to vector<16x16xf32>
    %48 = arith.mulf %43, %47 : vector<16x16xf32>
    %cst_26 = arith.constant dense<0.000000e+00> : vector<16x32xf32>
    %49 = tpu.matmul %48, %34, %cst_26 {dimension_numbers = #tpu.dot_dimension_numbers<[1], [0], [0], [1], [0, 0, 1, 1], [], []>} : vector<16x16xf32>, vector<16x32xf32>, vector<16x32xf32> -> vector<16x32xf32>
    %c0_27 = arith.constant 0 : index
    %c0_28 = arith.constant 0 : index
    %50 = vector.load %arg14[%c0_27, %c0_28] : memref<16x128xf32, #tpu.memory_space<vmem>>, vector<16x32xf32>
    tpu.vector_store %arg14[%c0_27, %c0_28], %49 {strides = array<i32>} : memref<16x128xf32, #tpu.memory_space<vmem>>, vector<16x32xf32>,
    %51 = vector.extract_strided_slice %23 {offsets = [0, 32], sizes = [16, 32], strides = [1, 1]} : vector<16x128xf32> to vector<16x32xf32>
    %52 = vector.extract_strided_slice %27 {offsets = [0, 32], sizes = [16, 32], strides = [1, 1]} : vector<16x128xf32> to vector<16x32xf32>
    %53 = vector.extract_strided_slice %31 {offsets = [0, 32], sizes = [16, 32], strides = [1, 1]} : vector<16x128xf32> to vector<16x32xf32>
    %cst_29 = arith.constant dense<0.000000e+00> : vector<16x16xf32>
    %54 = tpu.matmul %51, %52, %cst_29 {dimension_numbers = #tpu.dot_dimension_numbers<[1], [1], [0], [0], [0, 0, 1, 0], [], []>} : vector<16x32xf32>, vector<16x32xf32>, vector<16x16xf32> -> vector<16x16xf32>
    %cst_30 = arith.constant 0.176776692 : f32
    %55 = vector.broadcast %cst_30 : f32 to vector<16x16xf32>
    %56 = arith.mulf %54, %55 : vector<16x16xf32>
    %57 = arith.addf %56, %16 : vector<16x16xf32>
    %cst_31 = arith.constant dense<0xFF800000> : vector<16xf32>
    %58 = vector.multi_reduction <maximumf>, %57, %cst_31 [1] : vector<16x16xf32> to vector<16xf32>
    %59 = vector.shape_cast %58 : vector<16xf32> to vector<16x1xf32>
    %60 = vector.broadcast %59 : vector<16x1xf32> to vector<16x16xf32>
    %61 = arith.subf %57, %60 : vector<16x16xf32>
    %62 = math.exp %61 : vector<16x16xf32>
    %cst_32 = arith.constant dense<0.000000e+00> : vector<16xf32>
    %63 = vector.multi_reduction <add>, %62, %cst_32 [1] : vector<16x16xf32> to vector<16xf32>
    %64 = vector.shape_cast %63 : vector<16xf32> to vector<16x1xf32>
    %65 = tpu.reciprocal %64 {approx = true} : vector<16x1xf32> -> vector<16x1xf32>
    %66 = vector.broadcast %65 : vector<16x1xf32> to vector<16x16xf32>
    %67 = arith.mulf %62, %66 : vector<16x16xf32>
    %cst_33 = arith.constant dense<0.000000e+00> : vector<16x32xf32>
    %68 = tpu.matmul %67, %53, %cst_33 {dimension_numbers = #tpu.dot_dimension_numbers<[1], [0], [0], [1], [0, 0, 1, 1], [], []>} : vector<16x16xf32>, vector<16x32xf32>, vector<16x32xf32> -> vector<16x32xf32>
    %c0_34 = arith.constant 0 : index
    %c32 = arith.constant 32 : index
    %69 = vector.load %arg14[%c0_34, %c32] : memref<16x128xf32, #tpu.memory_space<vmem>>, vector<16x32xf32>
    tpu.vector_store %arg14[%c0_34, %c32], %68 {strides = array<i32>} : memref<16x128xf32, #tpu.memory_space<vmem>>, vector<16x32xf32>,
    %70 = vector.extract_strided_slice %23 {offsets = [0, 64], sizes = [16, 32], strides = [1, 1]} : vector<16x128xf32> to vector<16x32xf32>
    %71 = vector.extract_strided_slice %27 {offsets = [0, 64], sizes = [16, 32], strides = [1, 1]} : vector<16x128xf32> to vector<16x32xf32>
    %72 = vector.extract_strided_slice %31 {offsets = [0, 64], sizes = [16, 32], strides = [1, 1]} : vector<16x128xf32> to vector<16x32xf32>
    %cst_35 = arith.constant dense<0.000000e+00> : vector<16x16xf32>
    %73 = tpu.matmul %70, %71, %cst_35 {dimension_numbers = #tpu.dot_dimension_numbers<[1], [1], [0], [0], [0, 0, 1, 0], [], []>} : vector<16x32xf32>, vector<16x32xf32>, vector<16x16xf32> -> vector<16x16xf32>
    %cst_36 = arith.constant 0.176776692 : f32
    %74 = vector.broadcast %cst_36 : f32 to vector<16x16xf32>
    %75 = arith.mulf %73, %74 : vector<16x16xf32>
    %76 = arith.addf %75, %16 : vector<16x16xf32>
    %cst_37 = arith.constant dense<0xFF800000> : vector<16xf32>
    %77 = vector.multi_reduction <maximumf>, %76, %cst_37 [1] : vector<16x16xf32> to vector<16xf32>
    %78 = vector.shape_cast %77 : vector<16xf32> to vector<16x1xf32>
    %79 = vector.broadcast %78 : vector<16x1xf32> to vector<16x16xf32>
    %80 = arith.subf %76, %79 : vector<16x16xf32>
    %81 = math.exp %80 : vector<16x16xf32>
    %cst_38 = arith.constant dense<0.000000e+00> : vector<16xf32>
    %82 = vector.multi_reduction <add>, %81, %cst_38 [1] : vector<16x16xf32> to vector<16xf32>
    %83 = vector.shape_cast %82 : vector<16xf32> to vector<16x1xf32>
    %84 = tpu.reciprocal %83 {approx = true} : vector<16x1xf32> -> vector<16x1xf32>
    %85 = vector.broadcast %84 : vector<16x1xf32> to vector<16x16xf32>
    %86 = arith.mulf %81, %85 : vector<16x16xf32>
    %cst_39 = arith.constant dense<0.000000e+00> : vector<16x32xf32>
    %87 = tpu.matmul %86, %72, %cst_39 {dimension_numbers = #tpu.dot_dimension_numbers<[1], [0], [0], [1], [0, 0, 1, 1], [], []>} : vector<16x16xf32>, vector<16x32xf32>, vector<16x32xf32> -> vector<16x32xf32>
    %c0_40 = arith.constant 0 : index
    %c64 = arith.constant 64 : index
    %88 = vector.load %arg14[%c0_40, %c64] : memref<16x128xf32, #tpu.memory_space<vmem>>, vector<16x32xf32>
    tpu.vector_store %arg14[%c0_40, %c64], %87 {strides = array<i32>} : memref<16x128xf32, #tpu.memory_space<vmem>>, vector<16x32xf32>,
    %89 = vector.extract_strided_slice %23 {offsets = [0, 96], sizes = [16, 32], strides = [1, 1]} : vector<16x128xf32> to vector<16x32xf32>
    %90 = vector.extract_strided_slice %27 {offsets = [0, 96], sizes = [16, 32], strides = [1, 1]} : vector<16x128xf32> to vector<16x32xf32>
    %91 = vector.extract_strided_slice %31 {offsets = [0, 96], sizes = [16, 32], strides = [1, 1]} : vector<16x128xf32> to vector<16x32xf32>
    %cst_41 = arith.constant dense<0.000000e+00> : vector<16x16xf32>
    %92 = tpu.matmul %89, %90, %cst_41 {dimension_numbers = #tpu.dot_dimension_numbers<[1], [1], [0], [0], [0, 0, 1, 0], [], []>} : vector<16x32xf32>, vector<16x32xf32>, vector<16x16xf32> -> vector<16x16xf32>
    %cst_42 = arith.constant 0.176776692 : f32
    %93 = vector.broadcast %cst_42 : f32 to vector<16x16xf32>
    %94 = arith.mulf %92, %93 : vector<16x16xf32>
    %95 = arith.addf %94, %16 : vector<16x16xf32>
    %cst_43 = arith.constant dense<0xFF800000> : vector<16xf32>
    %96 = vector.multi_reduction <maximumf>, %95, %cst_43 [1] : vector<16x16xf32> to vector<16xf32>
    %97 = vector.shape_cast %96 : vector<16xf32> to vector<16x1xf32>
    %98 = vector.broadcast %97 : vector<16x1xf32> to vector<16x16xf32>
    %99 = arith.subf %95, %98 : vector<16x16xf32>
    %100 = math.exp %99 : vector<16x16xf32>
    %cst_44 = arith.constant dense<0.000000e+00> : vector<16xf32>
    %101 = vector.multi_reduction <add>, %100, %cst_44 [1] : vector<16x16xf32> to vector<16xf32>
    %102 = vector.shape_cast %101 : vector<16xf32> to vector<16x1xf32>
    %103 = tpu.reciprocal %102 {approx = true} : vector<16x1xf32> -> vector<16x1xf32>
    %104 = vector.broadcast %103 : vector<16x1xf32> to vector<16x16xf32>
    %105 = arith.mulf %100, %104 : vector<16x16xf32>
    %cst_45 = arith.constant dense<0.000000e+00> : vector<16x32xf32>
    %106 = tpu.matmul %105, %91, %cst_45 {dimension_numbers = #tpu.dot_dimension_numbers<[1], [0], [0], [1], [0, 0, 1, 1], [], []>} : vector<16x16xf32>, vector<16x32xf32>, vector<16x32xf32> -> vector<16x32xf32>
    %c0_46 = arith.constant 0 : index
    %c96 = arith.constant 96 : index
    %107 = vector.load %arg14[%c0_46, %c96] : memref<16x128xf32, #tpu.memory_space<vmem>>, vector<16x32xf32>
    tpu.vector_store %arg14[%c0_46, %c96], %106 {strides = array<i32>} : memref<16x128xf32, #tpu.memory_space<vmem>>, vector<16x32xf32>,
    %c0_47 = arith.constant 0 : index
    %c0_48 = arith.constant 0 : index
    %108 = vector.load %arg14[%c0_47, %c0_48] : memref<16x128xf32, #tpu.memory_space<vmem>>, vector<16x128xf32>
    %c0_49 = arith.constant 0 : index
    %c0_50 = arith.constant 0 : index
    %c384 = arith.constant 384 : index
    %109 = vector.load %arg8[%c0_49, %c0_50, %c384] : memref<2x128x768xf32, #tpu.memory_space<vmem>>, vector<1x128x128xf32>
    %110 = vector.shape_cast %109 : vector<1x128x128xf32> to vector<128x128xf32>
    %cst_51 = arith.constant dense<0.000000e+00> : vector<16x128xf32>
    %111 = tpu.matmul %108, %110, %cst_51 {dimension_numbers = #tpu.dot_dimension_numbers<[1], [0], [0], [1], [0, 0, 1, 1], [], []>} : vector<16x128xf32>, vector<128x128xf32>, vector<16x128xf32> -> vector<16x128xf32>
    %c4 = arith.constant 4 : index
    %c0_52 = arith.constant 0 : index
    %112 = vector.load %arg9[%c4, %c0_52] : memref<21x128xf32, #tpu.memory_space<vmem>>, vector<1x128xf32>
    %113 = vector.broadcast %112 : vector<1x128xf32> to vector<16x128xf32>
    %114 = arith.addf %111, %113 : vector<16x128xf32>
    %115 = arith.addf %15, %114 : vector<16x128xf32>
    %c5 = arith.constant 5 : index
    %c0_53 = arith.constant 0 : index
    %116 = vector.load %arg9[%c5, %c0_53] : memref<21x128xf32, #tpu.memory_space<vmem>>, vector<1x128xf32>
    %c6 = arith.constant 6 : index
    %c0_54 = arith.constant 0 : index
    %117 = vector.load %arg9[%c6, %c0_54] : memref<21x128xf32, #tpu.memory_space<vmem>>, vector<1x128xf32>
    %cst_55 = arith.constant dense<0.000000e+00> : vector<16xf32>
    %118 = vector.multi_reduction <add>, %115, %cst_55 [1] : vector<16x128xf32> to vector<16xf32>
    %119 = vector.shape_cast %118 : vector<16xf32> to vector<16x1xf32>
    %cst_56 = arith.constant 1.280000e+02 : f32
    %120 = vector.broadcast %cst_56 : f32 to vector<16x1xf32>
    %121 = arith.divf %119, %120 : vector<16x1xf32>
    %122 = vector.broadcast %121 : vector<16x1xf32> to vector<16x128xf32>
    %123 = arith.subf %115, %122 : vector<16x128xf32>
    %124 = arith.mulf %123, %123 : vector<16x128xf32>
    %cst_57 = arith.constant dense<0.000000e+00> : vector<16xf32>
    %125 = vector.multi_reduction <add>, %124, %cst_57 [1] : vector<16x128xf32> to vector<16xf32>
    %126 = vector.shape_cast %125 : vector<16xf32> to vector<16x1xf32>
    %cst_58 = arith.constant 1.280000e+02 : f32
    %127 = vector.broadcast %cst_58 : f32 to vector<16x1xf32>
    %128 = arith.divf %126, %127 : vector<16x1xf32>
    %129 = vector.broadcast %121 : vector<16x1xf32> to vector<16x128xf32>
    %130 = arith.subf %115, %129 : vector<16x128xf32>
    %cst_59 = arith.constant 9.99999974E-6 : f32
    %131 = vector.broadcast %cst_59 : f32 to vector<16x1xf32>
    %132 = arith.addf %128, %131 : vector<16x1xf32>
    %133 = math.rsqrt %132 : vector<16x1xf32>
    %134 = vector.broadcast %133 : vector<16x1xf32> to vector<16x128xf32>
    %135 = arith.mulf %130, %134 : vector<16x128xf32>
    %136 = vector.broadcast %116 : vector<1x128xf32> to vector<16x128xf32>
    %137 = arith.mulf %135, %136 : vector<16x128xf32>
    %138 = vector.broadcast %117 : vector<1x128xf32> to vector<16x128xf32>
    %139 = arith.addf %137, %138 : vector<16x128xf32>
    %c0_60 = arith.constant 0 : index
    %c0_61 = arith.constant 0 : index
    %c512 = arith.constant 512 : index
    %140 = vector.load %arg8[%c0_60, %c0_61, %c512] : memref<2x128x768xf32, #tpu.memory_space<vmem>>, vector<1x128x128xf32>
    %141 = vector.shape_cast %140 : vector<1x128x128xf32> to vector<128x128xf32>
    %cst_62 = arith.constant dense<0.000000e+00> : vector<16x128xf32>
    %142 = tpu.matmul %139, %141, %cst_62 {dimension_numbers = #tpu.dot_dimension_numbers<[1], [0], [0], [1], [0, 0, 1, 1], [], []>} : vector<16x128xf32>, vector<128x128xf32>, vector<16x128xf32> -> vector<16x128xf32>
    %c7 = arith.constant 7 : index
    %c0_63 = arith.constant 0 : index
    %143 = vector.load %arg9[%c7, %c0_63] : memref<21x128xf32, #tpu.memory_space<vmem>>, vector<1x128xf32>
    %144 = vector.broadcast %143 : vector<1x128xf32> to vector<16x128xf32>
    %145 = arith.addf %142, %144 : vector<16x128xf32>
    %cst_64 = arith.constant 0.000000e+00 : f32
    %146 = vector.broadcast %cst_64 : f32 to vector<16x128xf32>
    %147 = arith.maximumf %145, %146 : vector<16x128xf32>
    %c0_65 = arith.constant 0 : index
    %c0_66 = arith.constant 0 : index
    %c640 = arith.constant 640 : index
    %148 = vector.load %arg8[%c0_65, %c0_66, %c640] : memref<2x128x768xf32, #tpu.memory_space<vmem>>, vector<1x128x128xf32>
    %149 = vector.shape_cast %148 : vector<1x128x128xf32> to vector<128x128xf32>
    %cst_67 = arith.constant dense<0.000000e+00> : vector<16x128xf32>
    %150 = tpu.matmul %147, %149, %cst_67 {dimension_numbers = #tpu.dot_dimension_numbers<[1], [0], [0], [1], [0, 0, 1, 1], [], []>} : vector<16x128xf32>, vector<128x128xf32>, vector<16x128xf32> -> vector<16x128xf32>
    %c8 = arith.constant 8 : index
    %c0_68 = arith.constant 0 : index
    %151 = vector.load %arg9[%c8, %c0_68] : memref<21x128xf32, #tpu.memory_space<vmem>>, vector<1x128xf32>
    %152 = vector.broadcast %151 : vector<1x128xf32> to vector<16x128xf32>
    %153 = arith.addf %150, %152 : vector<16x128xf32>
    %154 = arith.addf %139, %153 : vector<16x128xf32>
    %c9 = arith.constant 9 : index
    %c0_69 = arith.constant 0 : index
    %155 = vector.load %arg9[%c9, %c0_69] : memref<21x128xf32, #tpu.memory_space<vmem>>, vector<1x128xf32>
    %c10 = arith.constant 10 : index
    %c0_70 = arith.constant 0 : index
    %156 = vector.load %arg9[%c10, %c0_70] : memref<21x128xf32, #tpu.memory_space<vmem>>, vector<1x128xf32>
    %cst_71 = arith.constant dense<0.000000e+00> : vector<16xf32>
    %157 = vector.multi_reduction <add>, %154, %cst_71 [1] : vector<16x128xf32> to vector<16xf32>
    %158 = vector.shape_cast %157 : vector<16xf32> to vector<16x1xf32>
    %cst_72 = arith.constant 1.280000e+02 : f32
    %159 = vector.broadcast %cst_72 : f32 to vector<16x1xf32>
    %160 = arith.divf %158, %159 : vector<16x1xf32>
    %161 = vector.broadcast %160 : vector<16x1xf32> to vector<16x128xf32>
    %162 = arith.subf %154, %161 : vector<16x128xf32>
    %163 = arith.mulf %162, %162 : vector<16x128xf32>
    %cst_73 = arith.constant dense<0.000000e+00> : vector<16xf32>
    %164 = vector.multi_reduction <add>, %163, %cst_73 [1] : vector<16x128xf32> to vector<16xf32>
    %165 = vector.shape_cast %164 : vector<16xf32> to vector<16x1xf32>
    %cst_74 = arith.constant 1.280000e+02 : f32
    %166 = vector.broadcast %cst_74 : f32 to vector<16x1xf32>
    %167 = arith.divf %165, %166 : vector<16x1xf32>
    %168 = vector.broadcast %160 : vector<16x1xf32> to vector<16x128xf32>
    %169 = arith.subf %154, %168 : vector<16x128xf32>
    %cst_75 = arith.constant 9.99999974E-6 : f32
    %170 = vector.broadcast %cst_75 : f32 to vector<16x1xf32>
    %171 = arith.addf %167, %170 : vector<16x1xf32>
    %172 = math.rsqrt %171 : vector<16x1xf32>
    %173 = vector.broadcast %172 : vector<16x1xf32> to vector<16x128xf32>
    %174 = arith.mulf %169, %173 : vector<16x128xf32>
    %175 = vector.broadcast %155 : vector<1x128xf32> to vector<16x128xf32>
    %176 = arith.mulf %174, %175 : vector<16x128xf32>
    %177 = vector.broadcast %156 : vector<1x128xf32> to vector<16x128xf32>
    %178 = arith.addf %176, %177 : vector<16x128xf32>
    %c1_76 = arith.constant 1 : index
    %c0_77 = arith.constant 0 : index
    %c0_78 = arith.constant 0 : index
    %179 = vector.load %arg8[%c1_76, %c0_77, %c0_78] : memref<2x128x768xf32, #tpu.memory_space<vmem>>, vector<1x128x384xf32>
    %180 = vector.shape_cast %179 : vector<1x128x384xf32> to vector<128x384xf32>
    %cst_79 = arith.constant dense<0.000000e+00> : vector<16x384xf32>
    %181 = tpu.matmul %178, %180, %cst_79 {dimension_numbers = #tpu.dot_dimension_numbers<[1], [0], [0], [1], [0, 0, 1, 1], [], []>} : vector<16x128xf32>, vector<128x384xf32>, vector<16x384xf32> -> vector<16x384xf32>
    %182 = vector.extract_strided_slice %181 {offsets = [0, 0], sizes = [16, 128], strides = [1, 1]} : vector<16x384xf32> to vector<16x128xf32>
    %c11 = arith.constant 11 : index
    %c0_80 = arith.constant 0 : index
    %183 = vector.load %arg9[%c11, %c0_80] : memref<21x128xf32, #tpu.memory_space<vmem>>, vector<1x128xf32>
    %184 = vector.broadcast %183 : vector<1x128xf32> to vector<16x128xf32>
    %185 = arith.addf %182, %184 : vector<16x128xf32>
    %186 = vector.extract_strided_slice %181 {offsets = [0, 128], sizes = [16, 128], strides = [1, 1]} : vector<16x384xf32> to vector<16x128xf32>
    %c12 = arith.constant 12 : index
    %c0_81 = arith.constant 0 : index
    %187 = vector.load %arg9[%c12, %c0_81] : memref<21x128xf32, #tpu.memory_space<vmem>>, vector<1x128xf32>
    %188 = vector.broadcast %187 : vector<1x128xf32> to vector<16x128xf32>
    %189 = arith.addf %186, %188 : vector<16x128xf32>
    %190 = vector.extract_strided_slice %181 {offsets = [0, 256], sizes = [16, 128], strides = [1, 1]} : vector<16x384xf32> to vector<16x128xf32>
    %c13 = arith.constant 13 : index
    %c0_82 = arith.constant 0 : index
    %191 = vector.load %arg9[%c13, %c0_82] : memref<21x128xf32, #tpu.memory_space<vmem>>, vector<1x128xf32>
    %192 = vector.broadcast %191 : vector<1x128xf32> to vector<16x128xf32>
    %193 = arith.addf %190, %192 : vector<16x128xf32>
    %194 = vector.extract_strided_slice %185 {offsets = [0, 0], sizes = [16, 32], strides = [1, 1]} : vector<16x128xf32> to vector<16x32xf32>
    %195 = vector.extract_strided_slice %189 {offsets = [0, 0], sizes = [16, 32], strides = [1, 1]} : vector<16x128xf32> to vector<16x32xf32>
    %196 = vector.extract_strided_slice %193 {offsets = [0, 0], sizes = [16, 32], strides = [1, 1]} : vector<16x128xf32> to vector<16x32xf32>
    %cst_83 = arith.constant dense<0.000000e+00> : vector<16x16xf32>
    %197 = tpu.matmul %194, %195, %cst_83 {dimension_numbers = #tpu.dot_dimension_numbers<[1], [1], [0], [0], [0, 0, 1, 0], [], []>} : vector<16x32xf32>, vector<16x32xf32>, vector<16x16xf32> -> vector<16x16xf32>
    %cst_84 = arith.constant 0.176776692 : f32
    %198 = vector.broadcast %cst_84 : f32 to vector<16x16xf32>
    %199 = arith.mulf %197, %198 : vector<16x16xf32>
    %200 = arith.addf %199, %16 : vector<16x16xf32>
    %cst_85 = arith.constant dense<0xFF800000> : vector<16xf32>
    %201 = vector.multi_reduction <maximumf>, %200, %cst_85 [1] : vector<16x16xf32> to vector<16xf32>
    %202 = vector.shape_cast %201 : vector<16xf32> to vector<16x1xf32>
    %203 = vector.broadcast %202 : vector<16x1xf32> to vector<16x16xf32>
    %204 = arith.subf %200, %203 : vector<16x16xf32>
    %205 = math.exp %204 : vector<16x16xf32>
    %cst_86 = arith.constant dense<0.000000e+00> : vector<16xf32>
    %206 = vector.multi_reduction <add>, %205, %cst_86 [1] : vector<16x16xf32> to vector<16xf32>
    %207 = vector.shape_cast %206 : vector<16xf32> to vector<16x1xf32>
    %208 = tpu.reciprocal %207 {approx = true} : vector<16x1xf32> -> vector<16x1xf32>
    %209 = vector.broadcast %208 : vector<16x1xf32> to vector<16x16xf32>
    %210 = arith.mulf %205, %209 : vector<16x16xf32>
    %cst_87 = arith.constant dense<0.000000e+00> : vector<16x32xf32>
    %211 = tpu.matmul %210, %196, %cst_87 {dimension_numbers = #tpu.dot_dimension_numbers<[1], [0], [0], [1], [0, 0, 1, 1], [], []>} : vector<16x16xf32>, vector<16x32xf32>, vector<16x32xf32> -> vector<16x32xf32>
    %c0_88 = arith.constant 0 : index
    %c0_89 = arith.constant 0 : index
    %212 = vector.load %arg14[%c0_88, %c0_89] : memref<16x128xf32, #tpu.memory_space<vmem>>, vector<16x32xf32>
    tpu.vector_store %arg14[%c0_88, %c0_89], %211 {strides = array<i32>} : memref<16x128xf32, #tpu.memory_space<vmem>>, vector<16x32xf32>,
    %213 = vector.extract_strided_slice %185 {offsets = [0, 32], sizes = [16, 32], strides = [1, 1]} : vector<16x128xf32> to vector<16x32xf32>
    %214 = vector.extract_strided_slice %189 {offsets = [0, 32], sizes = [16, 32], strides = [1, 1]} : vector<16x128xf32> to vector<16x32xf32>
    %215 = vector.extract_strided_slice %193 {offsets = [0, 32], sizes = [16, 32], strides = [1, 1]} : vector<16x128xf32> to vector<16x32xf32>
    %cst_90 = arith.constant dense<0.000000e+00> : vector<16x16xf32>
    %216 = tpu.matmul %213, %214, %cst_90 {dimension_numbers = #tpu.dot_dimension_numbers<[1], [1], [0], [0], [0, 0, 1, 0], [], []>} : vector<16x32xf32>, vector<16x32xf32>, vector<16x16xf32> -> vector<16x16xf32>
    %cst_91 = arith.constant 0.176776692 : f32
    %217 = vector.broadcast %cst_91 : f32 to vector<16x16xf32>
    %218 = arith.mulf %216, %217 : vector<16x16xf32>
    %219 = arith.addf %218, %16 : vector<16x16xf32>
    %cst_92 = arith.constant dense<0xFF800000> : vector<16xf32>
    %220 = vector.multi_reduction <maximumf>, %219, %cst_92 [1] : vector<16x16xf32> to vector<16xf32>
    %221 = vector.shape_cast %220 : vector<16xf32> to vector<16x1xf32>
    %222 = vector.broadcast %221 : vector<16x1xf32> to vector<16x16xf32>
    %223 = arith.subf %219, %222 : vector<16x16xf32>
    %224 = math.exp %223 : vector<16x16xf32>
    %cst_93 = arith.constant dense<0.000000e+00> : vector<16xf32>
    %225 = vector.multi_reduction <add>, %224, %cst_93 [1] : vector<16x16xf32> to vector<16xf32>
    %226 = vector.shape_cast %225 : vector<16xf32> to vector<16x1xf32>
    %227 = tpu.reciprocal %226 {approx = true} : vector<16x1xf32> -> vector<16x1xf32>
    %228 = vector.broadcast %227 : vector<16x1xf32> to vector<16x16xf32>
    %229 = arith.mulf %224, %228 : vector<16x16xf32>
    %cst_94 = arith.constant dense<0.000000e+00> : vector<16x32xf32>
    %230 = tpu.matmul %229, %215, %cst_94 {dimension_numbers = #tpu.dot_dimension_numbers<[1], [0], [0], [1], [0, 0, 1, 1], [], []>} : vector<16x16xf32>, vector<16x32xf32>, vector<16x32xf32> -> vector<16x32xf32>
    %c0_95 = arith.constant 0 : index
    %c32_96 = arith.constant 32 : index
    %231 = vector.load %arg14[%c0_95, %c32_96] : memref<16x128xf32, #tpu.memory_space<vmem>>, vector<16x32xf32>
    tpu.vector_store %arg14[%c0_95, %c32_96], %230 {strides = array<i32>} : memref<16x128xf32, #tpu.memory_space<vmem>>, vector<16x32xf32>,
    %232 = vector.extract_strided_slice %185 {offsets = [0, 64], sizes = [16, 32], strides = [1, 1]} : vector<16x128xf32> to vector<16x32xf32>
    %233 = vector.extract_strided_slice %189 {offsets = [0, 64], sizes = [16, 32], strides = [1, 1]} : vector<16x128xf32> to vector<16x32xf32>
    %234 = vector.extract_strided_slice %193 {offsets = [0, 64], sizes = [16, 32], strides = [1, 1]} : vector<16x128xf32> to vector<16x32xf32>
    %cst_97 = arith.constant dense<0.000000e+00> : vector<16x16xf32>
    %235 = tpu.matmul %232, %233, %cst_97 {dimension_numbers = #tpu.dot_dimension_numbers<[1], [1], [0], [0], [0, 0, 1, 0], [], []>} : vector<16x32xf32>, vector<16x32xf32>, vector<16x16xf32> -> vector<16x16xf32>
    %cst_98 = arith.constant 0.176776692 : f32
    %236 = vector.broadcast %cst_98 : f32 to vector<16x16xf32>
    %237 = arith.mulf %235, %236 : vector<16x16xf32>
    %238 = arith.addf %237, %16 : vector<16x16xf32>
    %cst_99 = arith.constant dense<0xFF800000> : vector<16xf32>
    %239 = vector.multi_reduction <maximumf>, %238, %cst_99 [1] : vector<16x16xf32> to vector<16xf32>
    %240 = vector.shape_cast %239 : vector<16xf32> to vector<16x1xf32>
    %241 = vector.broadcast %240 : vector<16x1xf32> to vector<16x16xf32>
    %242 = arith.subf %238, %241 : vector<16x16xf32>
    %243 = math.exp %242 : vector<16x16xf32>
    %cst_100 = arith.constant dense<0.000000e+00> : vector<16xf32>
    %244 = vector.multi_reduction <add>, %243, %cst_100 [1] : vector<16x16xf32> to vector<16xf32>
    %245 = vector.shape_cast %244 : vector<16xf32> to vector<16x1xf32>
    %246 = tpu.reciprocal %245 {approx = true} : vector<16x1xf32> -> vector<16x1xf32>
    %247 = vector.broadcast %246 : vector<16x1xf32> to vector<16x16xf32>
    %248 = arith.mulf %243, %247 : vector<16x16xf32>
    %cst_101 = arith.constant dense<0.000000e+00> : vector<16x32xf32>
    %249 = tpu.matmul %248, %234, %cst_101 {dimension_numbers = #tpu.dot_dimension_numbers<[1], [0], [0], [1], [0, 0, 1, 1], [], []>} : vector<16x16xf32>, vector<16x32xf32>, vector<16x32xf32> -> vector<16x32xf32>
    %c0_102 = arith.constant 0 : index
    %c64_103 = arith.constant 64 : index
    %250 = vector.load %arg14[%c0_102, %c64_103] : memref<16x128xf32, #tpu.memory_space<vmem>>, vector<16x32xf32>
    tpu.vector_store %arg14[%c0_102, %c64_103], %249 {strides = array<i32>} : memref<16x128xf32, #tpu.memory_space<vmem>>, vector<16x32xf32>,
    %251 = vector.extract_strided_slice %185 {offsets = [0, 96], sizes = [16, 32], strides = [1, 1]} : vector<16x128xf32> to vector<16x32xf32>
    %252 = vector.extract_strided_slice %189 {offsets = [0, 96], sizes = [16, 32], strides = [1, 1]} : vector<16x128xf32> to vector<16x32xf32>
    %253 = vector.extract_strided_slice %193 {offsets = [0, 96], sizes = [16, 32], strides = [1, 1]} : vector<16x128xf32> to vector<16x32xf32>
    %cst_104 = arith.constant dense<0.000000e+00> : vector<16x16xf32>
    %254 = tpu.matmul %251, %252, %cst_104 {dimension_numbers = #tpu.dot_dimension_numbers<[1], [1], [0], [0], [0, 0, 1, 0], [], []>} : vector<16x32xf32>, vector<16x32xf32>, vector<16x16xf32> -> vector<16x16xf32>
    %cst_105 = arith.constant 0.176776692 : f32
    %255 = vector.broadcast %cst_105 : f32 to vector<16x16xf32>
    %256 = arith.mulf %254, %255 : vector<16x16xf32>
    %257 = arith.addf %256, %16 : vector<16x16xf32>
    %cst_106 = arith.constant dense<0xFF800000> : vector<16xf32>
    %258 = vector.multi_reduction <maximumf>, %257, %cst_106 [1] : vector<16x16xf32> to vector<16xf32>
    %259 = vector.shape_cast %258 : vector<16xf32> to vector<16x1xf32>
    %260 = vector.broadcast %259 : vector<16x1xf32> to vector<16x16xf32>
    %261 = arith.subf %257, %260 : vector<16x16xf32>
    %262 = math.exp %261 : vector<16x16xf32>
    %cst_107 = arith.constant dense<0.000000e+00> : vector<16xf32>
    %263 = vector.multi_reduction <add>, %262, %cst_107 [1] : vector<16x16xf32> to vector<16xf32>
    %264 = vector.shape_cast %263 : vector<16xf32> to vector<16x1xf32>
    %265 = tpu.reciprocal %264 {approx = true} : vector<16x1xf32> -> vector<16x1xf32>
    %266 = vector.broadcast %265 : vector<16x1xf32> to vector<16x16xf32>
    %267 = arith.mulf %262, %266 : vector<16x16xf32>
    %cst_108 = arith.constant dense<0.000000e+00> : vector<16x32xf32>
    %268 = tpu.matmul %267, %253, %cst_108 {dimension_numbers = #tpu.dot_dimension_numbers<[1], [0], [0], [1], [0, 0, 1, 1], [], []>} : vector<16x16xf32>, vector<16x32xf32>, vector<16x32xf32> -> vector<16x32xf32>
    %c0_109 = arith.constant 0 : index
    %c96_110 = arith.constant 96 : index
    %269 = vector.load %arg14[%c0_109, %c96_110] : memref<16x128xf32, #tpu.memory_space<vmem>>, vector<16x32xf32>
    tpu.vector_store %arg14[%c0_109, %c96_110], %268 {strides = array<i32>} : memref<16x128xf32, #tpu.memory_space<vmem>>, vector<16x32xf32>,
    %c0_111 = arith.constant 0 : index
    %c0_112 = arith.constant 0 : index
    %270 = vector.load %arg14[%c0_111, %c0_112] : memref<16x128xf32, #tpu.memory_space<vmem>>, vector<16x128xf32>
    %c1_113 = arith.constant 1 : index
    %c0_114 = arith.constant 0 : index
    %c384_115 = arith.constant 384 : index
    %271 = vector.load %arg8[%c1_113, %c0_114, %c384_115] : memref<2x128x768xf32, #tpu.memory_space<vmem>>, vector<1x128x128xf32>
    %272 = vector.shape_cast %271 : vector<1x128x128xf32> to vector<128x128xf32>
    %cst_116 = arith.constant dense<0.000000e+00> : vector<16x128xf32>
    %273 = tpu.matmul %270, %272, %cst_116 {dimension_numbers = #tpu.dot_dimension_numbers<[1], [0], [0], [1], [0, 0, 1, 1], [], []>} : vector<16x128xf32>, vector<128x128xf32>, vector<16x128xf32> -> vector<16x128xf32>
    %c14 = arith.constant 14 : index
    %c0_117 = arith.constant 0 : index
    %274 = vector.load %arg9[%c14, %c0_117] : memref<21x128xf32, #tpu.memory_space<vmem>>, vector<1x128xf32>
    %275 = vector.broadcast %274 : vector<1x128xf32> to vector<16x128xf32>
    %276 = arith.addf %273, %275 : vector<16x128xf32>
    %277 = arith.addf %178, %276 : vector<16x128xf32>
    %c15 = arith.constant 15 : index
    %c0_118 = arith.constant 0 : index
    %278 = vector.load %arg9[%c15, %c0_118] : memref<21x128xf32, #tpu.memory_space<vmem>>, vector<1x128xf32>
    %c16 = arith.constant 16 : index
    %c0_119 = arith.constant 0 : index
    %279 = vector.load %arg9[%c16, %c0_119] : memref<21x128xf32, #tpu.memory_space<vmem>>, vector<1x128xf32>
    %cst_120 = arith.constant dense<0.000000e+00> : vector<16xf32>
    %280 = vector.multi_reduction <add>, %277, %cst_120 [1] : vector<16x128xf32> to vector<16xf32>
    %281 = vector.shape_cast %280 : vector<16xf32> to vector<16x1xf32>
    %cst_121 = arith.constant 1.280000e+02 : f32
    %282 = vector.broadcast %cst_121 : f32 to vector<16x1xf32>
    %283 = arith.divf %281, %282 : vector<16x1xf32>
    %284 = vector.broadcast %283 : vector<16x1xf32> to vector<16x128xf32>
    %285 = arith.subf %277, %284 : vector<16x128xf32>
    %286 = arith.mulf %285, %285 : vector<16x128xf32>
    %cst_122 = arith.constant dense<0.000000e+00> : vector<16xf32>
    %287 = vector.multi_reduction <add>, %286, %cst_122 [1] : vector<16x128xf32> to vector<16xf32>
    %288 = vector.shape_cast %287 : vector<16xf32> to vector<16x1xf32>
    %cst_123 = arith.constant 1.280000e+02 : f32
    %289 = vector.broadcast %cst_123 : f32 to vector<16x1xf32>
    %290 = arith.divf %288, %289 : vector<16x1xf32>
    %291 = vector.broadcast %283 : vector<16x1xf32> to vector<16x128xf32>
    %292 = arith.subf %277, %291 : vector<16x128xf32>
    %cst_124 = arith.constant 9.99999974E-6 : f32
    %293 = vector.broadcast %cst_124 : f32 to vector<16x1xf32>
    %294 = arith.addf %290, %293 : vector<16x1xf32>
    %295 = math.rsqrt %294 : vector<16x1xf32>
    %296 = vector.broadcast %295 : vector<16x1xf32> to vector<16x128xf32>
    %297 = arith.mulf %292, %296 : vector<16x128xf32>
    %298 = vector.broadcast %278 : vector<1x128xf32> to vector<16x128xf32>
    %299 = arith.mulf %297, %298 : vector<16x128xf32>
    %300 = vector.broadcast %279 : vector<1x128xf32> to vector<16x128xf32>
    %301 = arith.addf %299, %300 : vector<16x128xf32>
    %c1_125 = arith.constant 1 : index
    %c0_126 = arith.constant 0 : index
    %c512_127 = arith.constant 512 : index
    %302 = vector.load %arg8[%c1_125, %c0_126, %c512_127] : memref<2x128x768xf32, #tpu.memory_space<vmem>>, vector<1x128x128xf32>
    %303 = vector.shape_cast %302 : vector<1x128x128xf32> to vector<128x128xf32>
    %cst_128 = arith.constant dense<0.000000e+00> : vector<16x128xf32>
    %304 = tpu.matmul %301, %303, %cst_128 {dimension_numbers = #tpu.dot_dimension_numbers<[1], [0], [0], [1], [0, 0, 1, 1], [], []>} : vector<16x128xf32>, vector<128x128xf32>, vector<16x128xf32> -> vector<16x128xf32>
    %c17 = arith.constant 17 : index
    %c0_129 = arith.constant 0 : index
    %305 = vector.load %arg9[%c17, %c0_129] : memref<21x128xf32, #tpu.memory_space<vmem>>, vector<1x128xf32>
    %306 = vector.broadcast %305 : vector<1x128xf32> to vector<16x128xf32>
    %307 = arith.addf %304, %306 : vector<16x128xf32>
    %cst_130 = arith.constant 0.000000e+00 : f32
    %308 = vector.broadcast %cst_130 : f32 to vector<16x128xf32>
    %309 = arith.maximumf %307, %308 : vector<16x128xf32>
    %c1_131 = arith.constant 1 : index
    %c0_132 = arith.constant 0 : index
    %c640_133 = arith.constant 640 : index
    %310 = vector.load %arg8[%c1_131, %c0_132, %c640_133] : memref<2x128x768xf32, #tpu.memory_space<vmem>>, vector<1x128x128xf32>
    %311 = vector.shape_cast %310 : vector<1x128x128xf32> to vector<128x128xf32>
    %cst_134 = arith.constant dense<0.000000e+00> : vector<16x128xf32>
    %312 = tpu.matmul %309, %311, %cst_134 {dimension_numbers = #tpu.dot_dimension_numbers<[1], [0], [0], [1], [0, 0, 1, 1], [], []>} : vector<16x128xf32>, vector<128x128xf32>, vector<16x128xf32> -> vector<16x128xf32>
    %c18 = arith.constant 18 : index
    %c0_135 = arith.constant 0 : index
    %313 = vector.load %arg9[%c18, %c0_135] : memref<21x128xf32, #tpu.memory_space<vmem>>, vector<1x128xf32>
    %314 = vector.broadcast %313 : vector<1x128xf32> to vector<16x128xf32>
    %315 = arith.addf %312, %314 : vector<16x128xf32>
    %316 = arith.addf %301, %315 : vector<16x128xf32>
    %c19_136 = arith.constant 19 : index
    %c0_137 = arith.constant 0 : index
    %317 = vector.load %arg9[%c19_136, %c0_137] : memref<21x128xf32, #tpu.memory_space<vmem>>, vector<1x128xf32>
    %c20 = arith.constant 20 : index
    %c0_138 = arith.constant 0 : index
    %318 = vector.load %arg9[%c20, %c0_138] : memref<21x128xf32, #tpu.memory_space<vmem>>, vector<1x128xf32>
    %cst_139 = arith.constant dense<0.000000e+00> : vector<16xf32>
    %319 = vector.multi_reduction <add>, %316, %cst_139 [1] : vector<16x128xf32> to vector<16xf32>
    %320 = vector.shape_cast %319 : vector<16xf32> to vector<16x1xf32>
    %cst_140 = arith.constant 1.280000e+02 : f32
    %321 = vector.broadcast %cst_140 : f32 to vector<16x1xf32>
    %322 = arith.divf %320, %321 : vector<16x1xf32>
    %323 = vector.broadcast %322 : vector<16x1xf32> to vector<16x128xf32>
    %324 = arith.subf %316, %323 : vector<16x128xf32>
    %325 = arith.mulf %324, %324 : vector<16x128xf32>
    %cst_141 = arith.constant dense<0.000000e+00> : vector<16xf32>
    %326 = vector.multi_reduction <add>, %325, %cst_141 [1] : vector<16x128xf32> to vector<16xf32>
    %327 = vector.shape_cast %326 : vector<16xf32> to vector<16x1xf32>
    %cst_142 = arith.constant 1.280000e+02 : f32
    %328 = vector.broadcast %cst_142 : f32 to vector<16x1xf32>
    %329 = arith.divf %327, %328 : vector<16x1xf32>
    %330 = vector.broadcast %322 : vector<16x1xf32> to vector<16x128xf32>
    %331 = arith.subf %316, %330 : vector<16x128xf32>
    %cst_143 = arith.constant 9.99999974E-6 : f32
    %332 = vector.broadcast %cst_143 : f32 to vector<16x1xf32>
    %333 = arith.addf %329, %332 : vector<16x1xf32>
    %334 = math.rsqrt %333 : vector<16x1xf32>
    %335 = vector.broadcast %334 : vector<16x1xf32> to vector<16x128xf32>
    %336 = arith.mulf %331, %335 : vector<16x128xf32>
    %337 = vector.broadcast %317 : vector<1x128xf32> to vector<16x128xf32>
    %338 = arith.mulf %336, %337 : vector<16x128xf32>
    %339 = vector.broadcast %318 : vector<1x128xf32> to vector<16x128xf32>
    %340 = arith.addf %338, %339 : vector<16x128xf32>
    %c0_144 = arith.constant 0 : index
    %c0_145 = arith.constant 0 : index
    %341 = vector.load %arg2[%c0_144, %c0_145] : memref<2x16xf32, #tpu.memory_space<vmem>>, vector<2x16xf32>
    %cst_146 = arith.constant dense<0.000000e+00> : vector<2xf32>
    %342 = vector.multi_reduction <add>, %341, %cst_146 [1] : vector<2x16xf32> to vector<2xf32>
    %343 = vector.shape_cast %342 : vector<2xf32> to vector<2x1xf32>
    %cst_147 = arith.constant 1.000000e+00 : f32
    %344 = vector.broadcast %cst_147 : f32 to vector<2x1xf32>
    %345 = arith.maximumf %343, %344 : vector<2x1xf32>
    %cst_148 = arith.constant dense<0.000000e+00> : vector<2x128xf32>
    %346 = tpu.matmul %341, %340, %cst_148 {dimension_numbers = #tpu.dot_dimension_numbers<[1], [0], [0], [1], [0, 0, 1, 1], [], []>} : vector<2x16xf32>, vector<16x128xf32>, vector<2x128xf32> -> vector<2x128xf32>
    %347 = tpu.reciprocal %345 {approx = true} : vector<2x1xf32> -> vector<2x1xf32>
    %348 = vector.broadcast %347 : vector<2x1xf32> to vector<2x128xf32>
    %349 = arith.mulf %346, %348 : vector<2x128xf32>
    %c0_149 = arith.constant 0 : index
    %c0_150 = arith.constant 0 : index
    %350 = vector.load %arg10[%c0_149, %c0_150] : memref<131x64xf32, #tpu.memory_space<vmem>>, vector<128x64xf32>
    %cst_151 = arith.constant dense<0.000000e+00> : vector<2x64xf32>
    %351 = tpu.matmul %349, %350, %cst_151 {dimension_numbers = #tpu.dot_dimension_numbers<[1], [0], [0], [1], [0, 0, 1, 1], [], []>} : vector<2x128xf32>, vector<128x64xf32>, vector<2x64xf32> -> vector<2x64xf32>
    %c128 = arith.constant 128 : index
    %c0_152 = arith.constant 0 : index
    %352 = vector.load %arg10[%c128, %c0_152] : memref<131x64xf32, #tpu.memory_space<vmem>>, vector<1x64xf32>
    %353 = vector.broadcast %352 : vector<1x64xf32> to vector<2x64xf32>
    %354 = arith.addf %351, %353 : vector<2x64xf32>
    %c0_153 = arith.constant 0 : index
    %c0_154 = arith.constant 0 : index
    %355 = vector.load %arg12[%c0_153, %c0_154] : memref<2x64xf32, #tpu.memory_space<vmem>>, vector<2x64xf32>
    tpu.vector_store %arg12[%c0_153, %c0_154], %354 {strides = array<i32>} : memref<2x64xf32, #tpu.memory_space<vmem>>, vector<2x64xf32>,
    %c129 = arith.constant 129 : index
    %c0_155 = arith.constant 0 : index
    %356 = vector.load %arg10[%c129, %c0_155] : memref<131x64xf32, #tpu.memory_space<vmem>>, vector<1x64xf32>
    %c130 = arith.constant 130 : index
    %c0_156 = arith.constant 0 : index
    %357 = vector.load %arg10[%c130, %c0_156] : memref<131x64xf32, #tpu.memory_space<vmem>>, vector<1x64xf32>
    %cst_157 = arith.constant dense<0.000000e+00> : vector<2xf32>
    %358 = vector.multi_reduction <add>, %354, %cst_157 [1] : vector<2x64xf32> to vector<2xf32>
    %359 = vector.shape_cast %358 : vector<2xf32> to vector<2x1xf32>
    %cst_158 = arith.constant 6.400000e+01 : f32
    %360 = vector.broadcast %cst_158 : f32 to vector<2x1xf32>
    %361 = arith.divf %359, %360 : vector<2x1xf32>
    %362 = vector.broadcast %361 : vector<2x1xf32> to vector<2x64xf32>
    %363 = arith.subf %354, %362 : vector<2x64xf32>
    %364 = arith.mulf %363, %363 : vector<2x64xf32>
    %cst_159 = arith.constant dense<0.000000e+00> : vector<2xf32>
    %365 = vector.multi_reduction <add>, %364, %cst_159 [1] : vector<2x64xf32> to vector<2xf32>
    %366 = vector.shape_cast %365 : vector<2xf32> to vector<2x1xf32>
    %cst_160 = arith.constant 6.400000e+01 : f32
    %367 = vector.broadcast %cst_160 : f32 to vector<2x1xf32>
    %368 = arith.divf %366, %367 : vector<2x1xf32>
    %369 = vector.broadcast %361 : vector<2x1xf32> to vector<2x64xf32>
    %370 = arith.subf %354, %369 : vector<2x64xf32>
    %cst_161 = arith.constant 9.99999974E-6 : f32
    %371 = vector.broadcast %cst_161 : f32 to vector<2x1xf32>
    %372 = arith.addf %368, %371 : vector<2x1xf32>
    %373 = math.rsqrt %372 : vector<2x1xf32>
    %374 = vector.broadcast %373 : vector<2x1xf32> to vector<2x64xf32>
    %375 = arith.mulf %370, %374 : vector<2x64xf32>
    %376 = vector.broadcast %356 : vector<1x64xf32> to vector<2x64xf32>
    %377 = arith.mulf %375, %376 : vector<2x64xf32>
    %378 = vector.broadcast %357 : vector<1x64xf32> to vector<2x64xf32>
    %379 = arith.addf %377, %378 : vector<2x64xf32>
    %c0_162 = arith.constant 0 : index
    %c0_163 = arith.constant 0 : index
    %380 = vector.load %arg11[%c0_162, %c0_163] : memref<203x128xf32, #tpu.memory_space<vmem>>, vector<64x128xf32>
    %cst_164 = arith.constant dense<0.000000e+00> : vector<2x128xf32>
    %381 = tpu.matmul %379, %380, %cst_164 {dimension_numbers = #tpu.dot_dimension_numbers<[1], [0], [0], [1], [0, 0, 1, 1], [], []>} : vector<2x64xf32>, vector<64x128xf32>, vector<2x128xf32> -> vector<2x128xf32>
    %c73 = arith.constant 73 : index
    %c0_165 = arith.constant 0 : index
    %382 = vector.load %arg11[%c73, %c0_165] : memref<203x128xf32, #tpu.memory_space<vmem>>, vector<1x128xf32>
    %383 = vector.broadcast %382 : vector<1x128xf32> to vector<2x128xf32>
    %384 = arith.addf %381, %383 : vector<2x128xf32>
    %c0_166 = arith.constant 0 : index
    %c0_167 = arith.constant 0 : index
    %385 = vector.load %arg5[%c0_166, %c0_167] : memref<2x9xf32, #tpu.memory_space<vmem>>, vector<2x9xf32>
    %c64_168 = arith.constant 64 : index
    %c0_169 = arith.constant 0 : index
    %386 = vector.load %arg11[%c64_168, %c0_169] : memref<203x128xf32, #tpu.memory_space<vmem>>, vector<9x128xf32>
    %cst_170 = arith.constant dense<0.000000e+00> : vector<2x128xf32>
    %387 = tpu.matmul %385, %386, %cst_170 {dimension_numbers = #tpu.dot_dimension_numbers<[1], [0], [0], [1], [0, 0, 1, 1], [], []>} : vector<2x9xf32>, vector<9x128xf32>, vector<2x128xf32> -> vector<2x128xf32>
    %c0_171 = arith.constant 0 : index
    %c0_172 = arith.constant 0 : index
    %388 = vector.load %arg3[%c0_171, %c0_172] : memref<4x2xf32, #tpu.memory_space<vmem>>, vector<4x2xf32>
    %cst_173 = arith.constant dense<0.000000e+00> : vector<4x128xf32>
    %389 = tpu.matmul %388, %384, %cst_173 {dimension_numbers = #tpu.dot_dimension_numbers<[1], [0], [0], [1], [0, 0, 1, 1], [], []>} : vector<4x2xf32>, vector<2x128xf32>, vector<4x128xf32> -> vector<4x128xf32>
    %c0_174 = arith.constant 0 : index
    %c0_175 = arith.constant 0 : index
    %390 = vector.load %arg4[%c0_174, %c0_175] : memref<4x2xf32, #tpu.memory_space<vmem>>, vector<4x2xf32>
    %cst_176 = arith.constant dense<0.000000e+00> : vector<4x128xf32>
    %391 = tpu.matmul %390, %387, %cst_176 {dimension_numbers = #tpu.dot_dimension_numbers<[1], [0], [0], [1], [0, 0, 1, 1], [], []>} : vector<4x2xf32>, vector<2x128xf32>, vector<4x128xf32> -> vector<4x128xf32>
    %392 = arith.addf %389, %391 : vector<4x128xf32>
    %cst_177 = arith.constant 0.000000e+00 : f32
    %393 = vector.broadcast %cst_177 : f32 to vector<4x128xf32>
    %394 = arith.maximumf %392, %393 : vector<4x128xf32>
    %c74 = arith.constant 74 : index
    %c0_178 = arith.constant 0 : index
    %395 = vector.load %arg11[%c74, %c0_178] : memref<203x128xf32, #tpu.memory_space<vmem>>, vector<128x128xf32>
    %cst_179 = arith.constant dense<0.000000e+00> : vector<4x128xf32>
    %396 = tpu.matmul %394, %395, %cst_179 {dimension_numbers = #tpu.dot_dimension_numbers<[1], [0], [0], [1], [0, 0, 1, 1], [], []>} : vector<4x128xf32>, vector<128x128xf32>, vector<4x128xf32> -> vector<4x128xf32>
    %c202 = arith.constant 202 : index
    %c0_180 = arith.constant 0 : index
    %397 = vector.load %arg11[%c202, %c0_180] : memref<203x128xf32, #tpu.memory_space<vmem>>, vector<1x128xf32>
    %398 = vector.broadcast %397 : vector<1x128xf32> to vector<4x128xf32>
    %399 = arith.addf %396, %398 : vector<4x128xf32>
    %c0_181 = arith.constant 0 : index
    %c0_182 = arith.constant 0 : index
    %400 = vector.load %arg13[%c0_181, %c0_182] : memref<4x128xf32, #tpu.memory_space<vmem>>, vector<4x128xf32>
    tpu.vector_store %arg13[%c0_181, %c0_182], %399 {strides = array<i32>} : memref<4x128xf32, #tpu.memory_space<vmem>>, vector<4x128xf32>,
    return
  }
}

</mosaic_0001>

<llo_original>
// kernel: qtor_forward.1
$region0: #{qtor_forward.1}
  #allocation0 [shape = 'u32[]', space=smem, size = 0x4, offset = 0x4, fixed_abs, tag = 'smem constant byte address 0x4 - core index']
  #allocation1 [shape = 'u32[144,128]{1,0:T(1,128)}', space=vmem, size = 0x12000, scoped, tag = 'internal scratch']
  #allocation2 [shape = 'f32[16,128]{1,0:T(8,128)}', space=vmem, size = 0x2000, scoped, tag = 'scratch operand']
  %s0 = inlined_call_operand.vmem [shape: f32[16,3], index: 0, kind: input, shape index: {}]
  %s1 = inlined_call_operand.vmem [shape: f32[16,16], index: 1, kind: input, shape index: {}]
  %s2 = inlined_call_operand.vmem [shape: f32[2,16], index: 2, kind: input, shape index: {}]
  %s3 = inlined_call_operand.vmem [shape: f32[4,2], index: 3, kind: input, shape index: {}]
  %s4 = inlined_call_operand.vmem [shape: f32[4,2], index: 4, kind: input, shape index: {}]
  %s5 = inlined_call_operand.vmem [shape: f32[2,9], index: 5, kind: input, shape index: {}]
  %s6 = inlined_call_operand.vmem [shape: f32[3,16], index: 6, kind: input, shape index: {}]
  %s7 = inlined_call_operand.vmem [shape: f32[35,128], index: 7, kind: input, shape index: {}]
  %s8 = inlined_call_operand.hbm [shape: f32[2,128,768], index: 8, kind: input, shape index: {}]
  %s9 = inlined_call_operand.vmem [shape: f32[21,128], index: 9, kind: input, shape index: {}]
  %s10 = inlined_call_operand.vmem [shape: f32[131,64], index: 10, kind: input, shape index: {}]
  %s11 = inlined_call_operand.vmem [shape: f32[203,128], index: 11, kind: input, shape index: {}]
  %s12 = inlined_call_operand.hbm [shape: f32[2,64], index: 12, kind: output, shape index: {0}]
  %s13 = inlined_call_operand.vmem [shape: f32[4,128], index: 13, kind: output, shape index: {1}]
  %14 = xla_tuple %s12, %s13
  %s15 = sld [smem:[#allocation0]]
  $region70: #{qtor_forward.1} parent=0
    _
  %s17 = ssub.s32 1, %s15
  %s18 = scalar_select 0, %s17, %s15
  $region1: #{qtor_forward.1} parent=0
    #allocation3 [shape = 'u8[786432]{0}', space=vmem, size = 0xc0000, scoped, tag = 'input window, operand 8, single buffered']
    #allocation4 [shape = 's32[1]{0}', space=sflag, size = 0x4, scoped, tag = 'scoped memory for qtor_forward.1']
    #allocation5 [shape = 's32[1]{0}', space=sflag, size = 0x4, scoped, tag = 'scoped memory for qtor_forward.1']
    #allocation6 [shape = 'u8[1024]{0}', space=vmem, size = 0x400, scoped, tag = 'output window, operand 0, single buffered']
    %19 = vsyncpa [#allocation4], 0
    %20 = vsyncpa [#allocation5], 0
    // Predicated region
    $region2: #{qtor_forward.1} parent=1 // pred_check
      _
    $region3: #{qtor_forward.1} parent=1 // pred_check_branch
      %22 = sbr.rel (0) target = $region5
    $region4: #{qtor_forward.1} parent=1 // pred_region
      _
    $region5: #{qtor_forward.1} parent=1 // pred_fallthru
      _
    // Predicated region
    $region6: #{qtor_forward.1} parent=1 // pred_check
      _
    $region7: #{qtor_forward.1} parent=1 // pred_check_branch
      %24 = sbr.rel (0) target = $region9
    $region8: #{qtor_forward.1} parent=1 // pred_region
      _
    $region9: #{qtor_forward.1} parent=1 // pred_fallthru
      _
    // Predicated region
    $region10: #{qtor_forward.1} parent=1 // pred_check
      _
    $region11: #{qtor_forward.1} parent=1 // pred_check_branch
      %26 = sbr.rel (0) target = $region13
    $region12: #{qtor_forward.1} parent=1 // pred_region
      _
    $region13: #{qtor_forward.1} parent=1 // pred_fallthru
      _
    // Predicated region
    $region14: #{qtor_forward.1} parent=1 // pred_check
      _
    $region15: #{qtor_forward.1} parent=1 // pred_check_branch
      %28 = sbr.rel (0) target = $region17
    $region16: #{qtor_forward.1} parent=1 // pred_region
      _
    $region17: #{qtor_forward.1} parent=1 // pred_fallthru
      _
    // Predicated region
    $region18: #{qtor_forward.1} parent=1 // pred_check
      _
    $region19: #{qtor_forward.1} parent=1 // pred_check_branch
      %30 = sbr.rel (0) target = $region21
    $region20: #{qtor_forward.1} parent=1 // pred_region
      _
    $region21: #{qtor_forward.1} parent=1 // pred_fallthru
      _
    // Predicated region
    $region22: #{qtor_forward.1} parent=1 // pred_check
      _
    $region23: #{qtor_forward.1} parent=1 // pred_check_branch
      %32 = sbr.rel (0) target = $region25
    $region24: #{qtor_forward.1} parent=1 // pred_region
      _
    $region25: #{qtor_forward.1} parent=1 // pred_fallthru
      _
    // Predicated region
    $region26: #{qtor_forward.1} parent=1 // pred_check
      _
    $region27: #{qtor_forward.1} parent=1 // pred_check_branch
      %34 = sbr.rel (0) target = $region29
    $region28: #{qtor_forward.1} parent=1 // pred_region
      _
    $region29: #{qtor_forward.1} parent=1 // pred_fallthru
      _
    // Predicated region
    $region30: #{qtor_forward.1} parent=1 // pred_check
      _
    $region31: #{qtor_forward.1} parent=1 // pred_check_branch
      %36 = sbr.rel (0) target = $region33
    $region32: #{qtor_forward.1} parent=1 // pred_region
      _
    $region33: #{qtor_forward.1} parent=1 // pred_fallthru
      _
    // Predicated region
    $region34: #{qtor_forward.1} parent=1 // pred_check
      _
    $region35: #{qtor_forward.1} parent=1 // pred_check_branch
      %38 = sbr.rel (0) target = $region37
    $region36: #{qtor_forward.1} parent=1 // pred_region
      %s40 = ssub.s32 24576, 24576
      %41 = vsyncadd [#allocation4], %s40
      %s42 = sshll.u32 [#allocation3], 4
      %s43 = int_to_ptr.vmem [resolvable:$true] %s42
      %48 = dma.hbm_to_vmem [thread:$0]  %s8, 24576, %s43, [#allocation4], 768, 768, 48
    $region37: #{qtor_forward.1} parent=1 // pred_fallthru
      _
    // Predicated region
    $region38: #{qtor_forward.1} parent=1 // pred_check
      _
    $region39: #{qtor_forward.1} parent=1 // pred_check_branch
      %50 = sbr.rel (0) target = $region41
    $region40: #{qtor_forward.1} parent=1 // pred_region
      _
    $region41: #{qtor_forward.1} parent=1 // pred_fallthru
      _
    // Predicated region
    $region42: #{qtor_forward.1} parent=1 // pred_check
      _
    $region43: #{qtor_forward.1} parent=1 // pred_check_branch
      %52 = sbr.rel (0) target = $region45
    $region44: #{qtor_forward.1} parent=1 // pred_region
      _
    $region45: #{qtor_forward.1} parent=1 // pred_fallthru
      _
    // Predicated region
    $region46: #{qtor_forward.1} parent=1 // pred_check
      _
    $region47: #{qtor_forward.1} parent=1 // pred_check_branch
      %54 = sbr.rel (0) target = $region49
    $region48: #{qtor_forward.1} parent=1 // pred_region
      _
    $region49: #{qtor_forward.1} parent=1 // pred_fallthru
      _
    // Predicated region
    $region50: #{qtor_forward.1} parent=1 // pred_check
      _
    $region51: #{qtor_forward.1} parent=1 // pred_check_branch
      %56 = sbr.rel (0) target = $region53
    $region52: #{qtor_forward.1} parent=1 // pred_region
      %57 = dma.done [#allocation4], 24576
    $region53: #{qtor_forward.1} parent=1 // pred_fallthru
      _
    %v58 = vld [vmem:[%s0] sm:$0xff]
    %v59 = vld [vmem:[%s0 + $0x8] sm:$0xff]
    %v60 = vld [vmem:[%s6] sm:$0x7]
    %vm61 = vcmask 23552
    %v63 = vsel %vm61, %v58, 0
    %v66 = vsel %vm61, %v59, 0
    %vm68 = vcmask 1042432
    %v70 = vsel %vm68, %v60, 0
    %72 = vmatprep.subr.mxu0 0.0
    %73 = vmatpush1.msra.mxu0 %v70
    %74 = vmatprep.subr.mxu0 0.0
    %75 = vmatpush1.msra.mxu0 0.0
    %76 = vmatprep.subr.mxu0 0.0
    %77 = vmatpush1.msra.mxu0 0.0
    %78 = vmatprep.subr.mxu0 0.0
    %79 = vmatpush1.msra.mxu0 0.0
    %80 = vmatprep.subr.mxu0 0.0
    %81 = vmatpush1.msra.mxu0 0.0
    %82 = vmatprep.subr.mxu0 0.0
    %83 = vmatpush1.msra.mxu0 0.0
    %84 = vmatprep.subr.mxu0 0.0
    %85 = vmatpush1.msra.mxu0 0.0
    %86 = vmatprep.subr.mxu0 0.0
    %87 = vmatpush1.msra.mxu0 0.0
    %88 = vmatprep.subr.mxu0 0.0
    %89 = vmatpush1.msra.mxu0 0.0
    %90 = vmatprep.subr.mxu0 0.0
    %91 = vmatpush1.msra.mxu0 0.0
    %92 = vmatprep.subr.mxu0 0.0
    %93 = vmatpush1.msra.mxu0 0.0
    %94 = vmatprep.subr.mxu0 0.0
    %95 = vmatpush1.msra.mxu0 0.0
    %96 = vmatprep.subr.mxu0 0.0
    %97 = vmatpush1.msra.mxu0 0.0
    %98 = vmatprep.subr.mxu0 0.0
    %99 = vmatpush1.msra.mxu0 0.0
    %100 = vmatprep.subr.mxu0 0.0
    %101 = vmatpush1.msra.mxu0 0.0
    %102 = vmatprep.subr.mxu0 0.0
    %103 = vmatpush1.msra.mxu0 0.0
    %104 = vmatprep.subr.mxu0 0.0
    %105 = vmatpush1.msra.mxu0 0.0
    %106 = vmatprep.subr.mxu0 0.0
    %107 = vmatpush1.msra.mxu0 0.0
    %108 = vmatprep.subr.mxu0 0.0
    %109 = vmatpush1.msra.mxu0 0.0
    %110 = vmatprep.subr.mxu0 0.0
    %111 = vmatpush1.msra.mxu0 0.0
    %112 = vmatprep.subr.mxu0 0.0
    %113 = vmatpush1.msra.mxu0 0.0
    %114 = vmatprep.subr.mxu0 0.0
    %115 = vmatpush1.msra.mxu0 0.0
    %116 = vmatprep.subr.mxu0 0.0
    %117 = vmatpush1.msra.mxu0 0.0
    %118 = vmatprep.subr.mxu0 0.0
    %119 = vmatpush1.msra.mxu0 0.0
    %120 = vmatprep.subr.mxu0 0.0
    %121 = vmatpush1.msra.mxu0 0.0
    %122 = vmatprep.subr.mxu0 0.0
    %123 = vmatpush1.msra.mxu0 0.0
    %124 = vmatprep.subr.mxu0 0.0
    %125 = vmatpush1.msra.mxu0 0.0
    %126 = vmatprep.subr.mxu0 0.0
    %127 = vmatpush1.msra.mxu0 0.0
    %128 = vmatprep.subr.mxu0 0.0
    %129 = vmatpush1.msra.mxu0 0.0
    %130 = vmatprep.subr.mxu0 0.0
    %131 = vmatpush1.msra.mxu0 0.0
    %132 = vmatprep.subr.mxu0 0.0
    %133 = vmatpush1.msra.mxu0 0.0
    %134 = vmatprep.subr.mxu0 0.0
    %135 = vmatpush1.msra.mxu0 0.0
    %136 = vmatprep.mubr.f32.mxu0 0.0
    %137 = vmatmul.mubr.f32.gmra.mrb[0].mxu0 %v63
    %v138 = vpop.f32.mrb[0].mxu0
    %v139 = vadd.f32 0.0, %v138
    %v140 = vpop.f32.mrb[0].mxu0
    %141 = vmatprep.mubr.f32.mxu0 0.0
    %142 = vmatmul.mubr.f32.gmra.mrb[0].mxu0 %v66
    %v143 = vpop.f32.mrb[0].mxu0
    %v144 = vadd.f32 0.0, %v143
    %v145 = vpop.f32.mrb[0].mxu0
    %146 = vdwg.mxu0
    %v147 = vld [vmem:[%s7] sm:$0x7]
    %v148 = vand.u32 2147483647, %v139
    %vm149 = vcmp.le.f32.partialorder %v148, 0.7853982
    %vm150 = vcmp.lt.s32.totalorder %v139, 0
    %v151 = vand.u32 %v139, 2139095040
    %v152 = vshrl.u32 %v151, 23
    %v153 = vsub.s32 %v152, 127
    %v154 = vand.u32 2147483647, %v139
    %v155 = vand.u32 %v154, 8388607
    %v156 = vor.u32 %v155, 8388608
    %v157 = vsub.s32 0, %v156
    %v158 = vadd.s32 %v153, 1
    %vm159 = vcmp.gt.s32.totalorder %v158, 0
    %v160 = vsel %vm159, %v158, 0
    %v161 = vshrl.u32 %v160, 5
    %v162 = vand.u32 %v160, 31
    %v163 = vsub.s32 32, %v162
    %v164 = vshrl.u32 683565275, %v163
    %v165 = vshll.u32 683565275, %v162
    %v166 = vshrl.u32 2475754826, %v163
    %v167 = vor.u32 %v165, %v166
    %v168 = vshll.u32 2475754826, %v162
    %v169 = vshrl.u32 2131351028, %v163
    %v170 = vor.u32 %v168, %v169
    %v171 = vshll.u32 2131351028, %v162
    %v172 = vshrl.u32 2102212464, %v163
    %v173 = vor.u32 %v171, %v172
    %v174 = vshll.u32 2102212464, %v162
    %v175 = vshrl.u32 920167782, %v163
    %v176 = vor.u32 %v174, %v175
    %v177 = vshll.u32 920167782, %v162
    %v178 = vshrl.u32 1326507024, %v163
    %v179 = vor.u32 %v177, %v178
    %vm180 = vcmp.lt.s32.totalorder %v161, 1
    %vm181 = vcmp.lt.s32.totalorder %v161, 2
    %vm182 = vcmp.lt.s32.totalorder %v161, 3
    %vm183 = vcmp.lt.s32.totalorder %v161, 4
    %v184 = vsel %vm180, %v164, %v167
    %v185 = vsel %vm183, %v173, 2102212464
    %v186 = vsel %vm182, %v170, %v185
    %v187 = vsel %vm181, %v184, %v186
    %v188 = vsel %vm180, %v167, %v170
    %v189 = vsel %vm183, %v176, 920167782
    %v190 = vsel %vm182, %v173, %v189
    %v191 = vsel %vm181, %v188, %v190
    %v192 = vsel %vm180, %v170, %v173
    %v193 = vsel %vm183, %v179, 1326507024
    %v194 = vsel %vm182, %v176, %v193
    %v195 = vsel %vm181, %v192, %v194
    %v196 = vshll.u32 %v156, 8
    %v197 = vmul.u32.u64.compose %v196, %v195
    %v198 = vextract.low.u32 %v197
    %v199 = vextract.high.u32 %v197
    %v200 = vmul.u32.u64.compose %v196, %v191
    %v201 = vextract.low.u32 %v200
    %v202 = vextract.high.u32 %v200
    %v203 = vmul.u32 %v196, %v187
    %v204 = vadd.s32 %v199, %v201
    %vm205 = vc.u32 %v199, %v201
    %v206 = vadd.s32 %v202, 1
    %v207 = vsel %vm205, %v206, %v202
    %v208 = vadd.s32 %v203, %v207
    %v209 = vadd.s32 %v208, 536870912
    %v210 = vshrl.u32 %v209, 30
    %v211 = vshll.u32 %v210, 30
    %v212 = vsub.s32 %v208, %v211
    %vm213 = vcmp.lt.s32.totalorder %v212, 0
    %v214 = vsub.s32 0, %v212
    %v215 = vsel %vm213, %v214, %v212
    %v216 = vclz %v215
    %v217 = vsub.s32 %v216, 2
    %vm218 = vcmp.gt.s32.totalorder 0, %v217
    %v219 = vsel %vm218, 0, %v217
    %v220 = vsub.s32 32, %v219
    %v221 = vshll.u32 %v212, %v219
    %v222 = vshrl.u32 %v204, %v220
    %v223 = vor.u32 %v221, %v222
    %v224 = vsub.s32 4294967266, %v219
    %v225 = vadd.s32 %v224, 127
    %v226 = vshll.u32 %v225, 23
    %v227 = vor.u32 4788187, %v226
    %v228 = vand.u32 2147483647, %v227
    %v230 = vcvt.s32.f32 %v223
    %v231 = vmul.f32 %v230, %v228
    %v232 = vxor.u32 %v231, 2147483648
    %v233 = vsel %vm150, %v232, %v231
    %v234 = vsub.s32 4, %v210
    %v235 = vsel %vm150, %v234, %v210
    %v236 = vsel %vm149, %v139, %v233
    %v237 = vsel %vm149, 0, %v235
    %v238 = vcosq.f32.pop %v236
    %v239 = vsinq.f32.pop %v236
    %vm240 = vweird.f32 %v139
    %v241 = vadd.s32 %v237, 3
    %v242 = vand.u32 %v241, 3
    %vm243 = vcmp.lt.s32.totalorder %v242, 2
    %vm244 = vcmp.eq.s32.totalorder %v242, 0
    %v245 = vxor.u32 %v239, 2147483648
    %v246 = vsel %vm244, %v238, %v245
    %vm247 = vcmp.eq.s32.totalorder %v242, 2
    %v248 = vxor.u32 %v238, 2147483648
    %v249 = vsel %vm247, %v248, %v239
    %v250 = vsel %vm243, %v246, %v249
    %v251 = vsel %vm240, nan, %v250
    %v252 = vand.u32 2147483647, %v144
    %vm253 = vcmp.le.f32.partialorder %v252, 0.7853982
    %vm254 = vcmp.lt.s32.totalorder %v144, 0
    %v255 = vand.u32 %v144, 2139095040
    %v256 = vshrl.u32 %v255, 23
    %v257 = vsub.s32 %v256, 127
    %v258 = vand.u32 2147483647, %v144
    %v259 = vand.u32 %v258, 8388607
    %v260 = vor.u32 %v259, 8388608
    %v261 = vsub.s32 0, %v260
    %v262 = vadd.s32 %v257, 1
    %vm263 = vcmp.gt.s32.totalorder %v262, 0
    %v264 = vsel %vm263, %v262, 0
    %v265 = vshrl.u32 %v264, 5
    %v266 = vand.u32 %v264, 31
    %v267 = vsub.s32 32, %v266
    %v268 = vshrl.u32 683565275, %v267
    %v269 = vshll.u32 683565275, %v266
    %v270 = vshrl.u32 2475754826, %v267
    %v271 = vor.u32 %v269, %v270
    %v272 = vshll.u32 2475754826, %v266
    %v273 = vshrl.u32 2131351028, %v267
    %v274 = vor.u32 %v272, %v273
    %v275 = vshll.u32 2131351028, %v266
    %v276 = vshrl.u32 2102212464, %v267
    %v277 = vor.u32 %v275, %v276
    %v278 = vshll.u32 2102212464, %v266
    %v279 = vshrl.u32 920167782, %v267
    %v280 = vor.u32 %v278, %v279
    %v281 = vshll.u32 920167782, %v266
    %v282 = vshrl.u32 1326507024, %v267
    %v283 = vor.u32 %v281, %v282
    %vm284 = vcmp.lt.s32.totalorder %v265, 1
    %vm285 = vcmp.lt.s32.totalorder %v265, 2
    %vm286 = vcmp.lt.s32.totalorder %v265, 3
    %vm287 = vcmp.lt.s32.totalorder %v265, 4
    %v288 = vsel %vm284, %v268, %v271
    %v289 = vsel %vm287, %v277, 2102212464
    %v290 = vsel %vm286, %v274, %v289
    %v291 = vsel %vm285, %v288, %v290
    %v292 = vsel %vm284, %v271, %v274
    %v293 = vsel %vm287, %v280, 920167782
    %v294 = vsel %vm286, %v277, %v293
    %v295 = vsel %vm285, %v292, %v294
    %v296 = vsel %vm284, %v274, %v277
    %v297 = vsel %vm287, %v283, 1326507024
    %v298 = vsel %vm286, %v280, %v297
    %v299 = vsel %vm285, %v296, %v298
    %v300 = vshll.u32 %v260, 8
    %v301 = vmul.u32.u64.compose %v300, %v299
    %v302 = vextract.low.u32 %v301
    %v303 = vextract.high.u32 %v301
    %v304 = vmul.u32.u64.compose %v300, %v295
    %v305 = vextract.low.u32 %v304
    %v306 = vextract.high.u32 %v304
    %v307 = vmul.u32 %v300, %v291
    %v308 = vadd.s32 %v303, %v305
    %vm309 = vc.u32 %v303, %v305
    %v310 = vadd.s32 %v306, 1
    %v311 = vsel %vm309, %v310, %v306
    %v312 = vadd.s32 %v307, %v311
    %v313 = vadd.s32 %v312, 536870912
    %v314 = vshrl.u32 %v313, 30
    %v315 = vshll.u32 %v314, 30
    %v316 = vsub.s32 %v312, %v315
    %vm317 = vcmp.lt.s32.totalorder %v316, 0
    %v318 = vsub.s32 0, %v316
    %v319 = vsel %vm317, %v318, %v316
    %v320 = vclz %v319
    %v321 = vsub.s32 %v320, 2
    %vm322 = vcmp.gt.s32.totalorder 0, %v321
    %v323 = vsel %vm322, 0, %v321
    %v324 = vsub.s32 32, %v323
    %v325 = vshll.u32 %v316, %v323
    %v326 = vshrl.u32 %v308, %v324
    %v327 = vor.u32 %v325, %v326
    %v328 = vsub.s32 4294967266, %v323
    %v329 = vadd.s32 %v328, 127
    %v330 = vshll.u32 %v329, 23
    %v331 = vor.u32 4788187, %v330
    %v332 = vand.u32 2147483647, %v331
    %v334 = vcvt.s32.f32 %v327
    %v335 = vmul.f32 %v334, %v332
    %v336 = vxor.u32 %v335, 2147483648
    %v337 = vsel %vm254, %v336, %v335
    %v338 = vsub.s32 4, %v314
    %v339 = vsel %vm254, %v338, %v314
    %v340 = vsel %vm253, %v144, %v337
    %v341 = vsel %vm253, 0, %v339
    %v342 = vcosq.f32.pop %v340
    %v343 = vsinq.f32.pop %v340
    %vm344 = vweird.f32 %v144
    %v345 = vadd.s32 %v341, 3
    %v346 = vand.u32 %v345, 3
    %vm347 = vcmp.lt.s32.totalorder %v346, 2
    %vm348 = vcmp.eq.s32.totalorder %v346, 0
    %v349 = vxor.u32 %v343, 2147483648
    %v350 = vsel %vm348, %v342, %v349
    %vm351 = vcmp.eq.s32.totalorder %v346, 2
    %v352 = vxor.u32 %v342, 2147483648
    %v353 = vsel %vm351, %v352, %v343
    %v354 = vsel %vm347, %v350, %v353
    %v355 = vsel %vm344, nan, %v354
    %v356 = vld [vmem:[%s7 + $0x3] sm:$0xff]
    %v357 = vld [vmem:[%s7 + $0xb] sm:$0xff]
    %vm358 = vcmask 130048
    %v360 = vsel %vm358, %v251, 0
    %v363 = vsel %vm358, %v355, 0
    %365 = vmatprep.subr.mxu0 0.0
    %366 = vmatpush1.msra.mxu0 %v356
    %367 = vmatprep.subr.mxu0 0.0
    %368 = vmatpush1.msra.mxu0 %v357
    %369 = vmatprep.subr.mxu0 0.0
    %370 = vmatpush1.msra.mxu0 0.0
    %371 = vmatprep.subr.mxu0 0.0
    %372 = vmatpush1.msra.mxu0 0.0
    %373 = vmatprep.subr.mxu0 0.0
    %374 = vmatpush1.msra.mxu0 0.0
    %375 = vmatprep.subr.mxu0 0.0
    %376 = vmatpush1.msra.mxu0 0.0
    %377 = vmatprep.subr.mxu0 0.0
    %378 = vmatpush1.msra.mxu0 0.0
    %379 = vmatprep.subr.mxu0 0.0
    %380 = vmatpush1.msra.mxu0 0.0
    %381 = vmatprep.subr.mxu0 0.0
    %382 = vmatpush1.msra.mxu0 0.0
    %383 = vmatprep.subr.mxu0 0.0
    %384 = vmatpush1.msra.mxu0 0.0
    %385 = vmatprep.subr.mxu0 0.0
    %386 = vmatpush1.msra.mxu0 0.0
    %387 = vmatprep.subr.mxu0 0.0
    %388 = vmatpush1.msra.mxu0 0.0
    %389 = vmatprep.subr.mxu0 0.0
    %390 = vmatpush1.msra.mxu0 0.0
    %391 = vmatprep.subr.mxu0 0.0
    %392 = vmatpush1.msra.mxu0 0.0
    %393 = vmatprep.subr.mxu0 0.0
    %394 = vmatpush1.msra.mxu0 0.0
    %395 = vmatprep.subr.mxu0 0.0
    %396 = vmatpush1.msra.mxu0 0.0
    %397 = vmatprep.subr.mxu0 0.0
    %398 = vmatpush1.msra.mxu0 0.0
    %399 = vmatprep.subr.mxu0 0.0
    %400 = vmatpush1.msra.mxu0 0.0
    %401 = vmatprep.subr.mxu0 0.0
    %402 = vmatpush1.msra.mxu0 0.0
    %403 = vmatprep.subr.mxu0 0.0
    %404 = vmatpush1.msra.mxu0 0.0
    %405 = vmatprep.subr.mxu0 0.0
    %406 = vmatpush1.msra.mxu0 0.0
    %407 = vmatprep.subr.mxu0 0.0
    %408 = vmatpush1.msra.mxu0 0.0
    %409 = vmatprep.subr.mxu0 0.0
    %410 = vmatpush1.msra.mxu0 0.0
    %411 = vmatprep.subr.mxu0 0.0
    %412 = vmatpush1.msra.mxu0 0.0
    %413 = vmatprep.subr.mxu0 0.0
    %414 = vmatpush1.msra.mxu0 0.0
    %415 = vmatprep.subr.mxu0 0.0
    %416 = vmatpush1.msra.mxu0 0.0
    %417 = vmatprep.subr.mxu0 0.0
    %418 = vmatpush1.msra.mxu0 0.0
    %419 = vmatprep.subr.mxu0 0.0
    %420 = vmatpush1.msra.mxu0 0.0
    %421 = vmatprep.subr.mxu0 0.0
    %422 = vmatpush1.msra.mxu0 0.0
    %423 = vmatprep.subr.mxu0 0.0
    %424 = vmatpush1.msra.mxu0 0.0
    %425 = vmatprep.subr.mxu0 0.0
    %426 = vmatpush1.msra.mxu0 0.0
    %427 = vmatprep.subr.mxu0 0.0
    %428 = vmatpush1.msra.mxu0 0.0
    %429 = vmatprep.mubr.f32.mxu0 0.0
    %430 = vmatmul.mubr.f32.gmra.mrb[0].mxu0 %v360
    %v431 = vpop.f32.mrb[0].mxu0
    %v432 = vadd.f32 0.0, %v431
    %v433 = vpop.f32.mrb[0].mxu0
    %434 = vmatprep.mubr.f32.mxu0 0.0
    %435 = vmatmul.mubr.f32.gmra.mrb[0].mxu0 %v363
    %v436 = vpop.f32.mrb[0].mxu0
    %v437 = vadd.f32 0.0, %v436
    %v438 = vpop.f32.mrb[0].mxu0
    %439 = vdwg.mxu0
    %v441 = vsel %vm68, %v147, 0
    %443 = vmatprep.subr.mxu0 0.0
    %444 = vmatpush1.msra.mxu0 %v441
    %445 = vmatprep.subr.mxu0 0.0
    %446 = vmatpush1.msra.mxu0 0.0
    %447 = vmatprep.subr.mxu0 0.0
    %448 = vmatpush1.msra.mxu0 0.0
    %449 = vmatprep.subr.mxu0 0.0
    %450 = vmatpush1.msra.mxu0 0.0
    %451 = vmatprep.subr.mxu0 0.0
    %452 = vmatpush1.msra.mxu0 0.0
    %453 = vmatprep.subr.mxu0 0.0
    %454 = vmatpush1.msra.mxu0 0.0
    %455 = vmatprep.subr.mxu0 0.0
    %456 = vmatpush1.msra.mxu0 0.0
    %457 = vmatprep.subr.mxu0 0.0
    %458 = vmatpush1.msra.mxu0 0.0
    %459 = vmatprep.subr.mxu0 0.0
    %460 = vmatpush1.msra.mxu0 0.0
    %461 = vmatprep.subr.mxu0 0.0
    %462 = vmatpush1.msra.mxu0 0.0
    %463 = vmatprep.subr.mxu0 0.0
    %464 = vmatpush1.msra.mxu0 0.0
    %465 = vmatprep.subr.mxu0 0.0
    %466 = vmatpush1.msra.mxu0 0.0
    %467 = vmatprep.subr.mxu0 0.0
    %468 = vmatpush1.msra.mxu0 0.0
    %469 = vmatprep.subr.mxu0 0.0
    %470 = vmatpush1.msra.mxu0 0.0
    %471 = vmatprep.subr.mxu0 0.0
    %472 = vmatpush1.msra.mxu0 0.0
    %473 = vmatprep.subr.mxu0 0.0
    %474 = vmatpush1.msra.mxu0 0.0
    %475 = vmatprep.subr.mxu0 0.0
    %476 = vmatpush1.msra.mxu0 0.0
    %477 = vmatprep.subr.mxu0 0.0
    %478 = vmatpush1.msra.mxu0 0.0
    %479 = vmatprep.subr.mxu0 0.0
    %480 = vmatpush1.msra.mxu0 0.0
    %481 = vmatprep.subr.mxu0 0.0
    %482 = vmatpush1.msra.mxu0 0.0
    %483 = vmatprep.subr.mxu0 0.0
    %484 = vmatpush1.msra.mxu0 0.0
    %485 = vmatprep.subr.mxu0 0.0
    %486 = vmatpush1.msra.mxu0 0.0
    %487 = vmatprep.subr.mxu0 0.0
    %488 = vmatpush1.msra.mxu0 0.0
    %489 = vmatprep.subr.mxu0 0.0
    %490 = vmatpush1.msra.mxu0 0.0
    %491 = vmatprep.subr.mxu0 0.0
    %492 = vmatpush1.msra.mxu0 0.0
    %493 = vmatprep.subr.mxu0 0.0
    %494 = vmatpush1.msra.mxu0 0.0
    %495 = vmatprep.subr.mxu0 0.0
    %496 = vmatpush1.msra.mxu0 0.0
    %497 = vmatprep.subr.mxu0 0.0
    %498 = vmatpush1.msra.mxu0 0.0
    %499 = vmatprep.subr.mxu0 0.0
    %500 = vmatpush1.msra.mxu0 0.0
    %501 = vmatprep.subr.mxu0 0.0
    %502 = vmatpush1.msra.mxu0 0.0
    %503 = vmatprep.subr.mxu0 0.0
    %504 = vmatpush1.msra.mxu0 0.0
    %505 = vmatprep.subr.mxu0 0.0
    %506 = vmatpush1.msra.mxu0 0.0
    %507 = vmatprep.mubr.f32.mxu0 0.0
    %508 = vmatmul.mubr.f32.gmra.mrb[0].mxu0 %v63
    %v509 = vpop.f32.mrb[0].mxu0
    %v510 = vadd.f32 %v432, %v509
    %v511 = vpop.f32.mrb[0].mxu0
    %512 = vmatprep.mubr.f32.mxu0 0.0
    %513 = vmatmul.mubr.f32.gmra.mrb[0].mxu0 %v66
    %v514 = vpop.f32.mrb[0].mxu0
    %v515 = vadd.f32 %v437, %v514
    %v516 = vpop.f32.mrb[0].mxu0
    %517 = vdwg.mxu0
    %v518 = vand.u32 2147483647, %v139
    %vm519 = vcmp.le.f32.partialorder %v518, 0.7853982
    %vm520 = vcmp.lt.s32.totalorder %v139, 0
    %v521 = vand.u32 %v139, 2139095040
    %v522 = vshrl.u32 %v521, 23
    %v523 = vsub.s32 %v522, 127
    %v524 = vand.u32 2147483647, %v139
    %v525 = vand.u32 %v524, 8388607
    %v526 = vor.u32 %v525, 8388608
    %v527 = vsub.s32 0, %v526
    %v528 = vadd.s32 %v523, 1
    %vm529 = vcmp.gt.s32.totalorder %v528, 0
    %v530 = vsel %vm529, %v528, 0
    %v531 = vshrl.u32 %v530, 5
    %v532 = vand.u32 %v530, 31
    %v533 = vsub.s32 32, %v532
    %v534 = vshrl.u32 683565275, %v533
    %v535 = vshll.u32 683565275, %v532
    %v536 = vshrl.u32 2475754826, %v533
    %v537 = vor.u32 %v535, %v536
    %v538 = vshll.u32 2475754826, %v532
    %v539 = vshrl.u32 2131351028, %v533
    %v540 = vor.u32 %v538, %v539
    %v541 = vshll.u32 2131351028, %v532
    %v542 = vshrl.u32 2102212464, %v533
    %v543 = vor.u32 %v541, %v542
    %v544 = vshll.u32 2102212464, %v532
    %v545 = vshrl.u32 920167782, %v533
    %v546 = vor.u32 %v544, %v545
    %v547 = vshll.u32 920167782, %v532
    %v548 = vshrl.u32 1326507024, %v533
    %v549 = vor.u32 %v547, %v548
    %vm550 = vcmp.lt.s32.totalorder %v531, 1
    %vm551 = vcmp.lt.s32.totalorder %v531, 2
    %vm552 = vcmp.lt.s32.totalorder %v531, 3
    %vm553 = vcmp.lt.s32.totalorder %v531, 4
    %v554 = vsel %vm550, %v534, %v537
    %v555 = vsel %vm553, %v543, 2102212464
    %v556 = vsel %vm552, %v540, %v555
    %v557 = vsel %vm551, %v554, %v556
    %v558 = vsel %vm550, %v537, %v540
    %v559 = vsel %vm553, %v546, 920167782
    %v560 = vsel %vm552, %v543, %v559
    %v561 = vsel %vm551, %v558, %v560
    %v562 = vsel %vm550, %v540, %v543
    %v563 = vsel %vm553, %v549, 1326507024
    %v564 = vsel %vm552, %v546, %v563
    %v565 = vsel %vm551, %v562, %v564
    %v566 = vshll.u32 %v526, 8
    %v567 = vmul.u32.u64.compose %v566, %v565
    %v568 = vextract.low.u32 %v567
    %v569 = vextract.high.u32 %v567
    %v570 = vmul.u32.u64.compose %v566, %v561
    %v571 = vextract.low.u32 %v570
    %v572 = vextract.high.u32 %v570
    %v573 = vmul.u32 %v566, %v557
    %v574 = vadd.s32 %v569, %v571
    %vm575 = vc.u32 %v569, %v571
    %v576 = vadd.s32 %v572, 1
    %v577 = vsel %vm575, %v576, %v572
    %v578 = vadd.s32 %v573, %v577
    %v579 = vadd.s32 %v578, 536870912
    %v580 = vshrl.u32 %v579, 30
    %v581 = vshll.u32 %v580, 30
    %v582 = vsub.s32 %v578, %v581
    %vm583 = vcmp.lt.s32.totalorder %v582, 0
    %v584 = vsub.s32 0, %v582
    %v585 = vsel %vm583, %v584, %v582
    %v586 = vclz %v585
    %v587 = vsub.s32 %v586, 2
    %vm588 = vcmp.gt.s32.totalorder 0, %v587
    %v589 = vsel %vm588, 0, %v587
    %v590 = vsub.s32 32, %v589
    %v591 = vshll.u32 %v582, %v589
    %v592 = vshrl.u32 %v574, %v590
    %v593 = vor.u32 %v591, %v592
    %v594 = vsub.s32 4294967266, %v589
    %v595 = vadd.s32 %v594, 127
    %v596 = vshll.u32 %v595, 23
    %v597 = vor.u32 4788187, %v596
    %v598 = vand.u32 2147483647, %v597
    %v600 = vcvt.s32.f32 %v593
    %v601 = vmul.f32 %v600, %v598
    %v602 = vxor.u32 %v601, 2147483648
    %v603 = vsel %vm520, %v602, %v601
    %v604 = vsub.s32 4, %v580
    %v605 = vsel %vm520, %v604, %v580
    %v606 = vsel %vm519, %v139, %v603
    %v607 = vsel %vm519, 0, %v605
    %v608 = vcosq.f32.pop %v606
    %v609 = vsinq.f32.pop %v606
    %vm610 = vweird.f32 %v139
    %v611 = vand.u32 %v607, 3
    %vm612 = vcmp.lt.s32.totalorder %v611, 2
    %vm613 = vcmp.eq.s32.totalorder %v611, 0
    %v614 = vxor.u32 %v609, 2147483648
    %v615 = vsel %vm613, %v608, %v614
    %vm616 = vcmp.eq.s32.totalorder %v611, 2
    %v617 = vxor.u32 %v608, 2147483648
    %v618 = vsel %vm616, %v617, %v609
    %v619 = vsel %vm612, %v615, %v618
    %v620 = vsel %vm610, nan, %v619
    %v621 = vand.u32 2147483647, %v144
    %vm622 = vcmp.le.f32.partialorder %v621, 0.7853982
    %vm623 = vcmp.lt.s32.totalorder %v144, 0
    %v624 = vand.u32 %v144, 2139095040
    %v625 = vshrl.u32 %v624, 23
    %v626 = vsub.s32 %v625, 127
    %v627 = vand.u32 2147483647, %v144
    %v628 = vand.u32 %v627, 8388607
    %v629 = vor.u32 %v628, 8388608
    %v630 = vsub.s32 0, %v629
    %v631 = vadd.s32 %v626, 1
    %vm632 = vcmp.gt.s32.totalorder %v631, 0
    %v633 = vsel %vm632, %v631, 0
    %v634 = vshrl.u32 %v633, 5
    %v635 = vand.u32 %v633, 31
    %v636 = vsub.s32 32, %v635
    %v637 = vshrl.u32 683565275, %v636
    %v638 = vshll.u32 683565275, %v635
    %v639 = vshrl.u32 2475754826, %v636
    %v640 = vor.u32 %v638, %v639
    %v641 = vshll.u32 2475754826, %v635
    %v642 = vshrl.u32 2131351028, %v636
    %v643 = vor.u32 %v641, %v642
    %v644 = vshll.u32 2131351028, %v635
    %v645 = vshrl.u32 2102212464, %v636
    %v646 = vor.u32 %v644, %v645
    %v647 = vshll.u32 2102212464, %v635
    %v648 = vshrl.u32 920167782, %v636
    %v649 = vor.u32 %v647, %v648
    %v650 = vshll.u32 920167782, %v635
    %v651 = vshrl.u32 1326507024, %v636
    %v652 = vor.u32 %v650, %v651
    %vm653 = vcmp.lt.s32.totalorder %v634, 1
    %vm654 = vcmp.lt.s32.totalorder %v634, 2
    %vm655 = vcmp.lt.s32.totalorder %v634, 3
    %vm656 = vcmp.lt.s32.totalorder %v634, 4
    %v657 = vsel %vm653, %v637, %v640
    %v658 = vsel %vm656, %v646, 2102212464
    %v659 = vsel %vm655, %v643, %v658
    %v660 = vsel %vm654, %v657, %v659
    %v661 = vsel %vm653, %v640, %v643
    %v662 = vsel %vm656, %v649, 920167782
    %v663 = vsel %vm655, %v646, %v662
    %v664 = vsel %vm654, %v661, %v663
    %v665 = vsel %vm653, %v643, %v646
    %v666 = vsel %vm656, %v652, 1326507024
    %v667 = vsel %vm655, %v649, %v666
    %v668 = vsel %vm654, %v665, %v667
    %v669 = vshll.u32 %v629, 8
    %v670 = vmul.u32.u64.compose %v669, %v668
    %v671 = vextract.low.u32 %v670
    %v672 = vextract.high.u32 %v670
    %v673 = vmul.u32.u64.compose %v669, %v664
    %v674 = vextract.low.u32 %v673
    %v675 = vextract.high.u32 %v673
    %v676 = vmul.u32 %v669, %v660
    %v677 = vadd.s32 %v672, %v674
    %vm678 = vc.u32 %v672, %v674
    %v679 = vadd.s32 %v675, 1
    %v680 = vsel %vm678, %v679, %v675
    %v681 = vadd.s32 %v676, %v680
    %v682 = vadd.s32 %v681, 536870912
    %v683 = vshrl.u32 %v682, 30
    %v684 = vshll.u32 %v683, 30
    %v685 = vsub.s32 %v681, %v684
    %vm686 = vcmp.lt.s32.totalorder %v685, 0
    %v687 = vsub.s32 0, %v685
    %v688 = vsel %vm686, %v687, %v685
    %v689 = vclz %v688
    %v690 = vsub.s32 %v689, 2
    %vm691 = vcmp.gt.s32.totalorder 0, %v690
    %v692 = vsel %vm691, 0, %v690
    %v693 = vsub.s32 32, %v692
    %v694 = vshll.u32 %v685, %v692
    %v695 = vshrl.u32 %v677, %v693
    %v696 = vor.u32 %v694, %v695
    %v697 = vsub.s32 4294967266, %v692
    %v698 = vadd.s32 %v697, 127
    %v699 = vshll.u32 %v698, 23
    %v700 = vor.u32 4788187, %v699
    %v701 = vand.u32 2147483647, %v700
    %v703 = vcvt.s32.f32 %v696
    %v704 = vmul.f32 %v703, %v701
    %v705 = vxor.u32 %v704, 2147483648
    %v706 = vsel %vm623, %v705, %v704
    %v707 = vsub.s32 4, %v683
    %v708 = vsel %vm623, %v707, %v683
    %v709 = vsel %vm622, %v144, %v706
    %v710 = vsel %vm622, 0, %v708
    %v711 = vcosq.f32.pop %v709
    %v712 = vsinq.f32.pop %v709
    %vm713 = vweird.f32 %v144
    %v714 = vand.u32 %v710, 3
    %vm715 = vcmp.lt.s32.totalorder %v714, 2
    %vm716 = vcmp.eq.s32.totalorder %v714, 0
    %v717 = vxor.u32 %v712, 2147483648
    %v718 = vsel %vm716, %v711, %v717
    %vm719 = vcmp.eq.s32.totalorder %v714, 2
    %v720 = vxor.u32 %v711, 2147483648
    %v721 = vsel %vm719, %v720, %v712
    %v722 = vsel %vm715, %v718, %v721
    %v723 = vsel %vm713, nan, %v722
    %v724 = vld [vmem:[%s7 + $0x13] sm:$0xff]
    %v725 = vld [vmem:[%s7 + $0x1b] sm:$0xff]
    %v727 = vsel %vm358, %v620, 0
    %v730 = vsel %vm358, %v723, 0
    %732 = vmatprep.subr.mxu0 0.0
    %733 = vmatpush1.msra.mxu0 %v724
    %734 = vmatprep.subr.mxu0 0.0
    %735 = vmatpush1.msra.mxu0 %v725
    %736 = vmatprep.subr.mxu0 0.0
    %737 = vmatpush1.msra.mxu0 0.0
    %738 = vmatprep.subr.mxu0 0.0
    %739 = vmatpush1.msra.mxu0 0.0
    %740 = vmatprep.subr.mxu0 0.0
    %741 = vmatpush1.msra.mxu0 0.0
    %742 = vmatprep.subr.mxu0 0.0
    %743 = vmatpush1.msra.mxu0 0.0
    %744 = vmatprep.subr.mxu0 0.0
    %745 = vmatpush1.msra.mxu0 0.0
    %746 = vmatprep.subr.mxu0 0.0
    %747 = vmatpush1.msra.mxu0 0.0
    %748 = vmatprep.subr.mxu0 0.0
    %749 = vmatpush1.msra.mxu0 0.0
    %750 = vmatprep.subr.mxu0 0.0
    %751 = vmatpush1.msra.mxu0 0.0
    %752 = vmatprep.subr.mxu0 0.0
    %753 = vmatpush1.msra.mxu0 0.0
    %754 = vmatprep.subr.mxu0 0.0
    %755 = vmatpush1.msra.mxu0 0.0
    %756 = vmatprep.subr.mxu0 0.0
    %757 = vmatpush1.msra.mxu0 0.0
    %758 = vmatprep.subr.mxu0 0.0
    %759 = vmatpush1.msra.mxu0 0.0
    %760 = vmatprep.subr.mxu0 0.0
    %761 = vmatpush1.msra.mxu0 0.0
    %762 = vmatprep.subr.mxu0 0.0
    %763 = vmatpush1.msra.mxu0 0.0
    %764 = vmatprep.subr.mxu0 0.0
    %765 = vmatpush1.msra.mxu0 0.0
    %766 = vmatprep.subr.mxu0 0.0
    %767 = vmatpush1.msra.mxu0 0.0
    %768 = vmatprep.subr.mxu0 0.0
    %769 = vmatpush1.msra.mxu0 0.0
    %770 = vmatprep.subr.mxu0 0.0
    %771 = vmatpush1.msra.mxu0 0.0
    %772 = vmatprep.subr.mxu0 0.0
    %773 = vmatpush1.msra.mxu0 0.0
    %774 = vmatprep.subr.mxu0 0.0
    %775 = vmatpush1.msra.mxu0 0.0
    %776 = vmatprep.subr.mxu0 0.0
    %777 = vmatpush1.msra.mxu0 0.0
    %778 = vmatprep.subr.mxu0 0.0
    %779 = vmatpush1.msra.mxu0 0.0
    %780 = vmatprep.subr.mxu0 0.0
    %781 = vmatpush1.msra.mxu0 0.0
    %782 = vmatprep.subr.mxu0 0.0
    %783 = vmatpush1.msra.mxu0 0.0
    %784 = vmatprep.subr.mxu0 0.0
    %785 = vmatpush1.msra.mxu0 0.0
    %786 = vmatprep.subr.mxu0 0.0
    %787 = vmatpush1.msra.mxu0 0.0
    %788 = vmatprep.subr.mxu0 0.0
    %789 = vmatpush1.msra.mxu0 0.0
    %790 = vmatprep.subr.mxu0 0.0
    %791 = vmatpush1.msra.mxu0 0.0
    %792 = vmatprep.subr.mxu0 0.0
    %793 = vmatpush1.msra.mxu0 0.0
    %794 = vmatprep.subr.mxu0 0.0
    %795 = vmatpush1.msra.mxu0 0.0
    %796 = vmatprep.mubr.f32.mxu0 0.0
    %797 = vmatmul.mubr.f32.gmra.mrb[0].mxu0 %v727
    %v798 = vpop.f32.mrb[0].mxu0
    %v799 = vadd.f32 0.0, %v798
    %v800 = vpop.f32.mrb[0].mxu0
    %801 = vmatprep.mubr.f32.mxu0 0.0
    %802 = vmatmul.mubr.f32.gmra.mrb[0].mxu0 %v730
    %v803 = vpop.f32.mrb[0].mxu0
    %v804 = vadd.f32 0.0, %v803
    %v805 = vpop.f32.mrb[0].mxu0
    %806 = vdwg.mxu0
    %v807 = vadd.f32 %v510, %v799
    %v808 = vadd.f32 %v515, %v804
    %v809 = vld [vmem:[%s9] sm:$0x1]
    %v810 = vlaneseq
    %v811 = vshrl.u32 %v810, 7
    %v812 = vsub.s32 0, %v811
    %v813 = vrot.slane %v809, %v812
    %v814 = vadd.f32 %v807, %v813
    %v815 = vadd.f32 %v808, %v813
    %v816 = vld [vmem:[%s1] sm:$0xff]
    %v817 = vld [vmem:[%s1 + $0x8] sm:$0xff]
    %v818 = vld [vmem:[#allocation3] sm:$0xff]
    %v819 = vld [vmem:[#allocation3 + $0x8] sm:$0xff]
    %v820 = vld [vmem:[#allocation3 + $0x10] sm:$0xff]
    %v821 = vld [vmem:[#allocation3 + $0x30] sm:$0xff]
    %v822 = vld [vmem:[#allocation3 + $0x38] sm:$0xff]
    %v823 = vld [vmem:[#allocation3 + $0x40] sm:$0xff]
    %v824 = vld [vmem:[#allocation3 + $0x60] sm:$0xff]
    %v825 = vld [vmem:[#allocation3 + $0x68] sm:$0xff]
    %v826 = vld [vmem:[#allocation3 + $0x70] sm:$0xff]
    %v827 = vld [vmem:[#allocation3 + $0x90] sm:$0xff]
    %v828 = vld [vmem:[#allocation3 + $0x98] sm:$0xff]
    %v829 = vld [vmem:[#allocation3 + $0xa0] sm:$0xff]
    %v830 = vld [vmem:[#allocation3 + $0xc0] sm:$0xff]
    %v831 = vld [vmem:[#allocation3 + $0xc8] sm:$0xff]
    %v832 = vld [vmem:[#allocation3 + $0xd0] sm:$0xff]
    %v833 = vld [vmem:[#allocation3 + $0xf0] sm:$0xff]
    %v834 = vld [vmem:[#allocation3 + $0xf8] sm:$0xff]
    %v835 = vld [vmem:[#allocation3 + $0x100] sm:$0xff]
    %v836 = vld [vmem:[#allocation3 + $0x120] sm:$0xff]
    %v837 = vld [vmem:[#allocation3 + $0x128] sm:$0xff]
    %v838 = vld [vmem:[#allocation3 + $0x130] sm:$0xff]
    %v839 = vld [vmem:[#allocation3 + $0x150] sm:$0xff]
    %v840 = vld [vmem:[#allocation3 + $0x158] sm:$0xff]
    %v841 = vld [vmem:[#allocation3 + $0x160] sm:$0xff]
    %v842 = vld [vmem:[#allocation3 + $0x180] sm:$0xff]
    %v843 = vld [vmem:[#allocation3 + $0x188] sm:$0xff]
    %v844 = vld [vmem:[#allocation3 + $0x190] sm:$0xff]
    %v845 = vld [vmem:[#allocation3 + $0x1b0] sm:$0xff]
    %v846 = vld [vmem:[#allocation3 + $0x1b8] sm:$0xff]
    %v847 = vld [vmem:[#allocation3 + $0x1c0] sm:$0xff]
    %v848 = vld [vmem:[#allocation3 + $0x1e0] sm:$0xff]
    %v849 = vld [vmem:[#allocation3 + $0x1e8] sm:$0xff]
    %v850 = vld [vmem:[#allocation3 + $0x1f0] sm:$0xff]
    %v851 = vld [vmem:[#allocation3 + $0x210] sm:$0xff]
    %v852 = vld [vmem:[#allocation3 + $0x218] sm:$0xff]
    %v853 = vld [vmem:[#allocation3 + $0x220] sm:$0xff]
    %v854 = vld [vmem:[#allocation3 + $0x240] sm:$0xff]
    %v855 = vld [vmem:[#allocation3 + $0x248] sm:$0xff]
    %v856 = vld [vmem:[#allocation3 + $0x250] sm:$0xff]
    %v857 = vld [vmem:[#allocation3 + $0x270] sm:$0xff]
    %v858 = vld [vmem:[#allocation3 + $0x278] sm:$0xff]
    %v859 = vld [vmem:[#allocation3 + $0x280] sm:$0xff]
    %v860 = vld [vmem:[#allocation3 + $0x2a0] sm:$0xff]
    %v861 = vld [vmem:[#allocation3 + $0x2a8] sm:$0xff]
    %v862 = vld [vmem:[#allocation3 + $0x2b0] sm:$0xff]
    %v863 = vld [vmem:[#allocation3 + $0x2d0] sm:$0xff]
    %v864 = vld [vmem:[#allocation3 + $0x2d8] sm:$0xff]
    %v865 = vld [vmem:[#allocation3 + $0x2e0] sm:$0xff]
    %866 = vmatprep.subr.mxu0 %v819
    %867 = vmatpush1.msra.mxu0 %v818
    %868 = vmatprep.subr.mxu0 %v822
    %869 = vmatpush1.msra.mxu0 %v821
    %870 = vmatprep.subr.mxu0 %v825
    %871 = vmatpush1.msra.mxu0 %v824
    %872 = vmatprep.subr.mxu0 %v828
    %873 = vmatpush1.msra.mxu0 %v827
    %874 = vmatprep.subr.mxu0 %v831
    %875 = vmatpush1.msra.mxu0 %v830
    %876 = vmatprep.subr.mxu0 %v834
    %877 = vmatpush1.msra.mxu0 %v833
    %878 = vmatprep.subr.mxu0 %v837
    %879 = vmatpush1.msra.mxu0 %v836
    %880 = vmatprep.subr.mxu0 %v840
    %881 = vmatpush1.msra.mxu0 %v839
    %882 = vmatprep.subr.mxu0 %v843
    %883 = vmatpush1.msra.mxu0 %v842
    %884 = vmatprep.subr.mxu0 %v846
    %885 = vmatpush1.msra.mxu0 %v845
    %886 = vmatprep.subr.mxu0 %v849
    %887 = vmatpush1.msra.mxu0 %v848
    %888 = vmatprep.subr.mxu0 %v852
    %889 = vmatpush1.msra.mxu0 %v851
    %890 = vmatprep.subr.mxu0 %v855
    %891 = vmatpush1.msra.mxu0 %v854
    %892 = vmatprep.subr.mxu0 %v858
    %893 = vmatpush1.msra.mxu0 %v857
    %894 = vmatprep.subr.mxu0 %v861
    %895 = vmatpush1.msra.mxu0 %v860
    %896 = vmatprep.subr.mxu0 %v864
    %897 = vmatpush1.msra.mxu0 %v863
    %898 = vmatprep.subr.mxu0 0.0
    %899 = vmatpush1.msra.mxu0 0.0
    %900 = vmatprep.subr.mxu0 0.0
    %901 = vmatpush1.msra.mxu0 0.0
    %902 = vmatprep.subr.mxu0 0.0
    %903 = vmatpush1.msra.mxu0 0.0
    %904 = vmatprep.subr.mxu0 0.0
    %905 = vmatpush1.msra.mxu0 0.0
    %906 = vmatprep.subr.mxu0 0.0
    %907 = vmatpush1.msra.mxu0 0.0
    %908 = vmatprep.subr.mxu0 0.0
    %909 = vmatpush1.msra.mxu0 0.0
    %910 = vmatprep.subr.mxu0 0.0
    %911 = vmatpush1.msra.mxu0 0.0
    %912 = vmatprep.subr.mxu0 0.0
    %913 = vmatpush1.msra.mxu0 0.0
    %914 = vmatprep.subr.mxu0 0.0
    %915 = vmatpush1.msra.mxu0 0.0
    %916 = vmatprep.subr.mxu0 0.0
    %917 = vmatpush1.msra.mxu0 0.0
    %918 = vmatprep.subr.mxu0 0.0
    %919 = vmatpush1.msra.mxu0 0.0
    %920 = vmatprep.subr.mxu0 0.0
    %921 = vmatpush1.msra.mxu0 0.0
    %922 = vmatprep.subr.mxu0 0.0
    %923 = vmatpush1.msra.mxu0 0.0
    %924 = vmatprep.subr.mxu0 0.0
    %925 = vmatpush1.msra.mxu0 0.0
    %926 = vmatprep.subr.mxu0 0.0
    %927 = vmatpush1.msra.mxu0 0.0
    %928 = vmatprep.subr.mxu0 0.0
    %929 = vmatpush1.msra.mxu0 0.0
    %930 = vmatprep.mubr.f32.mxu0 0.0
    %931 = vmatmul.mubr.f32.gmra.mrb[0].mxu0 %v814
    %v932 = vpop.f32.mrb[0].mxu0
    %v933 = vadd.f32 0.0, %v932
    %v934 = vpop.f32.mrb[0].mxu0
    %v935 = vadd.f32 0.0, %v934
    %936 = vmatprep.mubr.f32.mxu0 0.0
    %937 = vmatmul.mubr.f32.gmra.mrb[0].mxu0 %v815
    %v938 = vpop.f32.mrb[0].mxu0
    %v939 = vadd.f32 0.0, %v938
    %v940 = vpop.f32.mrb[0].mxu0
    %v941 = vadd.f32 0.0, %v940
    %942 = vdwg.mxu0
    %943 = vmatprep.subr.mxu0 0.0
    %944 = vmatpush1.msra.mxu0 %v820
    %945 = vmatprep.subr.mxu0 0.0
    %946 = vmatpush1.msra.mxu0 %v823
    %947 = vmatprep.subr.mxu0 0.0
    %948 = vmatpush1.msra.mxu0 %v826
    %949 = vmatprep.subr.mxu0 0.0
    %950 = vmatpush1.msra.mxu0 %v829
    %951 = vmatprep.subr.mxu0 0.0
    %952 = vmatpush1.msra.mxu0 %v832
    %953 = vmatprep.subr.mxu0 0.0
    %954 = vmatpush1.msra.mxu0 %v835
    %955 = vmatprep.subr.mxu0 0.0
    %956 = vmatpush1.msra.mxu0 %v838
    %957 = vmatprep.subr.mxu0 0.0
    %958 = vmatpush1.msra.mxu0 %v841
    %959 = vmatprep.subr.mxu0 0.0
    %960 = vmatpush1.msra.mxu0 %v844
    %961 = vmatprep.subr.mxu0 0.0
    %962 = vmatpush1.msra.mxu0 %v847
    %963 = vmatprep.subr.mxu0 0.0
    %964 = vmatpush1.msra.mxu0 %v850
    %965 = vmatprep.subr.mxu0 0.0
    %966 = vmatpush1.msra.mxu0 %v853
    %967 = vmatprep.subr.mxu0 0.0
    %968 = vmatpush1.msra.mxu0 %v856
    %969 = vmatprep.subr.mxu0 0.0
    %970 = vmatpush1.msra.mxu0 %v859
    %971 = vmatprep.subr.mxu0 0.0
    %972 = vmatpush1.msra.mxu0 %v862
    %973 = vmatprep.subr.mxu0 0.0
    %974 = vmatpush1.msra.mxu0 %v865
    %975 = vmatprep.subr.mxu0 0.0
    %976 = vmatpush1.msra.mxu0 0.0
    %977 = vmatprep.subr.mxu0 0.0
    %978 = vmatpush1.msra.mxu0 0.0
    %979 = vmatprep.subr.mxu0 0.0
    %980 = vmatpush1.msra.mxu0 0.0
    %981 = vmatprep.subr.mxu0 0.0
    %982 = vmatpush1.msra.mxu0 0.0
    %983 = vmatprep.subr.mxu0 0.0
    %984 = vmatpush1.msra.mxu0 0.0
    %985 = vmatprep.subr.mxu0 0.0
    %986 = vmatpush1.msra.mxu0 0.0
    %987 = vmatprep.subr.mxu0 0.0
    %988 = vmatpush1.msra.mxu0 0.0
    %989 = vmatprep.subr.mxu0 0.0
    %990 = vmatpush1.msra.mxu0 0.0
    %991 = vmatprep.subr.mxu0 0.0
    %992 = vmatpush1.msra.mxu0 0.0
    %993 = vmatprep.subr.mxu0 0.0
    %994 = vmatpush1.msra.mxu0 0.0
    %995 = vmatprep.subr.mxu0 0.0
    %996 = vmatpush1.msra.mxu0 0.0
    %997 = vmatprep.subr.mxu0 0.0
    %998 = vmatpush1.msra.mxu0 0.0
    %999 = vmatprep.subr.mxu0 0.0
    %1000 = vmatpush1.msra.mxu0 0.0
    %1001 = vmatprep.subr.mxu0 0.0
    %1002 = vmatpush1.msra.mxu0 0.0
    %1003 = vmatprep.subr.mxu0 0.0
    %1004 = vmatpush1.msra.mxu0 0.0
    %1005 = vmatprep.subr.mxu0 0.0
    %1006 = vmatpush1.msra.mxu0 0.0
    %1007 = vmatprep.mubr.f32.mxu0 0.0
    %1008 = vmatmul.mubr.f32.gmra.mrb[0].mxu0 %v814
    %v1009 = vpop.f32.mrb[0].mxu0
    %v1010 = vadd.f32 0.0, %v1009
    %v1011 = vpop.f32.mrb[0].mxu0
    %1012 = vmatprep.mubr.f32.mxu0 0.0
    %1013 = vmatmul.mubr.f32.gmra.mrb[0].mxu0 %v815
    %v1014 = vpop.f32.mrb[0].mxu0
    %v1015 = vadd.f32 0.0, %v1014
    %v1016 = vpop.f32.mrb[0].mxu0
    %1017 = vdwg.mxu0
    %v1018 = vld [vmem:[%s9 + $0x1] sm:$0x1]
    %v1019 = vlaneseq
    %v1020 = vshrl.u32 %v1019, 7
    %v1021 = vsub.s32 0, %v1020
    %v1022 = vrot.slane %v1018, %v1021
    %v1023 = vadd.f32 %v933, %v1022
    %v1024 = vadd.f32 %v939, %v1022
    %v1025 = vld [vmem:[%s9 + $0x2] sm:$0x1]
    %v1026 = vlaneseq
    %v1027 = vshrl.u32 %v1026, 7
    %v1028 = vsub.s32 0, %v1027
    %v1029 = vrot.slane %v1025, %v1028
    %v1030 = vadd.f32 %v935, %v1029
    %v1031 = vadd.f32 %v941, %v1029
    %v1032 = vld [vmem:[%s9 + $0x3] sm:$0x1]
    %v1033 = vlaneseq
    %v1034 = vshrl.u32 %v1033, 7
    %v1035 = vsub.s32 0, %v1034
    %v1036 = vrot.slane %v1032, %v1035
    %v1037 = vadd.f32 %v1010, %v1036
    %v1038 = vadd.f32 %v1015, %v1036
    %vm1039 = vcmask 261120
    %v1041 = vsel %vm1039, %v1023, 0
    %v1044 = vsel %vm1039, %v1024, 0
    %v1047 = vsel %vm1039, %v1030, 0
    %v1050 = vsel %vm1039, %v1031, 0
    %1052 = vmatprep.subr.mxu0 0.0
    %1053 = vmatpush1.xpose.msra.mxu0 %v1047
    %1054 = vmatprep.subr.mxu0 0.0
    %1055 = vmatpush1.xpose.msra.mxu0 %v1050
    %1056 = vmatprep.subr.mxu0 0.0
    %1057 = vmatpush1.xpose.msra.mxu0 0.0
    %1058 = vmatprep.subr.mxu0 0.0
    %1059 = vmatpush1.xpose.msra.mxu0 0.0
    %1060 = vmatprep.subr.mxu0 0.0
    %1061 = vmatpush1.xpose.msra.mxu0 0.0
    %1062 = vmatprep.subr.mxu0 0.0
    %1063 = vmatpush1.xpose.msra.mxu0 0.0
    %1064 = vmatprep.subr.mxu0 0.0
    %1065 = vmatpush1.xpose.msra.mxu0 0.0
    %1066 = vmatprep.subr.mxu0 0.0
    %1067 = vmatpush1.xpose.msra.mxu0 0.0
    %1068 = vmatprep.subr.mxu0 0.0
    %1069 = vmatpush1.xpose.msra.mxu0 0.0
    %1070 = vmatprep.subr.mxu0 0.0
    %1071 = vmatpush1.xpose.msra.mxu0 0.0
    %1072 = vmatprep.subr.mxu0 0.0
    %1073 = vmatpush1.xpose.msra.mxu0 0.0
    %1074 = vmatprep.subr.mxu0 0.0
    %1075 = vmatpush1.xpose.msra.mxu0 0.0
    %1076 = vmatprep.subr.mxu0 0.0
    %1077 = vmatpush1.xpose.msra.mxu0 0.0
    %1078 = vmatprep.subr.mxu0 0.0
    %1079 = vmatpush1.xpose.msra.mxu0 0.0
    %1080 = vmatprep.subr.mxu0 0.0
    %1081 = vmatpush1.xpose.msra.mxu0 0.0
    %1082 = vmatprep.subr.mxu0 0.0
    %1083 = vmatpush1.xpose.msra.mxu0 0.0
    %1084 = vmatprep.subr.mxu0 0.0
    %1085 = vmatpush1.xpose.msra.mxu0 0.0
    %1086 = vmatprep.subr.mxu0 0.0
    %1087 = vmatpush1.xpose.msra.mxu0 0.0
    %1088 = vmatprep.subr.mxu0 0.0
    %1089 = vmatpush1.xpose.msra.mxu0 0.0
    %1090 = vmatprep.subr.mxu0 0.0
    %1091 = vmatpush1.xpose.msra.mxu0 0.0
    %1092 = vmatprep.subr.mxu0 0.0
    %1093 = vmatpush1.xpose.msra.mxu0 0.0
    %1094 = vmatprep.subr.mxu0 0.0
    %1095 = vmatpush1.xpose.msra.mxu0 0.0
    %1096 = vmatprep.subr.mxu0 0.0
    %1097 = vmatpush1.xpose.msra.mxu0 0.0
    %1098 = vmatprep.subr.mxu0 0.0
    %1099 = vmatpush1.xpose.msra.mxu0 0.0
    %1100 = vmatprep.subr.mxu0 0.0
    %1101 = vmatpush1.xpose.msra.mxu0 0.0
    %1102 = vmatprep.subr.mxu0 0.0
    %1103 = vmatpush1.xpose.msra.mxu0 0.0
    %1104 = vmatprep.subr.mxu0 0.0
    %1105 = vmatpush1.xpose.msra.mxu0 0.0
    %1106 = vmatprep.subr.mxu0 0.0
    %1107 = vmatpush1.xpose.msra.mxu0 0.0
    %1108 = vmatprep.subr.mxu0 0.0
    %1109 = vmatpush1.xpose.msra.mxu0 0.0
    %1110 = vmatprep.subr.mxu0 0.0
    %1111 = vmatpush1.xpose.msra.mxu0 0.0
    %1112 = vmatprep.subr.mxu0 0.0
    %1113 = vmatpush1.xpose.msra.mxu0 0.0
    %1114 = vmatprep.subr.mxu0 0.0
    %1115 = vmatpush1.xpose.msra.mxu0 0.0
    %1116 = vmatprep.mubr.f32.mxu0 0.0
    %1117 = vmatmul.mubr.f32.gmra.mrb[0].mxu0 %v1041
    %v1118 = vpop.f32.mrb[0].mxu0
    %v1119 = vadd.f32 0.0, %v1118
    %v1120 = vpop.f32.mrb[0].mxu0
    %1121 = vmatprep.mubr.f32.mxu0 0.0
    %1122 = vmatmul.mubr.f32.gmra.mrb[0].mxu0 %v1044
    %v1123 = vpop.f32.mrb[0].mxu0
    %v1124 = vadd.f32 0.0, %v1123
    %v1125 = vpop.f32.mrb[0].mxu0
    %1126 = vdwg.mxu0
    %v1127 = vmul.f32 %v1119, 0.17677669
    %v1128 = vmul.f32 %v1124, 0.17677669
    %v1129 = vadd.f32 %v1127, %v816
    %v1130 = vadd.f32 %v1128, %v817
    %v1131 = vsel %vm358, %v1129, -inf
    %1132 = vmax.xlane.f32.xlu0 %v1131
    %v1133 = vpop.xlane.xlu0 %1132
    %v1134 = vsel %vm358, %v1130, -inf
    %1135 = vmax.xlane.f32.xlu0 %v1134
    %v1136 = vpop.xlane.xlu0 %1135
    %v1137 = vsub.f32 %v1129, %v1133
    %v1138 = vsub.f32 %v1130, %v1136
    %v1139 = vmul.f32 %v1137, 1.442695
    %v1140 = vpow.pop %v1139
    %v1141 = vmul.f32 %v1138, 1.442695
    %v1142 = vpow.pop %v1141
    %v1143 = vsel %vm358, %v1140, 0.0
    %1144 = vadd.xlane.f32.xlu0 %v1143
    %v1145 = vpop.xlane.xlu0 %1144
    %v1146 = vsel %vm358, %v1142, 0.0
    %1147 = vadd.xlane.f32.xlu0 %v1146
    %v1148 = vpop.xlane.xlu0 %1147
    %v1149 = vrcp.pop %v1145
    %v1150 = vrcp.pop %v1148
    %v1151 = vmul.f32 %v1140, %v1149
    %v1152 = vmul.f32 %v1142, %v1150
    %v1154 = vsel %vm358, %v1151, 0
    %v1157 = vsel %vm358, %v1152, 0
    %1159 = vmatprep.subr.mxu0 0.0
    %1160 = vmatpush1.msra.mxu0 %v1037
    %1161 = vmatprep.subr.mxu0 0.0
    %1162 = vmatpush1.msra.mxu0 %v1038
    %1163 = vmatprep.subr.mxu0 0.0
    %1164 = vmatpush1.msra.mxu0 0.0
    %1165 = vmatprep.subr.mxu0 0.0
    %1166 = vmatpush1.msra.mxu0 0.0
    %1167 = vmatprep.subr.mxu0 0.0
    %1168 = vmatpush1.msra.mxu0 0.0
    %1169 = vmatprep.subr.mxu0 0.0
    %1170 = vmatpush1.msra.mxu0 0.0
    %1171 = vmatprep.subr.mxu0 0.0
    %1172 = vmatpush1.msra.mxu0 0.0
    %1173 = vmatprep.subr.mxu0 0.0
    %1174 = vmatpush1.msra.mxu0 0.0
    %1175 = vmatprep.subr.mxu0 0.0
    %1176 = vmatpush1.msra.mxu0 0.0
    %1177 = vmatprep.subr.mxu0 0.0
    %1178 = vmatpush1.msra.mxu0 0.0
    %1179 = vmatprep.subr.mxu0 0.0
    %1180 = vmatpush1.msra.mxu0 0.0
    %1181 = vmatprep.subr.mxu0 0.0
    %1182 = vmatpush1.msra.mxu0 0.0
    %1183 = vmatprep.subr.mxu0 0.0
    %1184 = vmatpush1.msra.mxu0 0.0
    %1185 = vmatprep.subr.mxu0 0.0
    %1186 = vmatpush1.msra.mxu0 0.0
    %1187 = vmatprep.subr.mxu0 0.0
    %1188 = vmatpush1.msra.mxu0 0.0
    %1189 = vmatprep.subr.mxu0 0.0
    %1190 = vmatpush1.msra.mxu0 0.0
    %1191 = vmatprep.subr.mxu0 0.0
    %1192 = vmatpush1.msra.mxu0 0.0
    %1193 = vmatprep.subr.mxu0 0.0
    %1194 = vmatpush1.msra.mxu0 0.0
    %1195 = vmatprep.subr.mxu0 0.0
    %1196 = vmatpush1.msra.mxu0 0.0
    %1197 = vmatprep.subr.mxu0 0.0
    %1198 = vmatpush1.msra.mxu0 0.0
    %1199 = vmatprep.subr.mxu0 0.0
    %1200 = vmatpush1.msra.mxu0 0.0
    %1201 = vmatprep.subr.mxu0 0.0
    %1202 = vmatpush1.msra.mxu0 0.0
    %1203 = vmatprep.subr.mxu0 0.0
    %1204 = vmatpush1.msra.mxu0 0.0
    %1205 = vmatprep.subr.mxu0 0.0
    %1206 = vmatpush1.msra.mxu0 0.0
    %1207 = vmatprep.subr.mxu0 0.0
    %1208 = vmatpush1.msra.mxu0 0.0
    %1209 = vmatprep.subr.mxu0 0.0
    %1210 = vmatpush1.msra.mxu0 0.0
    %1211 = vmatprep.subr.mxu0 0.0
    %1212 = vmatpush1.msra.mxu0 0.0
    %1213 = vmatprep.subr.mxu0 0.0
    %1214 = vmatpush1.msra.mxu0 0.0
    %1215 = vmatprep.subr.mxu0 0.0
    %1216 = vmatpush1.msra.mxu0 0.0
    %1217 = vmatprep.subr.mxu0 0.0
    %1218 = vmatpush1.msra.mxu0 0.0
    %1219 = vmatprep.subr.mxu0 0.0
    %1220 = vmatpush1.msra.mxu0 0.0
    %1221 = vmatprep.subr.mxu0 0.0
    %1222 = vmatpush1.msra.mxu0 0.0
    %1223 = vmatprep.mubr.f32.mxu0 0.0
    %1224 = vmatmul.mubr.f32.gmra.mrb[0].mxu0 %v1154
    %v1225 = vpop.f32.mrb[0].mxu0
    %v1226 = vadd.f32 0.0, %v1225
    %v1227 = vpop.f32.mrb[0].mxu0
    %1228 = vmatprep.mubr.f32.mxu0 0.0
    %1229 = vmatmul.mubr.f32.gmra.mrb[0].mxu0 %v1157
    %v1230 = vpop.f32.mrb[0].mxu0
    %v1231 = vadd.f32 0.0, %v1230
    %v1232 = vpop.f32.mrb[0].mxu0
    %1233 = vdwg.mxu0
    %1234 = vst.msk [vmem:[#allocation2] sm:$0xff] %vm1039, %v1226
    %1235 = vst.msk [vmem:[#allocation2 + $0x8] sm:$0xff] %vm1039, %v1231
    %1236 = vrot.lane.b32.xlu0 %v1023, 96
    %v1237 = vpop.permute.xlu0 %1236
    %1238 = vrot.lane.b32.xlu0 %v1024, 96
    %v1239 = vpop.permute.xlu0 %1238
    %1240 = vrot.lane.b32.xlu0 %v1030, 96
    %v1241 = vpop.permute.xlu0 %1240
    %1242 = vrot.lane.b32.xlu0 %v1031, 96
    %v1243 = vpop.permute.xlu0 %1242
    %v1244 = vsel %vm1039, %v1237, 0
    %v1246 = vsel %vm1039, %v1239, 0
    %v1248 = vsel %vm1039, %v1241, 0
    %v1250 = vsel %vm1039, %v1243, 0
    %1252 = vmatprep.subr.mxu0 0.0
    %1253 = vmatpush1.xpose.msra.mxu0 %v1248
    %1254 = vmatprep.subr.mxu0 0.0
    %1255 = vmatpush1.xpose.msra.mxu0 %v1250
    %1256 = vmatprep.subr.mxu0 0.0
    %1257 = vmatpush1.xpose.msra.mxu0 0.0
    %1258 = vmatprep.subr.mxu0 0.0
    %1259 = vmatpush1.xpose.msra.mxu0 0.0
    %1260 = vmatprep.subr.mxu0 0.0
    %1261 = vmatpush1.xpose.msra.mxu0 0.0
    %1262 = vmatprep.subr.mxu0 0.0
    %1263 = vmatpush1.xpose.msra.mxu0 0.0
    %1264 = vmatprep.subr.mxu0 0.0
    %1265 = vmatpush1.xpose.msra.mxu0 0.0
    %1266 = vmatprep.subr.mxu0 0.0
    %1267 = vmatpush1.xpose.msra.mxu0 0.0
    %1268 = vmatprep.subr.mxu0 0.0
    %1269 = vmatpush1.xpose.msra.mxu0 0.0
    %1270 = vmatprep.subr.mxu0 0.0
    %1271 = vmatpush1.xpose.msra.mxu0 0.0
    %1272 = vmatprep.subr.mxu0 0.0
    %1273 = vmatpush1.xpose.msra.mxu0 0.0
    %1274 = vmatprep.subr.mxu0 0.0
    %1275 = vmatpush1.xpose.msra.mxu0 0.0
    %1276 = vmatprep.subr.mxu0 0.0
    %1277 = vmatpush1.xpose.msra.mxu0 0.0
    %1278 = vmatprep.subr.mxu0 0.0
    %1279 = vmatpush1.xpose.msra.mxu0 0.0
    %1280 = vmatprep.subr.mxu0 0.0
    %1281 = vmatpush1.xpose.msra.mxu0 0.0
    %1282 = vmatprep.subr.mxu0 0.0
    %1283 = vmatpush1.xpose.msra.mxu0 0.0
    %1284 = vmatprep.subr.mxu0 0.0
    %1285 = vmatpush1.xpose.msra.mxu0 0.0
    %1286 = vmatprep.subr.mxu0 0.0
    %1287 = vmatpush1.xpose.msra.mxu0 0.0
    %1288 = vmatprep.subr.mxu0 0.0
    %1289 = vmatpush1.xpose.msra.mxu0 0.0
    %1290 = vmatprep.subr.mxu0 0.0
    %1291 = vmatpush1.xpose.msra.mxu0 0.0
    %1292 = vmatprep.subr.mxu0 0.0
    %1293 = vmatpush1.xpose.msra.mxu0 0.0
    %1294 = vmatprep.subr.mxu0 0.0
    %1295 = vmatpush1.xpose.msra.mxu0 0.0
    %1296 = vmatprep.subr.mxu0 0.0
    %1297 = vmatpush1.xpose.msra.mxu0 0.0
    %1298 = vmatprep.subr.mxu0 0.0
    %1299 = vmatpush1.xpose.msra.mxu0 0.0
    %1300 = vmatprep.subr.mxu0 0.0
    %1301 = vmatpush1.xpose.msra.mxu0 0.0
    %1302 = vmatprep.subr.mxu0 0.0
    %1303 = vmatpush1.xpose.msra.mxu0 0.0
    %1304 = vmatprep.subr.mxu0 0.0
    %1305 = vmatpush1.xpose.msra.mxu0 0.0
    %1306 = vmatprep.subr.mxu0 0.0
    %1307 = vmatpush1.xpose.msra.mxu0 0.0
    %1308 = vmatprep.subr.mxu0 0.0
    %1309 = vmatpush1.xpose.msra.mxu0 0.0
    %1310 = vmatprep.subr.mxu0 0.0
    %1311 = vmatpush1.xpose.msra.mxu0 0.0
    %1312 = vmatprep.subr.mxu0 0.0
    %1313 = vmatpush1.xpose.msra.mxu0 0.0
    %1314 = vmatprep.subr.mxu0 0.0
    %1315 = vmatpush1.xpose.msra.mxu0 0.0
    %1316 = vmatprep.mubr.f32.mxu0 0.0
    %1317 = vmatmul.mubr.f32.gmra.mrb[0].mxu0 %v1244
    %v1318 = vpop.f32.mrb[0].mxu0
    %v1319 = vadd.f32 0.0, %v1318
    %v1320 = vpop.f32.mrb[0].mxu0
    %1321 = vmatprep.mubr.f32.mxu0 0.0
    %1322 = vmatmul.mubr.f32.gmra.mrb[0].mxu0 %v1246
    %v1323 = vpop.f32.mrb[0].mxu0
    %v1324 = vadd.f32 0.0, %v1323
    %v1325 = vpop.f32.mrb[0].mxu0
    %1326 = vdwg.mxu0
    %v1327 = vmul.f32 %v1319, 0.17677669
    %v1328 = vmul.f32 %v1324, 0.17677669
    %v1329 = vadd.f32 %v1327, %v816
    %v1330 = vadd.f32 %v1328, %v817
    %v1331 = vsel %vm358, %v1329, -inf
    %1332 = vmax.xlane.f32.xlu0 %v1331
    %v1333 = vpop.xlane.xlu0 %1332
    %v1334 = vsel %vm358, %v1330, -inf
    %1335 = vmax.xlane.f32.xlu0 %v1334
    %v1336 = vpop.xlane.xlu0 %1335
    %v1337 = vsub.f32 %v1329, %v1333
    %v1338 = vsub.f32 %v1330, %v1336
    %v1339 = vmul.f32 %v1337, 1.442695
    %v1340 = vpow.pop %v1339
    %v1341 = vmul.f32 %v1338, 1.442695
    %v1342 = vpow.pop %v1341
    %v1343 = vsel %vm358, %v1340, 0.0
    %1344 = vadd.xlane.f32.xlu0 %v1343
    %v1345 = vpop.xlane.xlu0 %1344
    %v1346 = vsel %vm358, %v1342, 0.0
    %1347 = vadd.xlane.f32.xlu0 %v1346
    %v1348 = vpop.xlane.xlu0 %1347
    %v1349 = vrcp.pop %v1345
    %v1350 = vrcp.pop %v1348
    %v1351 = vmul.f32 %v1340, %v1349
    %v1352 = vmul.f32 %v1342, %v1350
    %1355 = vrot.lane.b32.xlu0 %v1037, 96
    %v1356 = vpop.permute.xlu0 %1355
    %1357 = vrot.lane.b32.xlu0 %v1038, 96
    %v1358 = vpop.permute.xlu0 %1357
    %v1362 = vsel %vm358, %v1351, 0
    %v1365 = vsel %vm358, %v1352, 0
    %1367 = vmatprep.subr.mxu0 0.0
    %1368 = vmatpush1.msra.mxu0 %v1356
    %1369 = vmatprep.subr.mxu0 0.0
    %1370 = vmatpush1.msra.mxu0 %v1358
    %1371 = vmatprep.subr.mxu0 0.0
    %1372 = vmatpush1.msra.mxu0 0.0
    %1373 = vmatprep.subr.mxu0 0.0
    %1374 = vmatpush1.msra.mxu0 0.0
    %1375 = vmatprep.subr.mxu0 0.0
    %1376 = vmatpush1.msra.mxu0 0.0
    %1377 = vmatprep.subr.mxu0 0.0
    %1378 = vmatpush1.msra.mxu0 0.0
    %1379 = vmatprep.subr.mxu0 0.0
    %1380 = vmatpush1.msra.mxu0 0.0
    %1381 = vmatprep.subr.mxu0 0.0
    %1382 = vmatpush1.msra.mxu0 0.0
    %1383 = vmatprep.subr.mxu0 0.0
    %1384 = vmatpush1.msra.mxu0 0.0
    %1385 = vmatprep.subr.mxu0 0.0
    %1386 = vmatpush1.msra.mxu0 0.0
    %1387 = vmatprep.subr.mxu0 0.0
    %1388 = vmatpush1.msra.mxu0 0.0
    %1389 = vmatprep.subr.mxu0 0.0
    %1390 = vmatpush1.msra.mxu0 0.0
    %1391 = vmatprep.subr.mxu0 0.0
    %1392 = vmatpush1.msra.mxu0 0.0
    %1393 = vmatprep.subr.mxu0 0.0
    %1394 = vmatpush1.msra.mxu0 0.0
    %1395 = vmatprep.subr.mxu0 0.0
    %1396 = vmatpush1.msra.mxu0 0.0
    %1397 = vmatprep.subr.mxu0 0.0
    %1398 = vmatpush1.msra.mxu0 0.0
    %1399 = vmatprep.subr.mxu0 0.0
    %1400 = vmatpush1.msra.mxu0 0.0
    %1401 = vmatprep.subr.mxu0 0.0
    %1402 = vmatpush1.msra.mxu0 0.0
    %1403 = vmatprep.subr.mxu0 0.0
    %1404 = vmatpush1.msra.mxu0 0.0
    %1405 = vmatprep.subr.mxu0 0.0
    %1406 = vmatpush1.msra.mxu0 0.0
    %1407 = vmatprep.subr.mxu0 0.0
    %1408 = vmatpush1.msra.mxu0 0.0
    %1409 = vmatprep.subr.mxu0 0.0
    %1410 = vmatpush1.msra.mxu0 0.0
    %1411 = vmatprep.subr.mxu0 0.0
    %1412 = vmatpush1.msra.mxu0 0.0
    %1413 = vmatprep.subr.mxu0 0.0
    %1414 = vmatpush1.msra.mxu0 0.0
    %1415 = vmatprep.subr.mxu0 0.0
    %1416 = vmatpush1.msra.mxu0 0.0
    %1417 = vmatprep.subr.mxu0 0.0
    %1418 = vmatpush1.msra.mxu0 0.0
    %1419 = vmatprep.subr.mxu0 0.0
    %1420 = vmatpush1.msra.mxu0 0.0
    %1421 = vmatprep.subr.mxu0 0.0
    %1422 = vmatpush1.msra.mxu0 0.0
    %1423 = vmatprep.subr.mxu0 0.0
    %1424 = vmatpush1.msra.mxu0 0.0
    %1425 = vmatprep.subr.mxu0 0.0
    %1426 = vmatpush1.msra.mxu0 0.0
    %1427 = vmatprep.subr.mxu0 0.0
    %1428 = vmatpush1.msra.mxu0 0.0
    %1429 = vmatprep.subr.mxu0 0.0
    %1430 = vmatpush1.msra.mxu0 0.0
    %1431 = vmatprep.mubr.f32.mxu0 0.0
    %1432 = vmatmul.mubr.f32.gmra.mrb[0].mxu0 %v1362
    %v1433 = vpop.f32.mrb[0].mxu0
    %v1434 = vadd.f32 0.0, %v1433
    %v1435 = vpop.f32.mrb[0].mxu0
    %1436 = vmatprep.mubr.f32.mxu0 0.0
    %1437 = vmatmul.mubr.f32.gmra.mrb[0].mxu0 %v1365
    %v1438 = vpop.f32.mrb[0].mxu0
    %v1439 = vadd.f32 0.0, %v1438
    %v1440 = vpop.f32.mrb[0].mxu0
    %1441 = vdwg.mxu0
    %1444 = vrot.lane.b32.xlu0 %v1434, 32
    %v1445 = vpop.permute.xlu0 %1444
    %1446 = vrot.lane.b32.xlu0 %v1439, 32
    %v1447 = vpop.permute.xlu0 %1446
    %vm1450 = vcmask 523520
    %1451 = vst.msk [vmem:[#allocation2] sm:$0xff] %vm1450, %v1445
    %1452 = vst.msk [vmem:[#allocation2 + $0x8] sm:$0xff] %vm1450, %v1447
    %1453 = vrot.lane.b32.xlu0 %v1023, 64
    %v1454 = vpop.permute.xlu0 %1453
    %1455 = vrot.lane.b32.xlu0 %v1024, 64
    %v1456 = vpop.permute.xlu0 %1455
    %1457 = vrot.lane.b32.xlu0 %v1030, 64
    %v1458 = vpop.permute.xlu0 %1457
    %1459 = vrot.lane.b32.xlu0 %v1031, 64
    %v1460 = vpop.permute.xlu0 %1459
    %v1461 = vsel %vm1039, %v1454, 0
    %v1463 = vsel %vm1039, %v1456, 0
    %v1465 = vsel %vm1039, %v1458, 0
    %v1467 = vsel %vm1039, %v1460, 0
    %1469 = vmatprep.subr.mxu0 0.0
    %1470 = vmatpush1.xpose.msra.mxu0 %v1465
    %1471 = vmatprep.subr.mxu0 0.0
    %1472 = vmatpush1.xpose.msra.mxu0 %v1467
    %1473 = vmatprep.subr.mxu0 0.0
    %1474 = vmatpush1.xpose.msra.mxu0 0.0
    %1475 = vmatprep.subr.mxu0 0.0
    %1476 = vmatpush1.xpose.msra.mxu0 0.0
    %1477 = vmatprep.subr.mxu0 0.0
    %1478 = vmatpush1.xpose.msra.mxu0 0.0
    %1479 = vmatprep.subr.mxu0 0.0
    %1480 = vmatpush1.xpose.msra.mxu0 0.0
    %1481 = vmatprep.subr.mxu0 0.0
    %1482 = vmatpush1.xpose.msra.mxu0 0.0
    %1483 = vmatprep.subr.mxu0 0.0
    %1484 = vmatpush1.xpose.msra.mxu0 0.0
    %1485 = vmatprep.subr.mxu0 0.0
    %1486 = vmatpush1.xpose.msra.mxu0 0.0
    %1487 = vmatprep.subr.mxu0 0.0
    %1488 = vmatpush1.xpose.msra.mxu0 0.0
    %1489 = vmatprep.subr.mxu0 0.0
    %1490 = vmatpush1.xpose.msra.mxu0 0.0
    %1491 = vmatprep.subr.mxu0 0.0
    %1492 = vmatpush1.xpose.msra.mxu0 0.0
    %1493 = vmatprep.subr.mxu0 0.0
    %1494 = vmatpush1.xpose.msra.mxu0 0.0
    %1495 = vmatprep.subr.mxu0 0.0
    %1496 = vmatpush1.xpose.msra.mxu0 0.0
    %1497 = vmatprep.subr.mxu0 0.0
    %1498 = vmatpush1.xpose.msra.mxu0 0.0
    %1499 = vmatprep.subr.mxu0 0.0
    %1500 = vmatpush1.xpose.msra.mxu0 0.0
    %1501 = vmatprep.subr.mxu0 0.0
    %1502 = vmatpush1.xpose.msra.mxu0 0.0
    %1503 = vmatprep.subr.mxu0 0.0
    %1504 = vmatpush1.xpose.msra.mxu0 0.0
    %1505 = vmatprep.subr.mxu0 0.0
    %1506 = vmatpush1.xpose.msra.mxu0 0.0
    %1507 = vmatprep.subr.mxu0 0.0
    %1508 = vmatpush1.xpose.msra.mxu0 0.0
    %1509 = vmatprep.subr.mxu0 0.0
    %1510 = vmatpush1.xpose.msra.mxu0 0.0
    %1511 = vmatprep.subr.mxu0 0.0
    %1512 = vmatpush1.xpose.msra.mxu0 0.0
    %1513 = vmatprep.subr.mxu0 0.0
    %1514 = vmatpush1.xpose.msra.mxu0 0.0
    %1515 = vmatprep.subr.mxu0 0.0
    %1516 = vmatpush1.xpose.msra.mxu0 0.0
    %1517 = vmatprep.subr.mxu0 0.0
    %1518 = vmatpush1.xpose.msra.mxu0 0.0
    %1519 = vmatprep.subr.mxu0 0.0
    %1520 = vmatpush1.xpose.msra.mxu0 0.0
    %1521 = vmatprep.subr.mxu0 0.0
    %1522 = vmatpush1.xpose.msra.mxu0 0.0
    %1523 = vmatprep.subr.mxu0 0.0
    %1524 = vmatpush1.xpose.msra.mxu0 0.0
    %1525 = vmatprep.subr.mxu0 0.0
    %1526 = vmatpush1.xpose.msra.mxu0 0.0
    %1527 = vmatprep.subr.mxu0 0.0
    %1528 = vmatpush1.xpose.msra.mxu0 0.0
    %1529 = vmatprep.subr.mxu0 0.0
    %1530 = vmatpush1.xpose.msra.mxu0 0.0
    %1531 = vmatprep.subr.mxu0 0.0
    %1532 = vmatpush1.xpose.msra.mxu0 0.0
    %1533 = vmatprep.mubr.f32.mxu0 0.0
    %1534 = vmatmul.mubr.f32.gmra.mrb[0].mxu0 %v1461
    %v1535 = vpop.f32.mrb[0].mxu0
    %v1536 = vadd.f32 0.0, %v1535
    %v1537 = vpop.f32.mrb[0].mxu0
    %1538 = vmatprep.mubr.f32.mxu0 0.0
    %1539 = vmatmul.mubr.f32.gmra.mrb[0].mxu0 %v1463
    %v1540 = vpop.f32.mrb[0].mxu0
    %v1541 = vadd.f32 0.0, %v1540
    %v1542 = vpop.f32.mrb[0].mxu0
    %1543 = vdwg.mxu0
    %v1544 = vmul.f32 %v1536, 0.17677669
    %v1545 = vmul.f32 %v1541, 0.17677669
    %v1546 = vadd.f32 %v1544, %v816
    %v1547 = vadd.f32 %v1545, %v817
    %v1548 = vsel %vm358, %v1546, -inf
    %1549 = vmax.xlane.f32.xlu0 %v1548
    %v1550 = vpop.xlane.xlu0 %1549
    %v1551 = vsel %vm358, %v1547, -inf
    %1552 = vmax.xlane.f32.xlu0 %v1551
    %v1553 = vpop.xlane.xlu0 %1552
    %v1554 = vsub.f32 %v1546, %v1550
    %v1555 = vsub.f32 %v1547, %v1553
    %v1556 = vmul.f32 %v1554, 1.442695
    %v1557 = vpow.pop %v1556
    %v1558 = vmul.f32 %v1555, 1.442695
    %v1559 = vpow.pop %v1558
    %v1560 = vsel %vm358, %v1557, 0.0
    %1561 = vadd.xlane.f32.xlu0 %v1560
    %v1562 = vpop.xlane.xlu0 %1561
    %v1563 = vsel %vm358, %v1559, 0.0
    %1564 = vadd.xlane.f32.xlu0 %v1563
    %v1565 = vpop.xlane.xlu0 %1564
    %v1566 = vrcp.pop %v1562
    %v1567 = vrcp.pop %v1565
    %v1568 = vmul.f32 %v1557, %v1566
    %v1569 = vmul.f32 %v1559, %v1567
    %1570 = vrot.lane.b32.xlu0 %v1037, 64
    %v1571 = vpop.permute.xlu0 %1570
    %1572 = vrot.lane.b32.xlu0 %v1038, 64
    %v1573 = vpop.permute.xlu0 %1572
    %v1577 = vsel %vm358, %v1568, 0
    %v1580 = vsel %vm358, %v1569, 0
    %1582 = vmatprep.subr.mxu0 0.0
    %1583 = vmatpush1.msra.mxu0 %v1571
    %1584 = vmatprep.subr.mxu0 0.0
    %1585 = vmatpush1.msra.mxu0 %v1573
    %1586 = vmatprep.subr.mxu0 0.0
    %1587 = vmatpush1.msra.mxu0 0.0
    %1588 = vmatprep.subr.mxu0 0.0
    %1589 = vmatpush1.msra.mxu0 0.0
    %1590 = vmatprep.subr.mxu0 0.0
    %1591 = vmatpush1.msra.mxu0 0.0
    %1592 = vmatprep.subr.mxu0 0.0
    %1593 = vmatpush1.msra.mxu0 0.0
    %1594 = vmatprep.subr.mxu0 0.0
    %1595 = vmatpush1.msra.mxu0 0.0
    %1596 = vmatprep.subr.mxu0 0.0
    %1597 = vmatpush1.msra.mxu0 0.0
    %1598 = vmatprep.subr.mxu0 0.0
    %1599 = vmatpush1.msra.mxu0 0.0
    %1600 = vmatprep.subr.mxu0 0.0
    %1601 = vmatpush1.msra.mxu0 0.0
    %1602 = vmatprep.subr.mxu0 0.0
    %1603 = vmatpush1.msra.mxu0 0.0
    %1604 = vmatprep.subr.mxu0 0.0
    %1605 = vmatpush1.msra.mxu0 0.0
    %1606 = vmatprep.subr.mxu0 0.0
    %1607 = vmatpush1.msra.mxu0 0.0
    %1608 = vmatprep.subr.mxu0 0.0
    %1609 = vmatpush1.msra.mxu0 0.0
    %1610 = vmatprep.subr.mxu0 0.0
    %1611 = vmatpush1.msra.mxu0 0.0
    %1612 = vmatprep.subr.mxu0 0.0
    %1613 = vmatpush1.msra.mxu0 0.0
    %1614 = vmatprep.subr.mxu0 0.0
    %1615 = vmatpush1.msra.mxu0 0.0
    %1616 = vmatprep.subr.mxu0 0.0
    %1617 = vmatpush1.msra.mxu0 0.0
    %1618 = vmatprep.subr.mxu0 0.0
    %1619 = vmatpush1.msra.mxu0 0.0
    %1620 = vmatprep.subr.mxu0 0.0
    %1621 = vmatpush1.msra.mxu0 0.0
    %1622 = vmatprep.subr.mxu0 0.0
    %1623 = vmatpush1.msra.mxu0 0.0
    %1624 = vmatprep.subr.mxu0 0.0
    %1625 = vmatpush1.msra.mxu0 0.0
    %1626 = vmatprep.subr.mxu0 0.0
    %1627 = vmatpush1.msra.mxu0 0.0
    %1628 = vmatprep.subr.mxu0 0.0
    %1629 = vmatpush1.msra.mxu0 0.0
    %1630 = vmatprep.subr.mxu0 0.0
    %1631 = vmatpush1.msra.mxu0 0.0
    %1632 = vmatprep.subr.mxu0 0.0
    %1633 = vmatpush1.msra.mxu0 0.0
    %1634 = vmatprep.subr.mxu0 0.0
    %1635 = vmatpush1.msra.mxu0 0.0
    %1636 = vmatprep.subr.mxu0 0.0
    %1637 = vmatpush1.msra.mxu0 0.0
    %1638 = vmatprep.subr.mxu0 0.0
    %1639 = vmatpush1.msra.mxu0 0.0
    %1640 = vmatprep.subr.mxu0 0.0
    %1641 = vmatpush1.msra.mxu0 0.0
    %1642 = vmatprep.subr.mxu0 0.0
    %1643 = vmatpush1.msra.mxu0 0.0
    %1644 = vmatprep.subr.mxu0 0.0
    %1645 = vmatpush1.msra.mxu0 0.0
    %1646 = vmatprep.mubr.f32.mxu0 0.0
    %1647 = vmatmul.mubr.f32.gmra.mrb[0].mxu0 %v1577
    %v1648 = vpop.f32.mrb[0].mxu0
    %v1649 = vadd.f32 0.0, %v1648
    %v1650 = vpop.f32.mrb[0].mxu0
    %1651 = vmatprep.mubr.f32.mxu0 0.0
    %1652 = vmatmul.mubr.f32.gmra.mrb[0].mxu0 %v1580
    %v1653 = vpop.f32.mrb[0].mxu0
    %v1654 = vadd.f32 0.0, %v1653
    %v1655 = vpop.f32.mrb[0].mxu0
    %1656 = vdwg.mxu0
    %1659 = vrot.lane.b32.xlu0 %v1649, 64
    %v1660 = vpop.permute.xlu0 %1659
    %1661 = vrot.lane.b32.xlu0 %v1654, 64
    %v1662 = vpop.permute.xlu0 %1661
    %vm1665 = vcmask 785920
    %1666 = vst.msk [vmem:[#allocation2] sm:$0xff] %vm1665, %v1660
    %1667 = vst.msk [vmem:[#allocation2 + $0x8] sm:$0xff] %vm1665, %v1662
    %1668 = vrot.lane.b32.xlu0 %v1023, 32
    %v1669 = vpop.permute.xlu0 %1668
    %1670 = vrot.lane.b32.xlu0 %v1024, 32
    %v1671 = vpop.permute.xlu0 %1670
    %1672 = vrot.lane.b32.xlu0 %v1030, 32
    %v1673 = vpop.permute.xlu0 %1672
    %1674 = vrot.lane.b32.xlu0 %v1031, 32
    %v1675 = vpop.permute.xlu0 %1674
    %v1676 = vsel %vm1039, %v1669, 0
    %v1678 = vsel %vm1039, %v1671, 0
    %v1680 = vsel %vm1039, %v1673, 0
    %v1682 = vsel %vm1039, %v1675, 0
    %1684 = vmatprep.subr.mxu0 0.0
    %1685 = vmatpush1.xpose.msra.mxu0 %v1680
    %1686 = vmatprep.subr.mxu0 0.0
    %1687 = vmatpush1.xpose.msra.mxu0 %v1682
    %1688 = vmatprep.subr.mxu0 0.0
    %1689 = vmatpush1.xpose.msra.mxu0 0.0
    %1690 = vmatprep.subr.mxu0 0.0
    %1691 = vmatpush1.xpose.msra.mxu0 0.0
    %1692 = vmatprep.subr.mxu0 0.0
    %1693 = vmatpush1.xpose.msra.mxu0 0.0
    %1694 = vmatprep.subr.mxu0 0.0
    %1695 = vmatpush1.xpose.msra.mxu0 0.0
    %1696 = vmatprep.subr.mxu0 0.0
    %1697 = vmatpush1.xpose.msra.mxu0 0.0
    %1698 = vmatprep.subr.mxu0 0.0
    %1699 = vmatpush1.xpose.msra.mxu0 0.0
    %1700 = vmatprep.subr.mxu0 0.0
    %1701 = vmatpush1.xpose.msra.mxu0 0.0
    %1702 = vmatprep.subr.mxu0 0.0
    %1703 = vmatpush1.xpose.msra.mxu0 0.0
    %1704 = vmatprep.subr.mxu0 0.0
    %1705 = vmatpush1.xpose.msra.mxu0 0.0
    %1706 = vmatprep.subr.mxu0 0.0
    %1707 = vmatpush1.xpose.msra.mxu0 0.0
    %1708 = vmatprep.subr.mxu0 0.0
    %1709 = vmatpush1.xpose.msra.mxu0 0.0
    %1710 = vmatprep.subr.mxu0 0.0
    %1711 = vmatpush1.xpose.msra.mxu0 0.0
    %1712 = vmatprep.subr.mxu0 0.0
    %1713 = vmatpush1.xpose.msra.mxu0 0.0
    %1714 = vmatprep.subr.mxu0 0.0
    %1715 = vmatpush1.xpose.msra.mxu0 0.0
    %1716 = vmatprep.subr.mxu0 0.0
    %1717 = vmatpush1.xpose.msra.mxu0 0.0
    %1718 = vmatprep.subr.mxu0 0.0
    %1719 = vmatpush1.xpose.msra.mxu0 0.0
    %1720 = vmatprep.subr.mxu0 0.0
    %1721 = vmatpush1.xpose.msra.mxu0 0.0
    %1722 = vmatprep.subr.mxu0 0.0
    %1723 = vmatpush1.xpose.msra.mxu0 0.0
    %1724 = vmatprep.subr.mxu0 0.0
    %1725 = vmatpush1.xpose.msra.mxu0 0.0
    %1726 = vmatprep.subr.mxu0 0.0
    %1727 = vmatpush1.xpose.msra.mxu0 0.0
    %1728 = vmatprep.subr.mxu0 0.0
    %1729 = vmatpush1.xpose.msra.mxu0 0.0
    %1730 = vmatprep.subr.mxu0 0.0
    %1731 = vmatpush1.xpose.msra.mxu0 0.0
    %1732 = vmatprep.subr.mxu0 0.0
    %1733 = vmatpush1.xpose.msra.mxu0 0.0
    %1734 = vmatprep.subr.mxu0 0.0
    %1735 = vmatpush1.xpose.msra.mxu0 0.0
    %1736 = vmatprep.subr.mxu0 0.0
    %1737 = vmatpush1.xpose.msra.mxu0 0.0
    %1738 = vmatprep.subr.mxu0 0.0
    %1739 = vmatpush1.xpose.msra.mxu0 0.0
    %1740 = vmatprep.subr.mxu0 0.0
    %1741 = vmatpush1.xpose.msra.mxu0 0.0
    %1742 = vmatprep.subr.mxu0 0.0
    %1743 = vmatpush1.xpose.msra.mxu0 0.0
    %1744 = vmatprep.subr.mxu0 0.0
    %1745 = vmatpush1.xpose.msra.mxu0 0.0
    %1746 = vmatprep.subr.mxu0 0.0
    %1747 = vmatpush1.xpose.msra.mxu0 0.0
    %1748 = vmatprep.mubr.f32.mxu0 0.0
    %1749 = vmatmul.mubr.f32.gmra.mrb[0].mxu0 %v1676
    %v1750 = vpop.f32.mrb[0].mxu0
    %v1751 = vadd.f32 0.0, %v1750
    %v1752 = vpop.f32.mrb[0].mxu0
    %1753 = vmatprep.mubr.f32.mxu0 0.0
    %1754 = vmatmul.mubr.f32.gmra.mrb[0].mxu0 %v1678
    %v1755 = vpop.f32.mrb[0].mxu0
    %v1756 = vadd.f32 0.0, %v1755
    %v1757 = vpop.f32.mrb[0].mxu0
    %1758 = vdwg.mxu0
    %v1759 = vmul.f32 %v1751, 0.17677669
    %v1760 = vmul.f32 %v1756, 0.17677669
    %v1761 = vadd.f32 %v1759, %v816
    %v1762 = vadd.f32 %v1760, %v817
    %v1763 = vsel %vm358, %v1761, -inf
    %1764 = vmax.xlane.f32.xlu0 %v1763
    %v1765 = vpop.xlane.xlu0 %1764
    %v1766 = vsel %vm358, %v1762, -inf
    %1767 = vmax.xlane.f32.xlu0 %v1766
    %v1768 = vpop.xlane.xlu0 %1767
    %v1769 = vsub.f32 %v1761, %v1765
    %v1770 = vsub.f32 %v1762, %v1768
    %v1771 = vmul.f32 %v1769, 1.442695
    %v1772 = vpow.pop %v1771
    %v1773 = vmul.f32 %v1770, 1.442695
    %v1774 = vpow.pop %v1773
    %v1775 = vsel %vm358, %v1772, 0.0
    %1776 = vadd.xlane.f32.xlu0 %v1775
    %v1777 = vpop.xlane.xlu0 %1776
    %v1778 = vsel %vm358, %v1774, 0.0
    %1779 = vadd.xlane.f32.xlu0 %v1778
    %v1780 = vpop.xlane.xlu0 %1779
    %v1781 = vrcp.pop %v1777
    %v1782 = vrcp.pop %v1780
    %v1783 = vmul.f32 %v1772, %v1781
    %v1784 = vmul.f32 %v1774, %v1782
    %1785 = vrot.lane.b32.xlu0 %v1037, 32
    %v1786 = vpop.permute.xlu0 %1785
    %1787 = vrot.lane.b32.xlu0 %v1038, 32
    %v1788 = vpop.permute.xlu0 %1787
    %v1792 = vsel %vm358, %v1783, 0
    %v1795 = vsel %vm358, %v1784, 0
    %1797 = vmatprep.subr.mxu0 0.0
    %1798 = vmatpush1.msra.mxu0 %v1786
    %1799 = vmatprep.subr.mxu0 0.0
    %1800 = vmatpush1.msra.mxu0 %v1788
    %1801 = vmatprep.subr.mxu0 0.0
    %1802 = vmatpush1.msra.mxu0 0.0
    %1803 = vmatprep.subr.mxu0 0.0
    %1804 = vmatpush1.msra.mxu0 0.0
    %1805 = vmatprep.subr.mxu0 0.0
    %1806 = vmatpush1.msra.mxu0 0.0
    %1807 = vmatprep.subr.mxu0 0.0
    %1808 = vmatpush1.msra.mxu0 0.0
    %1809 = vmatprep.subr.mxu0 0.0
    %1810 = vmatpush1.msra.mxu0 0.0
    %1811 = vmatprep.subr.mxu0 0.0
    %1812 = vmatpush1.msra.mxu0 0.0
    %1813 = vmatprep.subr.mxu0 0.0
    %1814 = vmatpush1.msra.mxu0 0.0
    %1815 = vmatprep.subr.mxu0 0.0
    %1816 = vmatpush1.msra.mxu0 0.0
    %1817 = vmatprep.subr.mxu0 0.0
    %1818 = vmatpush1.msra.mxu0 0.0
    %1819 = vmatprep.subr.mxu0 0.0
    %1820 = vmatpush1.msra.mxu0 0.0
    %1821 = vmatprep.subr.mxu0 0.0
    %1822 = vmatpush1.msra.mxu0 0.0
    %1823 = vmatprep.subr.mxu0 0.0
    %1824 = vmatpush1.msra.mxu0 0.0
    %1825 = vmatprep.subr.mxu0 0.0
    %1826 = vmatpush1.msra.mxu0 0.0
    %1827 = vmatprep.subr.mxu0 0.0
    %1828 = vmatpush1.msra.mxu0 0.0
    %1829 = vmatprep.subr.mxu0 0.0
    %1830 = vmatpush1.msra.mxu0 0.0
    %1831 = vmatprep.subr.mxu0 0.0
    %1832 = vmatpush1.msra.mxu0 0.0
    %1833 = vmatprep.subr.mxu0 0.0
    %1834 = vmatpush1.msra.mxu0 0.0
    %1835 = vmatprep.subr.mxu0 0.0
    %1836 = vmatpush1.msra.mxu0 0.0
    %1837 = vmatprep.subr.mxu0 0.0
    %1838 = vmatpush1.msra.mxu0 0.0
    %1839 = vmatprep.subr.mxu0 0.0
    %1840 = vmatpush1.msra.mxu0 0.0
    %1841 = vmatprep.subr.mxu0 0.0
    %1842 = vmatpush1.msra.mxu0 0.0
    %1843 = vmatprep.subr.mxu0 0.0
    %1844 = vmatpush1.msra.mxu0 0.0
    %1845 = vmatprep.subr.mxu0 0.0
    %1846 = vmatpush1.msra.mxu0 0.0
    %1847 = vmatprep.subr.mxu0 0.0
    %1848 = vmatpush1.msra.mxu0 0.0
    %1849 = vmatprep.subr.mxu0 0.0
    %1850 = vmatpush1.msra.mxu0 0.0
    %1851 = vmatprep.subr.mxu0 0.0
    %1852 = vmatpush1.msra.mxu0 0.0
    %1853 = vmatprep.subr.mxu0 0.0
    %1854 = vmatpush1.msra.mxu0 0.0
    %1855 = vmatprep.subr.mxu0 0.0
    %1856 = vmatpush1.msra.mxu0 0.0
    %1857 = vmatprep.subr.mxu0 0.0
    %1858 = vmatpush1.msra.mxu0 0.0
    %1859 = vmatprep.subr.mxu0 0.0
    %1860 = vmatpush1.msra.mxu0 0.0
    %1861 = vmatprep.mubr.f32.mxu0 0.0
    %1862 = vmatmul.mubr.f32.gmra.mrb[0].mxu0 %v1792
    %v1863 = vpop.f32.mrb[0].mxu0
    %v1864 = vadd.f32 0.0, %v1863
    %v1865 = vpop.f32.mrb[0].mxu0
    %1866 = vmatprep.mubr.f32.mxu0 0.0
    %1867 = vmatmul.mubr.f32.gmra.mrb[0].mxu0 %v1795
    %v1868 = vpop.f32.mrb[0].mxu0
    %v1869 = vadd.f32 0.0, %v1868
    %v1870 = vpop.f32.mrb[0].mxu0
    %1871 = vdwg.mxu0
    %1874 = vrot.lane.b32.xlu0 %v1864, 96
    %v1875 = vpop.permute.xlu0 %1874
    %1876 = vrot.lane.b32.xlu0 %v1869, 96
    %v1877 = vpop.permute.xlu0 %1876
    %vm1880 = vcmask 1048320
    %1881 = vst.msk [vmem:[#allocation2] sm:$0xff] %vm1880, %v1875
    %1882 = vst.msk [vmem:[#allocation2 + $0x8] sm:$0xff] %vm1880, %v1877
    %v1883 = vld [vmem:[#allocation2] sm:$0xff]
    %v1884 = vld [vmem:[#allocation2 + $0x8] sm:$0xff]
    %v1885 = vld [vmem:[#allocation3 + $0x18] sm:$0xff]
    %v1886 = vld [vmem:[#allocation3 + $0x48] sm:$0xff]
    %v1887 = vld [vmem:[#allocation3 + $0x78] sm:$0xff]
    %v1888 = vld [vmem:[#allocation3 + $0xa8] sm:$0xff]
    %v1889 = vld [vmem:[#allocation3 + $0xd8] sm:$0xff]
    %v1890 = vld [vmem:[#allocation3 + $0x108] sm:$0xff]
    %v1891 = vld [vmem:[#allocation3 + $0x138] sm:$0xff]
    %v1892 = vld [vmem:[#allocation3 + $0x168] sm:$0xff]
    %v1893 = vld [vmem:[#allocation3 + $0x198] sm:$0xff]
    %v1894 = vld [vmem:[#allocation3 + $0x1c8] sm:$0xff]
    %v1895 = vld [vmem:[#allocation3 + $0x1f8] sm:$0xff]
    %v1896 = vld [vmem:[#allocation3 + $0x228] sm:$0xff]
    %v1897 = vld [vmem:[#allocation3 + $0x258] sm:$0xff]
    %v1898 = vld [vmem:[#allocation3 + $0x288] sm:$0xff]
    %v1899 = vld [vmem:[#allocation3 + $0x2b8] sm:$0xff]
    %v1900 = vld [vmem:[#allocation3 + $0x2e8] sm:$0xff]
    %v1901 = vld [vmem:[%s9 + $0x4] sm:$0x1]
    %v1902 = vlaneseq
    %v1903 = vshrl.u32 %v1902, 7
    %v1904 = vsub.s32 0, %v1903
    %v1905 = vrot.slane %v1901, %v1904
    %1906 = vmatprep.subr.mxu0 0.0
    %1907 = vmatpush1.msra.mxu0 %v1885
    %1908 = vmatprep.subr.mxu0 0.0
    %1909 = vmatpush1.msra.mxu0 %v1886
    %1910 = vmatprep.subr.mxu0 0.0
    %1911 = vmatpush1.msra.mxu0 %v1887
    %1912 = vmatprep.subr.mxu0 0.0
    %1913 = vmatpush1.msra.mxu0 %v1888
    %1914 = vmatprep.subr.mxu0 0.0
    %1915 = vmatpush1.msra.mxu0 %v1889
    %1916 = vmatprep.subr.mxu0 0.0
    %1917 = vmatpush1.msra.mxu0 %v1890
    %1918 = vmatprep.subr.mxu0 0.0
    %1919 = vmatpush1.msra.mxu0 %v1891
    %1920 = vmatprep.subr.mxu0 0.0
    %1921 = vmatpush1.msra.mxu0 %v1892
    %1922 = vmatprep.subr.mxu0 0.0
    %1923 = vmatpush1.msra.mxu0 %v1893
    %1924 = vmatprep.subr.mxu0 0.0
    %1925 = vmatpush1.msra.mxu0 %v1894
    %1926 = vmatprep.subr.mxu0 0.0
    %1927 = vmatpush1.msra.mxu0 %v1895
    %1928 = vmatprep.subr.mxu0 0.0
    %1929 = vmatpush1.msra.mxu0 %v1896
    %1930 = vmatprep.subr.mxu0 0.0
    %1931 = vmatpush1.msra.mxu0 %v1897
    %1932 = vmatprep.subr.mxu0 0.0
    %1933 = vmatpush1.msra.mxu0 %v1898
    %1934 = vmatprep.subr.mxu0 0.0
    %1935 = vmatpush1.msra.mxu0 %v1899
    %1936 = vmatprep.subr.mxu0 0.0
    %1937 = vmatpush1.msra.mxu0 %v1900
    %1938 = vmatprep.subr.mxu0 0.0
    %1939 = vmatpush1.msra.mxu0 0.0
    %1940 = vmatprep.subr.mxu0 0.0
    %1941 = vmatpush1.msra.mxu0 0.0
    %1942 = vmatprep.subr.mxu0 0.0
    %1943 = vmatpush1.msra.mxu0 0.0
    %1944 = vmatprep.subr.mxu0 0.0
    %1945 = vmatpush1.msra.mxu0 0.0
    %1946 = vmatprep.subr.mxu0 0.0
    %1947 = vmatpush1.msra.mxu0 0.0
    %1948 = vmatprep.subr.mxu0 0.0
    %1949 = vmatpush1.msra.mxu0 0.0
    %1950 = vmatprep.subr.mxu0 0.0
    %1951 = vmatpush1.msra.mxu0 0.0
    %1952 = vmatprep.subr.mxu0 0.0
    %1953 = vmatpush1.msra.mxu0 0.0
    %1954 = vmatprep.subr.mxu0 0.0
    %1955 = vmatpush1.msra.mxu0 0.0
    %1956 = vmatprep.subr.mxu0 0.0
    %1957 = vmatpush1.msra.mxu0 0.0
    %1958 = vmatprep.subr.mxu0 0.0
    %1959 = vmatpush1.msra.mxu0 0.0
    %1960 = vmatprep.subr.mxu0 0.0
    %1961 = vmatpush1.msra.mxu0 0.0
    %1962 = vmatprep.subr.mxu0 0.0
    %1963 = vmatpush1.msra.mxu0 0.0
    %1964 = vmatprep.subr.mxu0 0.0
    %1965 = vmatpush1.msra.mxu0 0.0
    %1966 = vmatprep.subr.mxu0 0.0
    %1967 = vmatpush1.msra.mxu0 0.0
    %1968 = vmatprep.subr.mxu0 0.0
    %1969 = vmatpush1.msra.mxu0 0.0
    %1970 = vmatprep.mubr.f32.mxu0 0.0
    %1971 = vmatmul.mubr.f32.gmra.mrb[0].mxu0 %v1883
    %v1972 = vpop.f32.mrb[0].mxu0
    %v1973 = vadd.f32 %v1905, %v1972
    %v1974 = vpop.f32.mrb[0].mxu0
    %1975 = vmatprep.mubr.f32.mxu0 0.0
    %1976 = vmatmul.mubr.f32.gmra.mrb[0].mxu0 %v1884
    %v1977 = vpop.f32.mrb[0].mxu0
    %v1978 = vadd.f32 %v1905, %v1977
    %v1979 = vpop.f32.mrb[0].mxu0
    %1980 = vdwg.mxu0
    %v1981 = vadd.f32 %v814, %v1973
    %v1982 = vadd.f32 %v815, %v1978
    %v1983 = vld [vmem:[%s9 + $0x5] sm:$0x1]
    %v1984 = vld [vmem:[%s9 + $0x6] sm:$0x1]
    %1985 = vadd.xlane.f32.xlu0 %v1981
    %v1986 = vpop.xlane.xlu0 %1985
    %1987 = vadd.xlane.f32.xlu0 %v1982
    %v1988 = vpop.xlane.xlu0 %1987
    %v1989 = vrcp.pop 128.0
    %v1990 = vmul.f32 %v1986, %v1989
    %v1991 = vmul.f32 %v1988, %v1989
    %v1992 = vsub.f32 %v1981, %v1990
    %v1993 = vsub.f32 %v1982, %v1991
    %v1994 = vmul.f32 %v1992, %v1992
    %v1995 = vmul.f32 %v1993, %v1993
    %1996 = vadd.xlane.f32.xlu0 %v1994
    %v1997 = vpop.xlane.xlu0 %1996
    %1998 = vadd.xlane.f32.xlu0 %v1995
    %v1999 = vpop.xlane.xlu0 %1998
    %v2000 = vmul.f32 %v1997, %v1989
    %v2001 = vmul.f32 %v1999, %v1989
    %v2002 = vadd.f32 %v2000, 1e-05
    %v2003 = vadd.f32 %v2001, 1e-05
    %v2004 = vrsqrt.pop %v2002
    %v2005 = vrsqrt.pop %v2003
    %v2006 = vmul.f32 %v1992, %v2004
    %v2007 = vmul.f32 %v1993, %v2005
    %v2008 = vlaneseq
    %v2009 = vshrl.u32 %v2008, 7
    %v2010 = vsub.s32 0, %v2009
    %v2011 = vrot.slane %v1983, %v2010
    %v2012 = vmul.f32 %v2006, %v2011
    %v2013 = vmul.f32 %v2007, %v2011
    %v2014 = vlaneseq
    %v2015 = vshrl.u32 %v2014, 7
    %v2016 = vsub.s32 0, %v2015
    %v2017 = vrot.slane %v1984, %v2016
    %v2018 = vadd.f32 %v2012, %v2017
    %v2019 = vadd.f32 %v2013, %v2017
    %v2020 = vld [vmem:[#allocation3 + $0x20] sm:$0xff]
    %v2021 = vld [vmem:[#allocation3 + $0x50] sm:$0xff]
    %v2022 = vld [vmem:[#allocation3 + $0x80] sm:$0xff]
    %v2023 = vld [vmem:[#allocation3 + $0xb0] sm:$0xff]
    %v2024 = vld [vmem:[#allocation3 + $0xe0] sm:$0xff]
    %v2025 = vld [vmem:[#allocation3 + $0x110] sm:$0xff]
    %v2026 = vld [vmem:[#allocation3 + $0x140] sm:$0xff]
    %v2027 = vld [vmem:[#allocation3 + $0x170] sm:$0xff]
    %v2028 = vld [vmem:[#allocation3 + $0x1a0] sm:$0xff]
    %v2029 = vld [vmem:[#allocation3 + $0x1d0] sm:$0xff]
    %v2030 = vld [vmem:[#allocation3 + $0x200] sm:$0xff]
    %v2031 = vld [vmem:[#allocation3 + $0x230] sm:$0xff]
    %v2032 = vld [vmem:[#allocation3 + $0x260] sm:$0xff]
    %v2033 = vld [vmem:[#allocation3 + $0x290] sm:$0xff]
    %v2034 = vld [vmem:[#allocation3 + $0x2c0] sm:$0xff]
    %v2035 = vld [vmem:[#allocation3 + $0x2f0] sm:$0xff]
    %v2036 = vld [vmem:[%s9 + $0x7] sm:$0x1]
    %v2037 = vlaneseq
    %v2038 = vshrl.u32 %v2037, 7
    %v2039 = vsub.s32 0, %v2038
    %v2040 = vrot.slane %v2036, %v2039
    %2041 = vmatprep.subr.mxu0 0.0
    %2042 = vmatpush1.msra.mxu0 %v2020
    %2043 = vmatprep.subr.mxu0 0.0
    %2044 = vmatpush1.msra.mxu0 %v2021
    %2045 = vmatprep.subr.mxu0 0.0
    %2046 = vmatpush1.msra.mxu0 %v2022
    %2047 = vmatprep.subr.mxu0 0.0
    %2048 = vmatpush1.msra.mxu0 %v2023
    %2049 = vmatprep.subr.mxu0 0.0
    %2050 = vmatpush1.msra.mxu0 %v2024
    %2051 = vmatprep.subr.mxu0 0.0
    %2052 = vmatpush1.msra.mxu0 %v2025
    %2053 = vmatprep.subr.mxu0 0.0
    %2054 = vmatpush1.msra.mxu0 %v2026
    %2055 = vmatprep.subr.mxu0 0.0
    %2056 = vmatpush1.msra.mxu0 %v2027
    %2057 = vmatprep.subr.mxu0 0.0
    %2058 = vmatpush1.msra.mxu0 %v2028
    %2059 = vmatprep.subr.mxu0 0.0
    %2060 = vmatpush1.msra.mxu0 %v2029
    %2061 = vmatprep.subr.mxu0 0.0
    %2062 = vmatpush1.msra.mxu0 %v2030
    %2063 = vmatprep.subr.mxu0 0.0
    %2064 = vmatpush1.msra.mxu0 %v2031
    %2065 = vmatprep.subr.mxu0 0.0
    %2066 = vmatpush1.msra.mxu0 %v2032
    %2067 = vmatprep.subr.mxu0 0.0
    %2068 = vmatpush1.msra.mxu0 %v2033
    %2069 = vmatprep.subr.mxu0 0.0
    %2070 = vmatpush1.msra.mxu0 %v2034
    %2071 = vmatprep.subr.mxu0 0.0
    %2072 = vmatpush1.msra.mxu0 %v2035
    %2073 = vmatprep.subr.mxu0 0.0
    %2074 = vmatpush1.msra.mxu0 0.0
    %2075 = vmatprep.subr.mxu0 0.0
    %2076 = vmatpush1.msra.mxu0 0.0
    %2077 = vmatprep.subr.mxu0 0.0
    %2078 = vmatpush1.msra.mxu0 0.0
    %2079 = vmatprep.subr.mxu0 0.0
    %2080 = vmatpush1.msra.mxu0 0.0
    %2081 = vmatprep.subr.mxu0 0.0
    %2082 = vmatpush1.msra.mxu0 0.0
    %2083 = vmatprep.subr.mxu0 0.0
    %2084 = vmatpush1.msra.mxu0 0.0
    %2085 = vmatprep.subr.mxu0 0.0
    %2086 = vmatpush1.msra.mxu0 0.0
    %2087 = vmatprep.subr.mxu0 0.0
    %2088 = vmatpush1.msra.mxu0 0.0
    %2089 = vmatprep.subr.mxu0 0.0
    %2090 = vmatpush1.msra.mxu0 0.0
    %2091 = vmatprep.subr.mxu0 0.0
    %2092 = vmatpush1.msra.mxu0 0.0
    %2093 = vmatprep.subr.mxu0 0.0
    %2094 = vmatpush1.msra.mxu0 0.0
    %2095 = vmatprep.subr.mxu0 0.0
    %2096 = vmatpush1.msra.mxu0 0.0
    %2097 = vmatprep.subr.mxu0 0.0
    %2098 = vmatpush1.msra.mxu0 0.0
    %2099 = vmatprep.subr.mxu0 0.0
    %2100 = vmatpush1.msra.mxu0 0.0
    %2101 = vmatprep.subr.mxu0 0.0
    %2102 = vmatpush1.msra.mxu0 0.0
    %2103 = vmatprep.subr.mxu0 0.0
    %2104 = vmatpush1.msra.mxu0 0.0
    %2105 = vmatprep.mubr.f32.mxu0 0.0
    %2106 = vmatmul.mubr.f32.gmra.mrb[0].mxu0 %v2018
    %v2107 = vpop.f32.mrb[0].mxu0
    %v2108 = vadd.f32 %v2040, %v2107
    %v2109 = vpop.f32.mrb[0].mxu0
    %2110 = vmatprep.mubr.f32.mxu0 0.0
    %2111 = vmatmul.mubr.f32.gmra.mrb[0].mxu0 %v2019
    %v2112 = vpop.f32.mrb[0].mxu0
    %v2113 = vadd.f32 %v2040, %v2112
    %v2114 = vpop.f32.mrb[0].mxu0
    %2115 = vdwg.mxu0
    %v2116 = vmax.f32 %v2108, 0.0
    %v2117 = vmax.f32 %v2113, 0.0
    %v2118 = vld [vmem:[#allocation3 + $0x28] sm:$0xff]
    %v2119 = vld [vmem:[#allocation3 + $0x58] sm:$0xff]
    %v2120 = vld [vmem:[#allocation3 + $0x88] sm:$0xff]
    %v2121 = vld [vmem:[#allocation3 + $0xb8] sm:$0xff]
    %v2122 = vld [vmem:[#allocation3 + $0xe8] sm:$0xff]
    %v2123 = vld [vmem:[#allocation3 + $0x118] sm:$0xff]
    %v2124 = vld [vmem:[#allocation3 + $0x148] sm:$0xff]
    %v2125 = vld [vmem:[#allocation3 + $0x178] sm:$0xff]
    %v2126 = vld [vmem:[#allocation3 + $0x1a8] sm:$0xff]
    %v2127 = vld [vmem:[#allocation3 + $0x1d8] sm:$0xff]
    %v2128 = vld [vmem:[#allocation3 + $0x208] sm:$0xff]
    %v2129 = vld [vmem:[#allocation3 + $0x238] sm:$0xff]
    %v2130 = vld [vmem:[#allocation3 + $0x268] sm:$0xff]
    %v2131 = vld [vmem:[#allocation3 + $0x298] sm:$0xff]
    %v2132 = vld [vmem:[#allocation3 + $0x2c8] sm:$0xff]
    %v2133 = vld [vmem:[#allocation3 + $0x2f8] sm:$0xff]
    %v2134 = vld [vmem:[%s9 + $0x8] sm:$0x1]
    %v2135 = vlaneseq
    %v2136 = vshrl.u32 %v2135, 7
    %v2137 = vsub.s32 0, %v2136
    %v2138 = vrot.slane %v2134, %v2137
    %2139 = vmatprep.subr.mxu0 0.0
    %2140 = vmatpush1.msra.mxu0 %v2118
    %2141 = vmatprep.subr.mxu0 0.0
    %2142 = vmatpush1.msra.mxu0 %v2119
    %2143 = vmatprep.subr.mxu0 0.0
    %2144 = vmatpush1.msra.mxu0 %v2120
    %2145 = vmatprep.subr.mxu0 0.0
    %2146 = vmatpush1.msra.mxu0 %v2121
    %2147 = vmatprep.subr.mxu0 0.0
    %2148 = vmatpush1.msra.mxu0 %v2122
    %2149 = vmatprep.subr.mxu0 0.0
    %2150 = vmatpush1.msra.mxu0 %v2123
    %2151 = vmatprep.subr.mxu0 0.0
    %2152 = vmatpush1.msra.mxu0 %v2124
    %2153 = vmatprep.subr.mxu0 0.0
    %2154 = vmatpush1.msra.mxu0 %v2125
    %2155 = vmatprep.subr.mxu0 0.0
    %2156 = vmatpush1.msra.mxu0 %v2126
    %2157 = vmatprep.subr.mxu0 0.0
    %2158 = vmatpush1.msra.mxu0 %v2127
    %2159 = vmatprep.subr.mxu0 0.0
    %2160 = vmatpush1.msra.mxu0 %v2128
    %2161 = vmatprep.subr.mxu0 0.0
    %2162 = vmatpush1.msra.mxu0 %v2129
    %2163 = vmatprep.subr.mxu0 0.0
    %2164 = vmatpush1.msra.mxu0 %v2130
    %2165 = vmatprep.subr.mxu0 0.0
    %2166 = vmatpush1.msra.mxu0 %v2131
    %2167 = vmatprep.subr.mxu0 0.0
    %2168 = vmatpush1.msra.mxu0 %v2132
    %2169 = vmatprep.subr.mxu0 0.0
    %2170 = vmatpush1.msra.mxu0 %v2133
    %2171 = vmatprep.subr.mxu0 0.0
    %2172 = vmatpush1.msra.mxu0 0.0
    %2173 = vmatprep.subr.mxu0 0.0
    %2174 = vmatpush1.msra.mxu0 0.0
    %2175 = vmatprep.subr.mxu0 0.0
    %2176 = vmatpush1.msra.mxu0 0.0
    %2177 = vmatprep.subr.mxu0 0.0
    %2178 = vmatpush1.msra.mxu0 0.0
    %2179 = vmatprep.subr.mxu0 0.0
    %2180 = vmatpush1.msra.mxu0 0.0
    %2181 = vmatprep.subr.mxu0 0.0
    %2182 = vmatpush1.msra.mxu0 0.0
    %2183 = vmatprep.subr.mxu0 0.0
    %2184 = vmatpush1.msra.mxu0 0.0
    %2185 = vmatprep.subr.mxu0 0.0
    %2186 = vmatpush1.msra.mxu0 0.0
    %2187 = vmatprep.subr.mxu0 0.0
    %2188 = vmatpush1.msra.mxu0 0.0
    %2189 = vmatprep.subr.mxu0 0.0
    %2190 = vmatpush1.msra.mxu0 0.0
    %2191 = vmatprep.subr.mxu0 0.0
    %2192 = vmatpush1.msra.mxu0 0.0
    %2193 = vmatprep.subr.mxu0 0.0
    %2194 = vmatpush1.msra.mxu0 0.0
    %2195 = vmatprep.subr.mxu0 0.0
    %2196 = vmatpush1.msra.mxu0 0.0
    %2197 = vmatprep.subr.mxu0 0.0
    %2198 = vmatpush1.msra.mxu0 0.0
    %2199 = vmatprep.subr.mxu0 0.0
    %2200 = vmatpush1.msra.mxu0 0.0
    %2201 = vmatprep.subr.mxu0 0.0
    %2202 = vmatpush1.msra.mxu0 0.0
    %2203 = vmatprep.mubr.f32.mxu0 0.0
    %2204 = vmatmul.mubr.f32.gmra.mrb[0].mxu0 %v2116
    %v2205 = vpop.f32.mrb[0].mxu0
    %v2206 = vadd.f32 %v2138, %v2205
    %v2207 = vpop.f32.mrb[0].mxu0
    %2208 = vmatprep.mubr.f32.mxu0 0.0
    %2209 = vmatmul.mubr.f32.gmra.mrb[0].mxu0 %v2117
    %v2210 = vpop.f32.mrb[0].mxu0
    %v2211 = vadd.f32 %v2138, %v2210
    %v2212 = vpop.f32.mrb[0].mxu0
    %2213 = vdwg.mxu0
    %v2214 = vadd.f32 %v2018, %v2206
    %v2215 = vadd.f32 %v2019, %v2211
    %v2216 = vld [vmem:[%s9 + $0x9] sm:$0x1]
    %v2217 = vld [vmem:[%s9 + $0xa] sm:$0x1]
    %2218 = vadd.xlane.f32.xlu0 %v2214
    %v2219 = vpop.xlane.xlu0 %2218
    %2220 = vadd.xlane.f32.xlu0 %v2215
    %v2221 = vpop.xlane.xlu0 %2220
    %v2222 = vmul.f32 %v2219, %v1989
    %v2223 = vmul.f32 %v2221, %v1989
    %v2224 = vsub.f32 %v2214, %v2222
    %v2225 = vsub.f32 %v2215, %v2223
    %v2226 = vmul.f32 %v2224, %v2224
    %v2227 = vmul.f32 %v2225, %v2225
    %2228 = vadd.xlane.f32.xlu0 %v2226
    %v2229 = vpop.xlane.xlu0 %2228
    %2230 = vadd.xlane.f32.xlu0 %v2227
    %v2231 = vpop.xlane.xlu0 %2230
    %v2232 = vmul.f32 %v2229, %v1989
    %v2233 = vmul.f32 %v2231, %v1989
    %v2234 = vadd.f32 %v2232, 1e-05
    %v2235 = vadd.f32 %v2233, 1e-05
    %v2236 = vrsqrt.pop %v2234
    %v2237 = vrsqrt.pop %v2235
    %v2238 = vmul.f32 %v2224, %v2236
    %v2239 = vmul.f32 %v2225, %v2237
    %v2240 = vlaneseq
    %v2241 = vshrl.u32 %v2240, 7
    %v2242 = vsub.s32 0, %v2241
    %v2243 = vrot.slane %v2216, %v2242
    %v2244 = vmul.f32 %v2238, %v2243
    %v2245 = vmul.f32 %v2239, %v2243
    %v2246 = vlaneseq
    %v2247 = vshrl.u32 %v2246, 7
    %v2248 = vsub.s32 0, %v2247
    %v2249 = vrot.slane %v2217, %v2248
    %v2250 = vadd.f32 %v2244, %v2249
    %v2251 = vadd.f32 %v2245, %v2249
    %s2252 = scalar_lea.vmem [#allocation3], 768
    %v2253 = vld [vmem:[%s2252] sm:$0xff]
    %v2254 = vld [vmem:[%s2252 + $0x8] sm:$0xff]
    %v2255 = vld [vmem:[%s2252 + $0x10] sm:$0xff]
    %v2256 = vld [vmem:[%s2252 + $0x30] sm:$0xff]
    %v2257 = vld [vmem:[%s2252 + $0x38] sm:$0xff]
    %v2258 = vld [vmem:[%s2252 + $0x40] sm:$0xff]
    %v2259 = vld [vmem:[%s2252 + $0x60] sm:$0xff]
    %v2260 = vld [vmem:[%s2252 + $0x68] sm:$0xff]
    %v2261 = vld [vmem:[%s2252 + $0x70] sm:$0xff]
    %v2262 = vld [vmem:[%s2252 + $0x90] sm:$0xff]
    %v2263 = vld [vmem:[%s2252 + $0x98] sm:$0xff]
    %v2264 = vld [vmem:[%s2252 + $0xa0] sm:$0xff]
    %v2265 = vld [vmem:[%s2252 + $0xc0] sm:$0xff]
    %v2266 = vld [vmem:[%s2252 + $0xc8] sm:$0xff]
    %v2267 = vld [vmem:[%s2252 + $0xd0] sm:$0xff]
    %v2268 = vld [vmem:[%s2252 + $0xf0] sm:$0xff]
    %v2269 = vld [vmem:[%s2252 + $0xf8] sm:$0xff]
    %v2270 = vld [vmem:[%s2252 + $0x100] sm:$0xff]
    %v2271 = vld [vmem:[%s2252 + $0x120] sm:$0xff]
    %v2272 = vld [vmem:[%s2252 + $0x128] sm:$0xff]
    %v2273 = vld [vmem:[%s2252 + $0x130] sm:$0xff]
    %v2274 = vld [vmem:[%s2252 + $0x150] sm:$0xff]
    %v2275 = vld [vmem:[%s2252 + $0x158] sm:$0xff]
    %v2276 = vld [vmem:[%s2252 + $0x160] sm:$0xff]
    %v2277 = vld [vmem:[%s2252 + $0x180] sm:$0xff]
    %v2278 = vld [vmem:[%s2252 + $0x188] sm:$0xff]
    %v2279 = vld [vmem:[%s2252 + $0x190] sm:$0xff]
    %v2280 = vld [vmem:[%s2252 + $0x1b0] sm:$0xff]
    %v2281 = vld [vmem:[%s2252 + $0x1b8] sm:$0xff]
    %v2282 = vld [vmem:[%s2252 + $0x1c0] sm:$0xff]
    %v2283 = vld [vmem:[%s2252 + $0x1e0] sm:$0xff]
    %v2284 = vld [vmem:[%s2252 + $0x1e8] sm:$0xff]
    %v2285 = vld [vmem:[%s2252 + $0x1f0] sm:$0xff]
    %v2286 = vld [vmem:[%s2252 + $0x210] sm:$0xff]
    %v2287 = vld [vmem:[%s2252 + $0x218] sm:$0xff]
    %v2288 = vld [vmem:[%s2252 + $0x220] sm:$0xff]
    %v2289 = vld [vmem:[%s2252 + $0x240] sm:$0xff]
    %v2290 = vld [vmem:[%s2252 + $0x248] sm:$0xff]
    %v2291 = vld [vmem:[%s2252 + $0x250] sm:$0xff]
    %v2292 = vld [vmem:[%s2252 + $0x270] sm:$0xff]
    %v2293 = vld [vmem:[%s2252 + $0x278] sm:$0xff]
    %v2294 = vld [vmem:[%s2252 + $0x280] sm:$0xff]
    %v2295 = vld [vmem:[%s2252 + $0x2a0] sm:$0xff]
    %v2296 = vld [vmem:[%s2252 + $0x2a8] sm:$0xff]
    %v2297 = vld [vmem:[%s2252 + $0x2b0] sm:$0xff]
    %v2298 = vld [vmem:[%s2252 + $0x2d0] sm:$0xff]
    %v2299 = vld [vmem:[%s2252 + $0x2d8] sm:$0xff]
    %v2300 = vld [vmem:[%s2252 + $0x2e0] sm:$0xff]
    %2301 = vmatprep.subr.mxu0 %v2254
    %2302 = vmatpush1.msra.mxu0 %v2253
    %2303 = vmatprep.subr.mxu0 %v2257
    %2304 = vmatpush1.msra.mxu0 %v2256
    %2305 = vmatprep.subr.mxu0 %v2260
    %2306 = vmatpush1.msra.mxu0 %v2259
    %2307 = vmatprep.subr.mxu0 %v2263
    %2308 = vmatpush1.msra.mxu0 %v2262
    %2309 = vmatprep.subr.mxu0 %v2266
    %2310 = vmatpush1.msra.mxu0 %v2265
    %2311 = vmatprep.subr.mxu0 %v2269
    %2312 = vmatpush1.msra.mxu0 %v2268
    %2313 = vmatprep.subr.mxu0 %v2272
    %2314 = vmatpush1.msra.mxu0 %v2271
    %2315 = vmatprep.subr.mxu0 %v2275
    %2316 = vmatpush1.msra.mxu0 %v2274
    %2317 = vmatprep.subr.mxu0 %v2278
    %2318 = vmatpush1.msra.mxu0 %v2277
    %2319 = vmatprep.subr.mxu0 %v2281
    %2320 = vmatpush1.msra.mxu0 %v2280
    %2321 = vmatprep.subr.mxu0 %v2284
    %2322 = vmatpush1.msra.mxu0 %v2283
    %2323 = vmatprep.subr.mxu0 %v2287
    %2324 = vmatpush1.msra.mxu0 %v2286
    %2325 = vmatprep.subr.mxu0 %v2290
    %2326 = vmatpush1.msra.mxu0 %v2289
    %2327 = vmatprep.subr.mxu0 %v2293
    %2328 = vmatpush1.msra.mxu0 %v2292
    %2329 = vmatprep.subr.mxu0 %v2296
    %2330 = vmatpush1.msra.mxu0 %v2295
    %2331 = vmatprep.subr.mxu0 %v2299
    %2332 = vmatpush1.msra.mxu0 %v2298
    %2333 = vmatprep.subr.mxu0 0.0
    %2334 = vmatpush1.msra.mxu0 0.0
    %2335 = vmatprep.subr.mxu0 0.0
    %2336 = vmatpush1.msra.mxu0 0.0
    %2337 = vmatprep.subr.mxu0 0.0
    %2338 = vmatpush1.msra.mxu0 0.0
    %2339 = vmatprep.subr.mxu0 0.0
    %2340 = vmatpush1.msra.mxu0 0.0
    %2341 = vmatprep.subr.mxu0 0.0
    %2342 = vmatpush1.msra.mxu0 0.0
    %2343 = vmatprep.subr.mxu0 0.0
    %2344 = vmatpush1.msra.mxu0 0.0
    %2345 = vmatprep.subr.mxu0 0.0
    %2346 = vmatpush1.msra.mxu0 0.0
    %2347 = vmatprep.subr.mxu0 0.0
    %2348 = vmatpush1.msra.mxu0 0.0
    %2349 = vmatprep.subr.mxu0 0.0
    %2350 = vmatpush1.msra.mxu0 0.0
    %2351 = vmatprep.subr.mxu0 0.0
    %2352 = vmatpush1.msra.mxu0 0.0
    %2353 = vmatprep.subr.mxu0 0.0
    %2354 = vmatpush1.msra.mxu0 0.0
    %2355 = vmatprep.subr.mxu0 0.0
    %2356 = vmatpush1.msra.mxu0 0.0
    %2357 = vmatprep.subr.mxu0 0.0
    %2358 = vmatpush1.msra.mxu0 0.0
    %2359 = vmatprep.subr.mxu0 0.0
    %2360 = vmatpush1.msra.mxu0 0.0
    %2361 = vmatprep.subr.mxu0 0.0
    %2362 = vmatpush1.msra.mxu0 0.0
    %2363 = vmatprep.subr.mxu0 0.0
    %2364 = vmatpush1.msra.mxu0 0.0
    %2365 = vmatprep.mubr.f32.mxu0 0.0
    %2366 = vmatmul.mubr.f32.gmra.mrb[0].mxu0 %v2250
    %v2367 = vpop.f32.mrb[0].mxu0
    %v2368 = vadd.f32 0.0, %v2367
    %v2369 = vpop.f32.mrb[0].mxu0
    %v2370 = vadd.f32 0.0, %v2369
    %2371 = vmatprep.mubr.f32.mxu0 0.0
    %2372 = vmatmul.mubr.f32.gmra.mrb[0].mxu0 %v2251
    %v2373 = vpop.f32.mrb[0].mxu0
    %v2374 = vadd.f32 0.0, %v2373
    %v2375 = vpop.f32.mrb[0].mxu0
    %v2376 = vadd.f32 0.0, %v2375
    %2377 = vdwg.mxu0
    %2378 = vmatprep.subr.mxu0 0.0
    %2379 = vmatpush1.msra.mxu0 %v2255
    %2380 = vmatprep.subr.mxu0 0.0
    %2381 = vmatpush1.msra.mxu0 %v2258
    %2382 = vmatprep.subr.mxu0 0.0
    %2383 = vmatpush1.msra.mxu0 %v2261
    %2384 = vmatprep.subr.mxu0 0.0
    %2385 = vmatpush1.msra.mxu0 %v2264
    %2386 = vmatprep.subr.mxu0 0.0
    %2387 = vmatpush1.msra.mxu0 %v2267
    %2388 = vmatprep.subr.mxu0 0.0
    %2389 = vmatpush1.msra.mxu0 %v2270
    %2390 = vmatprep.subr.mxu0 0.0
    %2391 = vmatpush1.msra.mxu0 %v2273
    %2392 = vmatprep.subr.mxu0 0.0
    %2393 = vmatpush1.msra.mxu0 %v2276
    %2394 = vmatprep.subr.mxu0 0.0
    %2395 = vmatpush1.msra.mxu0 %v2279
    %2396 = vmatprep.subr.mxu0 0.0
    %2397 = vmatpush1.msra.mxu0 %v2282
    %2398 = vmatprep.subr.mxu0 0.0
    %2399 = vmatpush1.msra.mxu0 %v2285
    %2400 = vmatprep.subr.mxu0 0.0
    %2401 = vmatpush1.msra.mxu0 %v2288
    %2402 = vmatprep.subr.mxu0 0.0
    %2403 = vmatpush1.msra.mxu0 %v2291
    %2404 = vmatprep.subr.mxu0 0.0
    %2405 = vmatpush1.msra.mxu0 %v2294
    %2406 = vmatprep.subr.mxu0 0.0
    %2407 = vmatpush1.msra.mxu0 %v2297
    %2408 = vmatprep.subr.mxu0 0.0
    %2409 = vmatpush1.msra.mxu0 %v2300
    %2410 = vmatprep.subr.mxu0 0.0
    %2411 = vmatpush1.msra.mxu0 0.0
    %2412 = vmatprep.subr.mxu0 0.0
    %2413 = vmatpush1.msra.mxu0 0.0
    %2414 = vmatprep.subr.mxu0 0.0
    %2415 = vmatpush1.msra.mxu0 0.0
    %2416 = vmatprep.subr.mxu0 0.0
    %2417 = vmatpush1.msra.mxu0 0.0
    %2418 = vmatprep.subr.mxu0 0.0
    %2419 = vmatpush1.msra.mxu0 0.0
    %2420 = vmatprep.subr.mxu0 0.0
    %2421 = vmatpush1.msra.mxu0 0.0
    %2422 = vmatprep.subr.mxu0 0.0
    %2423 = vmatpush1.msra.mxu0 0.0
    %2424 = vmatprep.subr.mxu0 0.0
    %2425 = vmatpush1.msra.mxu0 0.0
    %2426 = vmatprep.subr.mxu0 0.0
    %2427 = vmatpush1.msra.mxu0 0.0
    %2428 = vmatprep.subr.mxu0 0.0
    %2429 = vmatpush1.msra.mxu0 0.0
    %2430 = vmatprep.subr.mxu0 0.0
    %2431 = vmatpush1.msra.mxu0 0.0
    %2432 = vmatprep.subr.mxu0 0.0
    %2433 = vmatpush1.msra.mxu0 0.0
    %2434 = vmatprep.subr.mxu0 0.0
    %2435 = vmatpush1.msra.mxu0 0.0
    %2436 = vmatprep.subr.mxu0 0.0
    %2437 = vmatpush1.msra.mxu0 0.0
    %2438 = vmatprep.subr.mxu0 0.0
    %2439 = vmatpush1.msra.mxu0 0.0
    %2440 = vmatprep.subr.mxu0 0.0
    %2441 = vmatpush1.msra.mxu0 0.0
    %2442 = vmatprep.mubr.f32.mxu0 0.0
    %2443 = vmatmul.mubr.f32.gmra.mrb[0].mxu0 %v2250
    %v2444 = vpop.f32.mrb[0].mxu0
    %v2445 = vadd.f32 0.0, %v2444
    %v2446 = vpop.f32.mrb[0].mxu0
    %2447 = vmatprep.mubr.f32.mxu0 0.0
    %2448 = vmatmul.mubr.f32.gmra.mrb[0].mxu0 %v2251
    %v2449 = vpop.f32.mrb[0].mxu0
    %v2450 = vadd.f32 0.0, %v2449
    %v2451 = vpop.f32.mrb[0].mxu0
    %2452 = vdwg.mxu0
    %v2453 = vld [vmem:[%s9 + $0xb] sm:$0x1]
    %v2454 = vlaneseq
    %v2455 = vshrl.u32 %v2454, 7
    %v2456 = vsub.s32 0, %v2455
    %v2457 = vrot.slane %v2453, %v2456
    %v2458 = vadd.f32 %v2368, %v2457
    %v2459 = vadd.f32 %v2374, %v2457
    %v2460 = vld [vmem:[%s9 + $0xc] sm:$0x1]
    %v2461 = vlaneseq
    %v2462 = vshrl.u32 %v2461, 7
    %v2463 = vsub.s32 0, %v2462
    %v2464 = vrot.slane %v2460, %v2463
    %v2465 = vadd.f32 %v2370, %v2464
    %v2466 = vadd.f32 %v2376, %v2464
    %v2467 = vld [vmem:[%s9 + $0xd] sm:$0x1]
    %v2468 = vlaneseq
    %v2469 = vshrl.u32 %v2468, 7
    %v2470 = vsub.s32 0, %v2469
    %v2471 = vrot.slane %v2467, %v2470
    %v2472 = vadd.f32 %v2445, %v2471
    %v2473 = vadd.f32 %v2450, %v2471
    %v2475 = vsel %vm1039, %v2458, 0
    %v2478 = vsel %vm1039, %v2459, 0
    %v2481 = vsel %vm1039, %v2465, 0
    %v2484 = vsel %vm1039, %v2466, 0
    %2486 = vmatprep.subr.mxu0 0.0
    %2487 = vmatpush1.xpose.msra.mxu0 %v2481
    %2488 = vmatprep.subr.mxu0 0.0
    %2489 = vmatpush1.xpose.msra.mxu0 %v2484
    %2490 = vmatprep.subr.mxu0 0.0
    %2491 = vmatpush1.xpose.msra.mxu0 0.0
    %2492 = vmatprep.subr.mxu0 0.0
    %2493 = vmatpush1.xpose.msra.mxu0 0.0
    %2494 = vmatprep.subr.mxu0 0.0
    %2495 = vmatpush1.xpose.msra.mxu0 0.0
    %2496 = vmatprep.subr.mxu0 0.0
    %2497 = vmatpush1.xpose.msra.mxu0 0.0
    %2498 = vmatprep.subr.mxu0 0.0
    %2499 = vmatpush1.xpose.msra.mxu0 0.0
    %2500 = vmatprep.subr.mxu0 0.0
    %2501 = vmatpush1.xpose.msra.mxu0 0.0
    %2502 = vmatprep.subr.mxu0 0.0
    %2503 = vmatpush1.xpose.msra.mxu0 0.0
    %2504 = vmatprep.subr.mxu0 0.0
    %2505 = vmatpush1.xpose.msra.mxu0 0.0
    %2506 = vmatprep.subr.mxu0 0.0
    %2507 = vmatpush1.xpose.msra.mxu0 0.0
    %2508 = vmatprep.subr.mxu0 0.0
    %2509 = vmatpush1.xpose.msra.mxu0 0.0
    %2510 = vmatprep.subr.mxu0 0.0
    %2511 = vmatpush1.xpose.msra.mxu0 0.0
    %2512 = vmatprep.subr.mxu0 0.0
    %2513 = vmatpush1.xpose.msra.mxu0 0.0
    %2514 = vmatprep.subr.mxu0 0.0
    %2515 = vmatpush1.xpose.msra.mxu0 0.0
    %2516 = vmatprep.subr.mxu0 0.0
    %2517 = vmatpush1.xpose.msra.mxu0 0.0
    %2518 = vmatprep.subr.mxu0 0.0
    %2519 = vmatpush1.xpose.msra.mxu0 0.0
    %2520 = vmatprep.subr.mxu0 0.0
    %2521 = vmatpush1.xpose.msra.mxu0 0.0
    %2522 = vmatprep.subr.mxu0 0.0
    %2523 = vmatpush1.xpose.msra.mxu0 0.0
    %2524 = vmatprep.subr.mxu0 0.0
    %2525 = vmatpush1.xpose.msra.mxu0 0.0
    %2526 = vmatprep.subr.mxu0 0.0
    %2527 = vmatpush1.xpose.msra.mxu0 0.0
    %2528 = vmatprep.subr.mxu0 0.0
    %2529 = vmatpush1.xpose.msra.mxu0 0.0
    %2530 = vmatprep.subr.mxu0 0.0
    %2531 = vmatpush1.xpose.msra.mxu0 0.0
    %2532 = vmatprep.subr.mxu0 0.0
    %2533 = vmatpush1.xpose.msra.mxu0 0.0
    %2534 = vmatprep.subr.mxu0 0.0
    %2535 = vmatpush1.xpose.msra.mxu0 0.0
    %2536 = vmatprep.subr.mxu0 0.0
    %2537 = vmatpush1.xpose.msra.mxu0 0.0
    %2538 = vmatprep.subr.mxu0 0.0
    %2539 = vmatpush1.xpose.msra.mxu0 0.0
    %2540 = vmatprep.subr.mxu0 0.0
    %2541 = vmatpush1.xpose.msra.mxu0 0.0
    %2542 = vmatprep.subr.mxu0 0.0
    %2543 = vmatpush1.xpose.msra.mxu0 0.0
    %2544 = vmatprep.subr.mxu0 0.0
    %2545 = vmatpush1.xpose.msra.mxu0 0.0
    %2546 = vmatprep.subr.mxu0 0.0
    %2547 = vmatpush1.xpose.msra.mxu0 0.0
    %2548 = vmatprep.subr.mxu0 0.0
    %2549 = vmatpush1.xpose.msra.mxu0 0.0
    %2550 = vmatprep.mubr.f32.mxu0 0.0
    %2551 = vmatmul.mubr.f32.gmra.mrb[0].mxu0 %v2475
    %v2552 = vpop.f32.mrb[0].mxu0
    %v2553 = vadd.f32 0.0, %v2552
    %v2554 = vpop.f32.mrb[0].mxu0
    %2555 = vmatprep.mubr.f32.mxu0 0.0
    %2556 = vmatmul.mubr.f32.gmra.mrb[0].mxu0 %v2478
    %v2557 = vpop.f32.mrb[0].mxu0
    %v2558 = vadd.f32 0.0, %v2557
    %v2559 = vpop.f32.mrb[0].mxu0
    %2560 = vdwg.mxu0
    %v2561 = vmul.f32 %v2553, 0.17677669
    %v2562 = vmul.f32 %v2558, 0.17677669
    %v2563 = vadd.f32 %v2561, %v816
    %v2564 = vadd.f32 %v2562, %v817
    %v2565 = vsel %vm358, %v2563, -inf
    %2566 = vmax.xlane.f32.xlu0 %v2565
    %v2567 = vpop.xlane.xlu0 %2566
    %v2568 = vsel %vm358, %v2564, -inf
    %2569 = vmax.xlane.f32.xlu0 %v2568
    %v2570 = vpop.xlane.xlu0 %2569
    %v2571 = vsub.f32 %v2563, %v2567
    %v2572 = vsub.f32 %v2564, %v2570
    %v2573 = vmul.f32 %v2571, 1.442695
    %v2574 = vpow.pop %v2573
    %v2575 = vmul.f32 %v2572, 1.442695
    %v2576 = vpow.pop %v2575
    %v2577 = vsel %vm358, %v2574, 0.0
    %2578 = vadd.xlane.f32.xlu0 %v2577
    %v2579 = vpop.xlane.xlu0 %2578
    %v2580 = vsel %vm358, %v2576, 0.0
    %2581 = vadd.xlane.f32.xlu0 %v2580
    %v2582 = vpop.xlane.xlu0 %2581
    %v2583 = vrcp.pop %v2579
    %v2584 = vrcp.pop %v2582
    %v2585 = vmul.f32 %v2574, %v2583
    %v2586 = vmul.f32 %v2576, %v2584
    %v2588 = vsel %vm358, %v2585, 0
    %v2591 = vsel %vm358, %v2586, 0
    %2593 = vmatprep.subr.mxu0 0.0
    %2594 = vmatpush1.msra.mxu0 %v2472
    %2595 = vmatprep.subr.mxu0 0.0
    %2596 = vmatpush1.msra.mxu0 %v2473
    %2597 = vmatprep.subr.mxu0 0.0
    %2598 = vmatpush1.msra.mxu0 0.0
    %2599 = vmatprep.subr.mxu0 0.0
    %2600 = vmatpush1.msra.mxu0 0.0
    %2601 = vmatprep.subr.mxu0 0.0
    %2602 = vmatpush1.msra.mxu0 0.0
    %2603 = vmatprep.subr.mxu0 0.0
    %2604 = vmatpush1.msra.mxu0 0.0
    %2605 = vmatprep.subr.mxu0 0.0
    %2606 = vmatpush1.msra.mxu0 0.0
    %2607 = vmatprep.subr.mxu0 0.0
    %2608 = vmatpush1.msra.mxu0 0.0
    %2609 = vmatprep.subr.mxu0 0.0
    %2610 = vmatpush1.msra.mxu0 0.0
    %2611 = vmatprep.subr.mxu0 0.0
    %2612 = vmatpush1.msra.mxu0 0.0
    %2613 = vmatprep.subr.mxu0 0.0
    %2614 = vmatpush1.msra.mxu0 0.0
    %2615 = vmatprep.subr.mxu0 0.0
    %2616 = vmatpush1.msra.mxu0 0.0
    %2617 = vmatprep.subr.mxu0 0.0
    %2618 = vmatpush1.msra.mxu0 0.0
    %2619 = vmatprep.subr.mxu0 0.0
    %2620 = vmatpush1.msra.mxu0 0.0
    %2621 = vmatprep.subr.mxu0 0.0
    %2622 = vmatpush1.msra.mxu0 0.0
    %2623 = vmatprep.subr.mxu0 0.0
    %2624 = vmatpush1.msra.mxu0 0.0
    %2625 = vmatprep.subr.mxu0 0.0
    %2626 = vmatpush1.msra.mxu0 0.0
    %2627 = vmatprep.subr.mxu0 0.0
    %2628 = vmatpush1.msra.mxu0 0.0
    %2629 = vmatprep.subr.mxu0 0.0
    %2630 = vmatpush1.msra.mxu0 0.0
    %2631 = vmatprep.subr.mxu0 0.0
    %2632 = vmatpush1.msra.mxu0 0.0
    %2633 = vmatprep.subr.mxu0 0.0
    %2634 = vmatpush1.msra.mxu0 0.0
    %2635 = vmatprep.subr.mxu0 0.0
    %2636 = vmatpush1.msra.mxu0 0.0
    %2637 = vmatprep.subr.mxu0 0.0
    %2638 = vmatpush1.msra.mxu0 0.0
    %2639 = vmatprep.subr.mxu0 0.0
    %2640 = vmatpush1.msra.mxu0 0.0
    %2641 = vmatprep.subr.mxu0 0.0
    %2642 = vmatpush1.msra.mxu0 0.0
    %2643 = vmatprep.subr.mxu0 0.0
    %2644 = vmatpush1.msra.mxu0 0.0
    %2645 = vmatprep.subr.mxu0 0.0
    %2646 = vmatpush1.msra.mxu0 0.0
    %2647 = vmatprep.subr.mxu0 0.0
    %2648 = vmatpush1.msra.mxu0 0.0
    %2649 = vmatprep.subr.mxu0 0.0
    %2650 = vmatpush1.msra.mxu0 0.0
    %2651 = vmatprep.subr.mxu0 0.0
    %2652 = vmatpush1.msra.mxu0 0.0
    %2653 = vmatprep.subr.mxu0 0.0
    %2654 = vmatpush1.msra.mxu0 0.0
    %2655 = vmatprep.subr.mxu0 0.0
    %2656 = vmatpush1.msra.mxu0 0.0
    %2657 = vmatprep.mubr.f32.mxu0 0.0
    %2658 = vmatmul.mubr.f32.gmra.mrb[0].mxu0 %v2588
    %v2659 = vpop.f32.mrb[0].mxu0
    %v2660 = vadd.f32 0.0, %v2659
    %v2661 = vpop.f32.mrb[0].mxu0
    %2662 = vmatprep.mubr.f32.mxu0 0.0
    %2663 = vmatmul.mubr.f32.gmra.mrb[0].mxu0 %v2591
    %v2664 = vpop.f32.mrb[0].mxu0
    %v2665 = vadd.f32 0.0, %v2664
    %v2666 = vpop.f32.mrb[0].mxu0
    %2667 = vdwg.mxu0
    %2668 = vst.msk [vmem:[#allocation2] sm:$0xff] %vm1039, %v2660
    %2669 = vst.msk [vmem:[#allocation2 + $0x8] sm:$0xff] %vm1039, %v2665
    %2670 = vrot.lane.b32.xlu0 %v2458, 96
    %v2671 = vpop.permute.xlu0 %2670
    %2672 = vrot.lane.b32.xlu0 %v2459, 96
    %v2673 = vpop.permute.xlu0 %2672
    %2674 = vrot.lane.b32.xlu0 %v2465, 96
    %v2675 = vpop.permute.xlu0 %2674
    %2676 = vrot.lane.b32.xlu0 %v2466, 96
    %v2677 = vpop.permute.xlu0 %2676
    %v2678 = vsel %vm1039, %v2671, 0
    %v2680 = vsel %vm1039, %v2673, 0
    %v2682 = vsel %vm1039, %v2675, 0
    %v2684 = vsel %vm1039, %v2677, 0
    %2686 = vmatprep.subr.mxu0 0.0
    %2687 = vmatpush1.xpose.msra.mxu0 %v2682
    %2688 = vmatprep.subr.mxu0 0.0
    %2689 = vmatpush1.xpose.msra.mxu0 %v2684
    %2690 = vmatprep.subr.mxu0 0.0
    %2691 = vmatpush1.xpose.msra.mxu0 0.0
    %2692 = vmatprep.subr.mxu0 0.0
    %2693 = vmatpush1.xpose.msra.mxu0 0.0
    %2694 = vmatprep.subr.mxu0 0.0
    %2695 = vmatpush1.xpose.msra.mxu0 0.0
    %2696 = vmatprep.subr.mxu0 0.0
    %2697 = vmatpush1.xpose.msra.mxu0 0.0
    %2698 = vmatprep.subr.mxu0 0.0
    %2699 = vmatpush1.xpose.msra.mxu0 0.0
    %2700 = vmatprep.subr.mxu0 0.0
    %2701 = vmatpush1.xpose.msra.mxu0 0.0
    %2702 = vmatprep.subr.mxu0 0.0
    %2703 = vmatpush1.xpose.msra.mxu0 0.0
    %2704 = vmatprep.subr.mxu0 0.0
    %2705 = vmatpush1.xpose.msra.mxu0 0.0
    %2706 = vmatprep.subr.mxu0 0.0
    %2707 = vmatpush1.xpose.msra.mxu0 0.0
    %2708 = vmatprep.subr.mxu0 0.0
    %2709 = vmatpush1.xpose.msra.mxu0 0.0
    %2710 = vmatprep.subr.mxu0 0.0
    %2711 = vmatpush1.xpose.msra.mxu0 0.0
    %2712 = vmatprep.subr.mxu0 0.0
    %2713 = vmatpush1.xpose.msra.mxu0 0.0
    %2714 = vmatprep.subr.mxu0 0.0
    %2715 = vmatpush1.xpose.msra.mxu0 0.0
    %2716 = vmatprep.subr.mxu0 0.0
    %2717 = vmatpush1.xpose.msra.mxu0 0.0
    %2718 = vmatprep.subr.mxu0 0.0
    %2719 = vmatpush1.xpose.msra.mxu0 0.0
    %2720 = vmatprep.subr.mxu0 0.0
    %2721 = vmatpush1.xpose.msra.mxu0 0.0
    %2722 = vmatprep.subr.mxu0 0.0
    %2723 = vmatpush1.xpose.msra.mxu0 0.0
    %2724 = vmatprep.subr.mxu0 0.0
    %2725 = vmatpush1.xpose.msra.mxu0 0.0
    %2726 = vmatprep.subr.mxu0 0.0
    %2727 = vmatpush1.xpose.msra.mxu0 0.0
    %2728 = vmatprep.subr.mxu0 0.0
    %2729 = vmatpush1.xpose.msra.mxu0 0.0
    %2730 = vmatprep.subr.mxu0 0.0
    %2731 = vmatpush1.xpose.msra.mxu0 0.0
    %2732 = vmatprep.subr.mxu0 0.0
    %2733 = vmatpush1.xpose.msra.mxu0 0.0
    %2734 = vmatprep.subr.mxu0 0.0
    %2735 = vmatpush1.xpose.msra.mxu0 0.0
    %2736 = vmatprep.subr.mxu0 0.0
    %2737 = vmatpush1.xpose.msra.mxu0 0.0
    %2738 = vmatprep.subr.mxu0 0.0
    %2739 = vmatpush1.xpose.msra.mxu0 0.0
    %2740 = vmatprep.subr.mxu0 0.0
    %2741 = vmatpush1.xpose.msra.mxu0 0.0
    %2742 = vmatprep.subr.mxu0 0.0
    %2743 = vmatpush1.xpose.msra.mxu0 0.0
    %2744 = vmatprep.subr.mxu0 0.0
    %2745 = vmatpush1.xpose.msra.mxu0 0.0
    %2746 = vmatprep.subr.mxu0 0.0
    %2747 = vmatpush1.xpose.msra.mxu0 0.0
    %2748 = vmatprep.subr.mxu0 0.0
    %2749 = vmatpush1.xpose.msra.mxu0 0.0
    %2750 = vmatprep.mubr.f32.mxu0 0.0
    %2751 = vmatmul.mubr.f32.gmra.mrb[0].mxu0 %v2678
    %v2752 = vpop.f32.mrb[0].mxu0
    %v2753 = vadd.f32 0.0, %v2752
    %v2754 = vpop.f32.mrb[0].mxu0
    %2755 = vmatprep.mubr.f32.mxu0 0.0
    %2756 = vmatmul.mubr.f32.gmra.mrb[0].mxu0 %v2680
    %v2757 = vpop.f32.mrb[0].mxu0
    %v2758 = vadd.f32 0.0, %v2757
    %v2759 = vpop.f32.mrb[0].mxu0
    %2760 = vdwg.mxu0
    %v2761 = vmul.f32 %v2753, 0.17677669
    %v2762 = vmul.f32 %v2758, 0.17677669
    %v2763 = vadd.f32 %v2761, %v816
    %v2764 = vadd.f32 %v2762, %v817
    %v2765 = vsel %vm358, %v2763, -inf
    %2766 = vmax.xlane.f32.xlu0 %v2765
    %v2767 = vpop.xlane.xlu0 %2766
    %v2768 = vsel %vm358, %v2764, -inf
    %2769 = vmax.xlane.f32.xlu0 %v2768
    %v2770 = vpop.xlane.xlu0 %2769
    %v2771 = vsub.f32 %v2763, %v2767
    %v2772 = vsub.f32 %v2764, %v2770
    %v2773 = vmul.f32 %v2771, 1.442695
    %v2774 = vpow.pop %v2773
    %v2775 = vmul.f32 %v2772, 1.442695
    %v2776 = vpow.pop %v2775
    %v2777 = vsel %vm358, %v2774, 0.0
    %2778 = vadd.xlane.f32.xlu0 %v2777
    %v2779 = vpop.xlane.xlu0 %2778
    %v2780 = vsel %vm358, %v2776, 0.0
    %2781 = vadd.xlane.f32.xlu0 %v2780
    %v2782 = vpop.xlane.xlu0 %2781
    %v2783 = vrcp.pop %v2779
    %v2784 = vrcp.pop %v2782
    %v2785 = vmul.f32 %v2774, %v2783
    %v2786 = vmul.f32 %v2776, %v2784
    %2789 = vrot.lane.b32.xlu0 %v2472, 96
    %v2790 = vpop.permute.xlu0 %2789
    %2791 = vrot.lane.b32.xlu0 %v2473, 96
    %v2792 = vpop.permute.xlu0 %2791
    %v2796 = vsel %vm358, %v2785, 0
    %v2799 = vsel %vm358, %v2786, 0
    %2801 = vmatprep.subr.mxu0 0.0
    %2802 = vmatpush1.msra.mxu0 %v2790
    %2803 = vmatprep.subr.mxu0 0.0
    %2804 = vmatpush1.msra.mxu0 %v2792
    %2805 = vmatprep.subr.mxu0 0.0
    %2806 = vmatpush1.msra.mxu0 0.0
    %2807 = vmatprep.subr.mxu0 0.0
    %2808 = vmatpush1.msra.mxu0 0.0
    %2809 = vmatprep.subr.mxu0 0.0
    %2810 = vmatpush1.msra.mxu0 0.0
    %2811 = vmatprep.subr.mxu0 0.0
    %2812 = vmatpush1.msra.mxu0 0.0
    %2813 = vmatprep.subr.mxu0 0.0
    %2814 = vmatpush1.msra.mxu0 0.0
    %2815 = vmatprep.subr.mxu0 0.0
    %2816 = vmatpush1.msra.mxu0 0.0
    %2817 = vmatprep.subr.mxu0 0.0
    %2818 = vmatpush1.msra.mxu0 0.0
    %2819 = vmatprep.subr.mxu0 0.0
    %2820 = vmatpush1.msra.mxu0 0.0
    %2821 = vmatprep.subr.mxu0 0.0
    %2822 = vmatpush1.msra.mxu0 0.0
    %2823 = vmatprep.subr.mxu0 0.0
    %2824 = vmatpush1.msra.mxu0 0.0
    %2825 = vmatprep.subr.mxu0 0.0
    %2826 = vmatpush1.msra.mxu0 0.0
    %2827 = vmatprep.subr.mxu0 0.0
    %2828 = vmatpush1.msra.mxu0 0.0
    %2829 = vmatprep.subr.mxu0 0.0
    %2830 = vmatpush1.msra.mxu0 0.0
    %2831 = vmatprep.subr.mxu0 0.0
    %2832 = vmatpush1.msra.mxu0 0.0
    %2833 = vmatprep.subr.mxu0 0.0
    %2834 = vmatpush1.msra.mxu0 0.0
    %2835 = vmatprep.subr.mxu0 0.0
    %2836 = vmatpush1.msra.mxu0 0.0
    %2837 = vmatprep.subr.mxu0 0.0
    %2838 = vmatpush1.msra.mxu0 0.0
    %2839 = vmatprep.subr.mxu0 0.0
    %2840 = vmatpush1.msra.mxu0 0.0
    %2841 = vmatprep.subr.mxu0 0.0
    %2842 = vmatpush1.msra.mxu0 0.0
    %2843 = vmatprep.subr.mxu0 0.0
    %2844 = vmatpush1.msra.mxu0 0.0
    %2845 = vmatprep.subr.mxu0 0.0
    %2846 = vmatpush1.msra.mxu0 0.0
    %2847 = vmatprep.subr.mxu0 0.0
    %2848 = vmatpush1.msra.mxu0 0.0
    %2849 = vmatprep.subr.mxu0 0.0
    %2850 = vmatpush1.msra.mxu0 0.0
    %2851 = vmatprep.subr.mxu0 0.0
    %2852 = vmatpush1.msra.mxu0 0.0
    %2853 = vmatprep.subr.mxu0 0.0
    %2854 = vmatpush1.msra.mxu0 0.0
    %2855 = vmatprep.subr.mxu0 0.0
    %2856 = vmatpush1.msra.mxu0 0.0
    %2857 = vmatprep.subr.mxu0 0.0
    %2858 = vmatpush1.msra.mxu0 0.0
    %2859 = vmatprep.subr.mxu0 0.0
    %2860 = vmatpush1.msra.mxu0 0.0
    %2861 = vmatprep.subr.mxu0 0.0
    %2862 = vmatpush1.msra.mxu0 0.0
    %2863 = vmatprep.subr.mxu0 0.0
    %2864 = vmatpush1.msra.mxu0 0.0
    %2865 = vmatprep.mubr.f32.mxu0 0.0
    %2866 = vmatmul.mubr.f32.gmra.mrb[0].mxu0 %v2796
    %v2867 = vpop.f32.mrb[0].mxu0
    %v2868 = vadd.f32 0.0, %v2867
    %v2869 = vpop.f32.mrb[0].mxu0
    %2870 = vmatprep.mubr.f32.mxu0 0.0
    %2871 = vmatmul.mubr.f32.gmra.mrb[0].mxu0 %v2799
    %v2872 = vpop.f32.mrb[0].mxu0
    %v2873 = vadd.f32 0.0, %v2872
    %v2874 = vpop.f32.mrb[0].mxu0
    %2875 = vdwg.mxu0
    %2878 = vrot.lane.b32.xlu0 %v2868, 32
    %v2879 = vpop.permute.xlu0 %2878
    %2880 = vrot.lane.b32.xlu0 %v2873, 32
    %v2881 = vpop.permute.xlu0 %2880
    %2884 = vst.msk [vmem:[#allocation2] sm:$0xff] %vm1450, %v2879
    %2885 = vst.msk [vmem:[#allocation2 + $0x8] sm:$0xff] %vm1450, %v2881
    %2886 = vrot.lane.b32.xlu0 %v2458, 64
    %v2887 = vpop.permute.xlu0 %2886
    %2888 = vrot.lane.b32.xlu0 %v2459, 64
    %v2889 = vpop.permute.xlu0 %2888
    %2890 = vrot.lane.b32.xlu0 %v2465, 64
    %v2891 = vpop.permute.xlu0 %2890
    %2892 = vrot.lane.b32.xlu0 %v2466, 64
    %v2893 = vpop.permute.xlu0 %2892
    %v2894 = vsel %vm1039, %v2887, 0
    %v2896 = vsel %vm1039, %v2889, 0
    %v2898 = vsel %vm1039, %v2891, 0
    %v2900 = vsel %vm1039, %v2893, 0
    %2902 = vmatprep.subr.mxu0 0.0
    %2903 = vmatpush1.xpose.msra.mxu0 %v2898
    %2904 = vmatprep.subr.mxu0 0.0
    %2905 = vmatpush1.xpose.msra.mxu0 %v2900
    %2906 = vmatprep.subr.mxu0 0.0
    %2907 = vmatpush1.xpose.msra.mxu0 0.0
    %2908 = vmatprep.subr.mxu0 0.0
    %2909 = vmatpush1.xpose.msra.mxu0 0.0
    %2910 = vmatprep.subr.mxu0 0.0
    %2911 = vmatpush1.xpose.msra.mxu0 0.0
    %2912 = vmatprep.subr.mxu0 0.0
    %2913 = vmatpush1.xpose.msra.mxu0 0.0
    %2914 = vmatprep.subr.mxu0 0.0
    %2915 = vmatpush1.xpose.msra.mxu0 0.0
    %2916 = vmatprep.subr.mxu0 0.0
    %2917 = vmatpush1.xpose.msra.mxu0 0.0
    %2918 = vmatprep.subr.mxu0 0.0
    %2919 = vmatpush1.xpose.msra.mxu0 0.0
    %2920 = vmatprep.subr.mxu0 0.0
    %2921 = vmatpush1.xpose.msra.mxu0 0.0
    %2922 = vmatprep.subr.mxu0 0.0
    %2923 = vmatpush1.xpose.msra.mxu0 0.0
    %2924 = vmatprep.subr.mxu0 0.0
    %2925 = vmatpush1.xpose.msra.mxu0 0.0
    %2926 = vmatprep.subr.mxu0 0.0
    %2927 = vmatpush1.xpose.msra.mxu0 0.0
    %2928 = vmatprep.subr.mxu0 0.0
    %2929 = vmatpush1.xpose.msra.mxu0 0.0
    %2930 = vmatprep.subr.mxu0 0.0
    %2931 = vmatpush1.xpose.msra.mxu0 0.0
    %2932 = vmatprep.subr.mxu0 0.0
    %2933 = vmatpush1.xpose.msra.mxu0 0.0
    %2934 = vmatprep.subr.mxu0 0.0
    %2935 = vmatpush1.xpose.msra.mxu0 0.0
    %2936 = vmatprep.subr.mxu0 0.0
    %2937 = vmatpush1.xpose.msra.mxu0 0.0
    %2938 = vmatprep.subr.mxu0 0.0
    %2939 = vmatpush1.xpose.msra.mxu0 0.0
    %2940 = vmatprep.subr.mxu0 0.0
    %2941 = vmatpush1.xpose.msra.mxu0 0.0
    %2942 = vmatprep.subr.mxu0 0.0
    %2943 = vmatpush1.xpose.msra.mxu0 0.0
    %2944 = vmatprep.subr.mxu0 0.0
    %2945 = vmatpush1.xpose.msra.mxu0 0.0
    %2946 = vmatprep.subr.mxu0 0.0
    %2947 = vmatpush1.xpose.msra.mxu0 0.0
    %2948 = vmatprep.subr.mxu0 0.0
    %2949 = vmatpush1.xpose.msra.mxu0 0.0
    %2950 = vmatprep.subr.mxu0 0.0
    %2951 = vmatpush1.xpose.msra.mxu0 0.0
    %2952 = vmatprep.subr.mxu0 0.0
    %2953 = vmatpush1.xpose.msra.mxu0 0.0
    %2954 = vmatprep.subr.mxu0 0.0
    %2955 = vmatpush1.xpose.msra.mxu0 0.0
    %2956 = vmatprep.subr.mxu0 0.0
    %2957 = vmatpush1.xpose.msra.mxu0 0.0
    %2958 = vmatprep.subr.mxu0 0.0
    %2959 = vmatpush1.xpose.msra.mxu0 0.0
    %2960 = vmatprep.subr.mxu0 0.0
    %2961 = vmatpush1.xpose.msra.mxu0 0.0
    %2962 = vmatprep.subr.mxu0 0.0
    %2963 = vmatpush1.xpose.msra.mxu0 0.0
    %2964 = vmatprep.subr.mxu0 0.0
    %2965 = vmatpush1.xpose.msra.mxu0 0.0
    %2966 = vmatprep.mubr.f32.mxu0 0.0
    %2967 = vmatmul.mubr.f32.gmra.mrb[0].mxu0 %v2894
    %v2968 = vpop.f32.mrb[0].mxu0
    %v2969 = vadd.f32 0.0, %v2968
    %v2970 = vpop.f32.mrb[0].mxu0
    %2971 = vmatprep.mubr.f32.mxu0 0.0
    %2972 = vmatmul.mubr.f32.gmra.mrb[0].mxu0 %v2896
    %v2973 = vpop.f32.mrb[0].mxu0
    %v2974 = vadd.f32 0.0, %v2973
    %v2975 = vpop.f32.mrb[0].mxu0
    %2976 = vdwg.mxu0
    %v2977 = vmul.f32 %v2969, 0.17677669
    %v2978 = vmul.f32 %v2974, 0.17677669
    %v2979 = vadd.f32 %v2977, %v816
    %v2980 = vadd.f32 %v2978, %v817
    %v2981 = vsel %vm358, %v2979, -inf
    %2982 = vmax.xlane.f32.xlu0 %v2981
    %v2983 = vpop.xlane.xlu0 %2982
    %v2984 = vsel %vm358, %v2980, -inf
    %2985 = vmax.xlane.f32.xlu0 %v2984
    %v2986 = vpop.xlane.xlu0 %2985
    %v2987 = vsub.f32 %v2979, %v2983
    %v2988 = vsub.f32 %v2980, %v2986
    %v2989 = vmul.f32 %v2987, 1.442695
    %v2990 = vpow.pop %v2989
    %v2991 = vmul.f32 %v2988, 1.442695
    %v2992 = vpow.pop %v2991
    %v2993 = vsel %vm358, %v2990, 0.0
    %2994 = vadd.xlane.f32.xlu0 %v2993
    %v2995 = vpop.xlane.xlu0 %2994
    %v2996 = vsel %vm358, %v2992, 0.0
    %2997 = vadd.xlane.f32.xlu0 %v2996
    %v2998 = vpop.xlane.xlu0 %2997
    %v2999 = vrcp.pop %v2995
    %v3000 = vrcp.pop %v2998
    %v3001 = vmul.f32 %v2990, %v2999
    %v3002 = vmul.f32 %v2992, %v3000
    %3003 = vrot.lane.b32.xlu0 %v2472, 64
    %v3004 = vpop.permute.xlu0 %3003
    %3005 = vrot.lane.b32.xlu0 %v2473, 64
    %v3006 = vpop.permute.xlu0 %3005
    %v3010 = vsel %vm358, %v3001, 0
    %v3013 = vsel %vm358, %v3002, 0
    %3015 = vmatprep.subr.mxu0 0.0
    %3016 = vmatpush1.msra.mxu0 %v3004
    %3017 = vmatprep.subr.mxu0 0.0
    %3018 = vmatpush1.msra.mxu0 %v3006
    %3019 = vmatprep.subr.mxu0 0.0
    %3020 = vmatpush1.msra.mxu0 0.0
    %3021 = vmatprep.subr.mxu0 0.0
    %3022 = vmatpush1.msra.mxu0 0.0
    %3023 = vmatprep.subr.mxu0 0.0
    %3024 = vmatpush1.msra.mxu0 0.0
    %3025 = vmatprep.subr.mxu0 0.0
    %3026 = vmatpush1.msra.mxu0 0.0
    %3027 = vmatprep.subr.mxu0 0.0
    %3028 = vmatpush1.msra.mxu0 0.0
    %3029 = vmatprep.subr.mxu0 0.0
    %3030 = vmatpush1.msra.mxu0 0.0
    %3031 = vmatprep.subr.mxu0 0.0
    %3032 = vmatpush1.msra.mxu0 0.0
    %3033 = vmatprep.subr.mxu0 0.0
    %3034 = vmatpush1.msra.mxu0 0.0
    %3035 = vmatprep.subr.mxu0 0.0
    %3036 = vmatpush1.msra.mxu0 0.0
    %3037 = vmatprep.subr.mxu0 0.0
    %3038 = vmatpush1.msra.mxu0 0.0
    %3039 = vmatprep.subr.mxu0 0.0
    %3040 = vmatpush1.msra.mxu0 0.0
    %3041 = vmatprep.subr.mxu0 0.0
    %3042 = vmatpush1.msra.mxu0 0.0
    %3043 = vmatprep.subr.mxu0 0.0
    %3044 = vmatpush1.msra.mxu0 0.0
    %3045 = vmatprep.subr.mxu0 0.0
    %3046 = vmatpush1.msra.mxu0 0.0
    %3047 = vmatprep.subr.mxu0 0.0
    %3048 = vmatpush1.msra.mxu0 0.0
    %3049 = vmatprep.subr.mxu0 0.0
    %3050 = vmatpush1.msra.mxu0 0.0
    %3051 = vmatprep.subr.mxu0 0.0
    %3052 = vmatpush1.msra.mxu0 0.0
    %3053 = vmatprep.subr.mxu0 0.0
    %3054 = vmatpush1.msra.mxu0 0.0
    %3055 = vmatprep.subr.mxu0 0.0
    %3056 = vmatpush1.msra.mxu0 0.0
    %3057 = vmatprep.subr.mxu0 0.0
    %3058 = vmatpush1.msra.mxu0 0.0
    %3059 = vmatprep.subr.mxu0 0.0
    %3060 = vmatpush1.msra.mxu0 0.0
    %3061 = vmatprep.subr.mxu0 0.0
    %3062 = vmatpush1.msra.mxu0 0.0
    %3063 = vmatprep.subr.mxu0 0.0
    %3064 = vmatpush1.msra.mxu0 0.0
    %3065 = vmatprep.subr.mxu0 0.0
    %3066 = vmatpush1.msra.mxu0 0.0
    %3067 = vmatprep.subr.mxu0 0.0
    %3068 = vmatpush1.msra.mxu0 0.0
    %3069 = vmatprep.subr.mxu0 0.0
    %3070 = vmatpush1.msra.mxu0 0.0
    %3071 = vmatprep.subr.mxu0 0.0
    %3072 = vmatpush1.msra.mxu0 0.0
    %3073 = vmatprep.subr.mxu0 0.0
    %3074 = vmatpush1.msra.mxu0 0.0
    %3075 = vmatprep.subr.mxu0 0.0
    %3076 = vmatpush1.msra.mxu0 0.0
    %3077 = vmatprep.subr.mxu0 0.0
    %3078 = vmatpush1.msra.mxu0 0.0
    %3079 = vmatprep.mubr.f32.mxu0 0.0
    %3080 = vmatmul.mubr.f32.gmra.mrb[0].mxu0 %v3010
    %v3081 = vpop.f32.mrb[0].mxu0
    %v3082 = vadd.f32 0.0, %v3081
    %v3083 = vpop.f32.mrb[0].mxu0
    %3084 = vmatprep.mubr.f32.mxu0 0.0
    %3085 = vmatmul.mubr.f32.gmra.mrb[0].mxu0 %v3013
    %v3086 = vpop.f32.mrb[0].mxu0
    %v3087 = vadd.f32 0.0, %v3086
    %v3088 = vpop.f32.mrb[0].mxu0
    %3089 = vdwg.mxu0
    %3092 = vrot.lane.b32.xlu0 %v3082, 64
    %v3093 = vpop.permute.xlu0 %3092
    %3094 = vrot.lane.b32.xlu0 %v3087, 64
    %v3095 = vpop.permute.xlu0 %3094
    %3098 = vst.msk [vmem:[#allocation2] sm:$0xff] %vm1665, %v3093
    %3099 = vst.msk [vmem:[#allocation2 + $0x8] sm:$0xff] %vm1665, %v3095
    %3100 = vrot.lane.b32.xlu0 %v2458, 32
    %v3101 = vpop.permute.xlu0 %3100
    %3102 = vrot.lane.b32.xlu0 %v2459, 32
    %v3103 = vpop.permute.xlu0 %3102
    %3104 = vrot.lane.b32.xlu0 %v2465, 32
    %v3105 = vpop.permute.xlu0 %3104
    %3106 = vrot.lane.b32.xlu0 %v2466, 32
    %v3107 = vpop.permute.xlu0 %3106
    %v3108 = vsel %vm1039, %v3101, 0
    %v3110 = vsel %vm1039, %v3103, 0
    %v3112 = vsel %vm1039, %v3105, 0
    %v3114 = vsel %vm1039, %v3107, 0
    %3116 = vmatprep.subr.mxu0 0.0
    %3117 = vmatpush1.xpose.msra.mxu0 %v3112
    %3118 = vmatprep.subr.mxu0 0.0
    %3119 = vmatpush1.xpose.msra.mxu0 %v3114
    %3120 = vmatprep.subr.mxu0 0.0
    %3121 = vmatpush1.xpose.msra.mxu0 0.0
    %3122 = vmatprep.subr.mxu0 0.0
    %3123 = vmatpush1.xpose.msra.mxu0 0.0
    %3124 = vmatprep.subr.mxu0 0.0
    %3125 = vmatpush1.xpose.msra.mxu0 0.0
    %3126 = vmatprep.subr.mxu0 0.0
    %3127 = vmatpush1.xpose.msra.mxu0 0.0
    %3128 = vmatprep.subr.mxu0 0.0
    %3129 = vmatpush1.xpose.msra.mxu0 0.0
    %3130 = vmatprep.subr.mxu0 0.0
    %3131 = vmatpush1.xpose.msra.mxu0 0.0
    %3132 = vmatprep.subr.mxu0 0.0
    %3133 = vmatpush1.xpose.msra.mxu0 0.0
    %3134 = vmatprep.subr.mxu0 0.0
    %3135 = vmatpush1.xpose.msra.mxu0 0.0
    %3136 = vmatprep.subr.mxu0 0.0
    %3137 = vmatpush1.xpose.msra.mxu0 0.0
    %3138 = vmatprep.subr.mxu0 0.0
    %3139 = vmatpush1.xpose.msra.mxu0 0.0
    %3140 = vmatprep.subr.mxu0 0.0
    %3141 = vmatpush1.xpose.msra.mxu0 0.0
    %3142 = vmatprep.subr.mxu0 0.0
    %3143 = vmatpush1.xpose.msra.mxu0 0.0
    %3144 = vmatprep.subr.mxu0 0.0
    %3145 = vmatpush1.xpose.msra.mxu0 0.0
    %3146 = vmatprep.subr.mxu0 0.0
    %3147 = vmatpush1.xpose.msra.mxu0 0.0
    %3148 = vmatprep.subr.mxu0 0.0
    %3149 = vmatpush1.xpose.msra.mxu0 0.0
    %3150 = vmatprep.subr.mxu0 0.0
    %3151 = vmatpush1.xpose.msra.mxu0 0.0
    %3152 = vmatprep.subr.mxu0 0.0
    %3153 = vmatpush1.xpose.msra.mxu0 0.0
    %3154 = vmatprep.subr.mxu0 0.0
    %3155 = vmatpush1.xpose.msra.mxu0 0.0
    %3156 = vmatprep.subr.mxu0 0.0
    %3157 = vmatpush1.xpose.msra.mxu0 0.0
    %3158 = vmatprep.subr.mxu0 0.0
    %3159 = vmatpush1.xpose.msra.mxu0 0.0
    %3160 = vmatprep.subr.mxu0 0.0
    %3161 = vmatpush1.xpose.msra.mxu0 0.0
    %3162 = vmatprep.subr.mxu0 0.0
    %3163 = vmatpush1.xpose.msra.mxu0 0.0
    %3164 = vmatprep.subr.mxu0 0.0
    %3165 = vmatpush1.xpose.msra.mxu0 0.0
    %3166 = vmatprep.subr.mxu0 0.0
    %3167 = vmatpush1.xpose.msra.mxu0 0.0
    %3168 = vmatprep.subr.mxu0 0.0
    %3169 = vmatpush1.xpose.msra.mxu0 0.0
    %3170 = vmatprep.subr.mxu0 0.0
    %3171 = vmatpush1.xpose.msra.mxu0 0.0
    %3172 = vmatprep.subr.mxu0 0.0
    %3173 = vmatpush1.xpose.msra.mxu0 0.0
    %3174 = vmatprep.subr.mxu0 0.0
    %3175 = vmatpush1.xpose.msra.mxu0 0.0
    %3176 = vmatprep.subr.mxu0 0.0
    %3177 = vmatpush1.xpose.msra.mxu0 0.0
    %3178 = vmatprep.subr.mxu0 0.0
    %3179 = vmatpush1.xpose.msra.mxu0 0.0
    %3180 = vmatprep.mubr.f32.mxu0 0.0
    %3181 = vmatmul.mubr.f32.gmra.mrb[0].mxu0 %v3108
    %v3182 = vpop.f32.mrb[0].mxu0
    %v3183 = vadd.f32 0.0, %v3182
    %v3184 = vpop.f32.mrb[0].mxu0
    %3185 = vmatprep.mubr.f32.mxu0 0.0
    %3186 = vmatmul.mubr.f32.gmra.mrb[0].mxu0 %v3110
    %v3187 = vpop.f32.mrb[0].mxu0
    %v3188 = vadd.f32 0.0, %v3187
    %v3189 = vpop.f32.mrb[0].mxu0
    %3190 = vdwg.mxu0
    %v3191 = vmul.f32 %v3183, 0.17677669
    %v3192 = vmul.f32 %v3188, 0.17677669
    %v3193 = vadd.f32 %v3191, %v816
    %v3194 = vadd.f32 %v3192, %v817
    %v3195 = vsel %vm358, %v3193, -inf
    %3196 = vmax.xlane.f32.xlu0 %v3195
    %v3197 = vpop.xlane.xlu0 %3196
    %v3198 = vsel %vm358, %v3194, -inf
    %3199 = vmax.xlane.f32.xlu0 %v3198
    %v3200 = vpop.xlane.xlu0 %3199
    %v3201 = vsub.f32 %v3193, %v3197
    %v3202 = vsub.f32 %v3194, %v3200
    %v3203 = vmul.f32 %v3201, 1.442695
    %v3204 = vpow.pop %v3203
    %v3205 = vmul.f32 %v3202, 1.442695
    %v3206 = vpow.pop %v3205
    %v3207 = vsel %vm358, %v3204, 0.0
    %3208 = vadd.xlane.f32.xlu0 %v3207
    %v3209 = vpop.xlane.xlu0 %3208
    %v3210 = vsel %vm358, %v3206, 0.0
    %3211 = vadd.xlane.f32.xlu0 %v3210
    %v3212 = vpop.xlane.xlu0 %3211
    %v3213 = vrcp.pop %v3209
    %v3214 = vrcp.pop %v3212
    %v3215 = vmul.f32 %v3204, %v3213
    %v3216 = vmul.f32 %v3206, %v3214
    %3217 = vrot.lane.b32.xlu0 %v2472, 32
    %v3218 = vpop.permute.xlu0 %3217
    %3219 = vrot.lane.b32.xlu0 %v2473, 32
    %v3220 = vpop.permute.xlu0 %3219
    %v3224 = vsel %vm358, %v3215, 0
    %v3227 = vsel %vm358, %v3216, 0
    %3229 = vmatprep.subr.mxu0 0.0
    %3230 = vmatpush1.msra.mxu0 %v3218
    %3231 = vmatprep.subr.mxu0 0.0
    %3232 = vmatpush1.msra.mxu0 %v3220
    %3233 = vmatprep.subr.mxu0 0.0
    %3234 = vmatpush1.msra.mxu0 0.0
    %3235 = vmatprep.subr.mxu0 0.0
    %3236 = vmatpush1.msra.mxu0 0.0
    %3237 = vmatprep.subr.mxu0 0.0
    %3238 = vmatpush1.msra.mxu0 0.0
    %3239 = vmatprep.subr.mxu0 0.0
    %3240 = vmatpush1.msra.mxu0 0.0
    %3241 = vmatprep.subr.mxu0 0.0
    %3242 = vmatpush1.msra.mxu0 0.0
    %3243 = vmatprep.subr.mxu0 0.0
    %3244 = vmatpush1.msra.mxu0 0.0
    %3245 = vmatprep.subr.mxu0 0.0
    %3246 = vmatpush1.msra.mxu0 0.0
    %3247 = vmatprep.subr.mxu0 0.0
    %3248 = vmatpush1.msra.mxu0 0.0
    %3249 = vmatprep.subr.mxu0 0.0
    %3250 = vmatpush1.msra.mxu0 0.0
    %3251 = vmatprep.subr.mxu0 0.0
    %3252 = vmatpush1.msra.mxu0 0.0
    %3253 = vmatprep.subr.mxu0 0.0
    %3254 = vmatpush1.msra.mxu0 0.0
    %3255 = vmatprep.subr.mxu0 0.0
    %3256 = vmatpush1.msra.mxu0 0.0
    %3257 = vmatprep.subr.mxu0 0.0
    %3258 = vmatpush1.msra.mxu0 0.0
    %3259 = vmatprep.subr.mxu0 0.0
    %3260 = vmatpush1.msra.mxu0 0.0
    %3261 = vmatprep.subr.mxu0 0.0
    %3262 = vmatpush1.msra.mxu0 0.0
    %3263 = vmatprep.subr.mxu0 0.0
    %3264 = vmatpush1.msra.mxu0 0.0
    %3265 = vmatprep.subr.mxu0 0.0
    %3266 = vmatpush1.msra.mxu0 0.0
    %3267 = vmatprep.subr.mxu0 0.0
    %3268 = vmatpush1.msra.mxu0 0.0
    %3269 = vmatprep.subr.mxu0 0.0
    %3270 = vmatpush1.msra.mxu0 0.0
    %3271 = vmatprep.subr.mxu0 0.0
    %3272 = vmatpush1.msra.mxu0 0.0
    %3273 = vmatprep.subr.mxu0 0.0
    %3274 = vmatpush1.msra.mxu0 0.0
    %3275 = vmatprep.subr.mxu0 0.0
    %3276 = vmatpush1.msra.mxu0 0.0
    %3277 = vmatprep.subr.mxu0 0.0
    %3278 = vmatpush1.msra.mxu0 0.0
    %3279 = vmatprep.subr.mxu0 0.0
    %3280 = vmatpush1.msra.mxu0 0.0
    %3281 = vmatprep.subr.mxu0 0.0
    %3282 = vmatpush1.msra.mxu0 0.0
    %3283 = vmatprep.subr.mxu0 0.0
    %3284 = vmatpush1.msra.mxu0 0.0
    %3285 = vmatprep.subr.mxu0 0.0
    %3286 = vmatpush1.msra.mxu0 0.0
    %3287 = vmatprep.subr.mxu0 0.0
    %3288 = vmatpush1.msra.mxu0 0.0
    %3289 = vmatprep.subr.mxu0 0.0
    %3290 = vmatpush1.msra.mxu0 0.0
    %3291 = vmatprep.subr.mxu0 0.0
    %3292 = vmatpush1.msra.mxu0 0.0
    %3293 = vmatprep.mubr.f32.mxu0 0.0
    %3294 = vmatmul.mubr.f32.gmra.mrb[0].mxu0 %v3224
    %v3295 = vpop.f32.mrb[0].mxu0
    %v3296 = vadd.f32 0.0, %v3295
    %v3297 = vpop.f32.mrb[0].mxu0
    %3298 = vmatprep.mubr.f32.mxu0 0.0
    %3299 = vmatmul.mubr.f32.gmra.mrb[0].mxu0 %v3227
    %v3300 = vpop.f32.mrb[0].mxu0
    %v3301 = vadd.f32 0.0, %v3300
    %v3302 = vpop.f32.mrb[0].mxu0
    %3303 = vdwg.mxu0
    %3306 = vrot.lane.b32.xlu0 %v3296, 96
    %v3307 = vpop.permute.xlu0 %3306
    %3308 = vrot.lane.b32.xlu0 %v3301, 96
    %v3309 = vpop.permute.xlu0 %3308
    %3312 = vst.msk [vmem:[#allocation2] sm:$0xff] %vm1880, %v3307
    %3313 = vst.msk [vmem:[#allocation2 + $0x8] sm:$0xff] %vm1880, %v3309
    %v3314 = vld [vmem:[#allocation2] sm:$0xff]
    %v3315 = vld [vmem:[#allocation2 + $0x8] sm:$0xff]
    %v3316 = vld [vmem:[%s2252 + $0x18] sm:$0xff]
    %v3317 = vld [vmem:[%s2252 + $0x48] sm:$0xff]
    %v3318 = vld [vmem:[%s2252 + $0x78] sm:$0xff]
    %v3319 = vld [vmem:[%s2252 + $0xa8] sm:$0xff]
    %v3320 = vld [vmem:[%s2252 + $0xd8] sm:$0xff]
    %v3321 = vld [vmem:[%s2252 + $0x108] sm:$0xff]
    %v3322 = vld [vmem:[%s2252 + $0x138] sm:$0xff]
    %v3323 = vld [vmem:[%s2252 + $0x168] sm:$0xff]
    %v3324 = vld [vmem:[%s2252 + $0x198] sm:$0xff]
    %v3325 = vld [vmem:[%s2252 + $0x1c8] sm:$0xff]
    %v3326 = vld [vmem:[%s2252 + $0x1f8] sm:$0xff]
    %v3327 = vld [vmem:[%s2252 + $0x228] sm:$0xff]
    %v3328 = vld [vmem:[%s2252 + $0x258] sm:$0xff]
    %v3329 = vld [vmem:[%s2252 + $0x288] sm:$0xff]
    %v3330 = vld [vmem:[%s2252 + $0x2b8] sm:$0xff]
    %v3331 = vld [vmem:[%s2252 + $0x2e8] sm:$0xff]
    %v3332 = vld [vmem:[%s9 + $0xe] sm:$0x1]
    %v3333 = vlaneseq
    %v3334 = vshrl.u32 %v3333, 7
    %v3335 = vsub.s32 0, %v3334
    %v3336 = vrot.slane %v3332, %v3335
    %3337 = vmatprep.subr.mxu0 0.0
    %3338 = vmatpush1.msra.mxu0 %v3316
    %3339 = vmatprep.subr.mxu0 0.0
    %3340 = vmatpush1.msra.mxu0 %v3317
    %3341 = vmatprep.subr.mxu0 0.0
    %3342 = vmatpush1.msra.mxu0 %v3318
    %3343 = vmatprep.subr.mxu0 0.0
    %3344 = vmatpush1.msra.mxu0 %v3319
    %3345 = vmatprep.subr.mxu0 0.0
    %3346 = vmatpush1.msra.mxu0 %v3320
    %3347 = vmatprep.subr.mxu0 0.0
    %3348 = vmatpush1.msra.mxu0 %v3321
    %3349 = vmatprep.subr.mxu0 0.0
    %3350 = vmatpush1.msra.mxu0 %v3322
    %3351 = vmatprep.subr.mxu0 0.0
    %3352 = vmatpush1.msra.mxu0 %v3323
    %3353 = vmatprep.subr.mxu0 0.0
    %3354 = vmatpush1.msra.mxu0 %v3324
    %3355 = vmatprep.subr.mxu0 0.0
    %3356 = vmatpush1.msra.mxu0 %v3325
    %3357 = vmatprep.subr.mxu0 0.0
    %3358 = vmatpush1.msra.mxu0 %v3326
    %3359 = vmatprep.subr.mxu0 0.0
    %3360 = vmatpush1.msra.mxu0 %v3327
    %3361 = vmatprep.subr.mxu0 0.0
    %3362 = vmatpush1.msra.mxu0 %v3328
    %3363 = vmatprep.subr.mxu0 0.0
    %3364 = vmatpush1.msra.mxu0 %v3329
    %3365 = vmatprep.subr.mxu0 0.0
    %3366 = vmatpush1.msra.mxu0 %v3330
    %3367 = vmatprep.subr.mxu0 0.0
    %3368 = vmatpush1.msra.mxu0 %v3331
    %3369 = vmatprep.subr.mxu0 0.0
    %3370 = vmatpush1.msra.mxu0 0.0
    %3371 = vmatprep.subr.mxu0 0.0
    %3372 = vmatpush1.msra.mxu0 0.0
    %3373 = vmatprep.subr.mxu0 0.0
    %3374 = vmatpush1.msra.mxu0 0.0
    %3375 = vmatprep.subr.mxu0 0.0
    %3376 = vmatpush1.msra.mxu0 0.0
    %3377 = vmatprep.subr.mxu0 0.0
    %3378 = vmatpush1.msra.mxu0 0.0
    %3379 = vmatprep.subr.mxu0 0.0
    %3380 = vmatpush1.msra.mxu0 0.0
    %3381 = vmatprep.subr.mxu0 0.0
    %3382 = vmatpush1.msra.mxu0 0.0
    %3383 = vmatprep.subr.mxu0 0.0
    %3384 = vmatpush1.msra.mxu0 0.0
    %3385 = vmatprep.subr.mxu0 0.0
    %3386 = vmatpush1.msra.mxu0 0.0
    %3387 = vmatprep.subr.mxu0 0.0
    %3388 = vmatpush1.msra.mxu0 0.0
    %3389 = vmatprep.subr.mxu0 0.0
    %3390 = vmatpush1.msra.mxu0 0.0
    %3391 = vmatprep.subr.mxu0 0.0
    %3392 = vmatpush1.msra.mxu0 0.0
    %3393 = vmatprep.subr.mxu0 0.0
    %3394 = vmatpush1.msra.mxu0 0.0
    %3395 = vmatprep.subr.mxu0 0.0
    %3396 = vmatpush1.msra.mxu0 0.0
    %3397 = vmatprep.subr.mxu0 0.0
    %3398 = vmatpush1.msra.mxu0 0.0
    %3399 = vmatprep.subr.mxu0 0.0
    %3400 = vmatpush1.msra.mxu0 0.0
    %3401 = vmatprep.mubr.f32.mxu0 0.0
    %3402 = vmatmul.mubr.f32.gmra.mrb[0].mxu0 %v3314
    %v3403 = vpop.f32.mrb[0].mxu0
    %v3404 = vadd.f32 %v3336, %v3403
    %v3405 = vpop.f32.mrb[0].mxu0
    %3406 = vmatprep.mubr.f32.mxu0 0.0
    %3407 = vmatmul.mubr.f32.gmra.mrb[0].mxu0 %v3315
    %v3408 = vpop.f32.mrb[0].mxu0
    %v3409 = vadd.f32 %v3336, %v3408
    %v3410 = vpop.f32.mrb[0].mxu0
    %3411 = vdwg.mxu0
    %v3412 = vadd.f32 %v2250, %v3404
    %v3413 = vadd.f32 %v2251, %v3409
    %v3414 = vld [vmem:[%s9 + $0xf] sm:$0x1]
    %v3415 = vld [vmem:[%s9 + $0x10] sm:$0x1]
    %3416 = vadd.xlane.f32.xlu0 %v3412
    %v3417 = vpop.xlane.xlu0 %3416
    %3418 = vadd.xlane.f32.xlu0 %v3413
    %v3419 = vpop.xlane.xlu0 %3418
    %v3420 = vmul.f32 %v3417, %v1989
    %v3421 = vmul.f32 %v3419, %v1989
    %v3422 = vsub.f32 %v3412, %v3420
    %v3423 = vsub.f32 %v3413, %v3421
    %v3424 = vmul.f32 %v3422, %v3422
    %v3425 = vmul.f32 %v3423, %v3423
    %3426 = vadd.xlane.f32.xlu0 %v3424
    %v3427 = vpop.xlane.xlu0 %3426
    %3428 = vadd.xlane.f32.xlu0 %v3425
    %v3429 = vpop.xlane.xlu0 %3428
    %v3430 = vmul.f32 %v3427, %v1989
    %v3431 = vmul.f32 %v3429, %v1989
    %v3432 = vadd.f32 %v3430, 1e-05
    %v3433 = vadd.f32 %v3431, 1e-05
    %v3434 = vrsqrt.pop %v3432
    %v3435 = vrsqrt.pop %v3433
    %v3436 = vmul.f32 %v3422, %v3434
    %v3437 = vmul.f32 %v3423, %v3435
    %v3438 = vlaneseq
    %v3439 = vshrl.u32 %v3438, 7
    %v3440 = vsub.s32 0, %v3439
    %v3441 = vrot.slane %v3414, %v3440
    %v3442 = vmul.f32 %v3436, %v3441
    %v3443 = vmul.f32 %v3437, %v3441
    %v3444 = vlaneseq
    %v3445 = vshrl.u32 %v3444, 7
    %v3446 = vsub.s32 0, %v3445
    %v3447 = vrot.slane %v3415, %v3446
    %v3448 = vadd.f32 %v3442, %v3447
    %v3449 = vadd.f32 %v3443, %v3447
    %v3450 = vld [vmem:[%s2252 + $0x20] sm:$0xff]
    %v3451 = vld [vmem:[%s2252 + $0x50] sm:$0xff]
    %v3452 = vld [vmem:[%s2252 + $0x80] sm:$0xff]
    %v3453 = vld [vmem:[%s2252 + $0xb0] sm:$0xff]
    %v3454 = vld [vmem:[%s2252 + $0xe0] sm:$0xff]
    %v3455 = vld [vmem:[%s2252 + $0x110] sm:$0xff]
    %v3456 = vld [vmem:[%s2252 + $0x140] sm:$0xff]
    %v3457 = vld [vmem:[%s2252 + $0x170] sm:$0xff]
    %v3458 = vld [vmem:[%s2252 + $0x1a0] sm:$0xff]
    %v3459 = vld [vmem:[%s2252 + $0x1d0] sm:$0xff]
    %v3460 = vld [vmem:[%s2252 + $0x200] sm:$0xff]
    %v3461 = vld [vmem:[%s2252 + $0x230] sm:$0xff]
    %v3462 = vld [vmem:[%s2252 + $0x260] sm:$0xff]
    %v3463 = vld [vmem:[%s2252 + $0x290] sm:$0xff]
    %v3464 = vld [vmem:[%s2252 + $0x2c0] sm:$0xff]
    %v3465 = vld [vmem:[%s2252 + $0x2f0] sm:$0xff]
    %v3466 = vld [vmem:[%s9 + $0x11] sm:$0x1]
    %v3467 = vlaneseq
    %v3468 = vshrl.u32 %v3467, 7
    %v3469 = vsub.s32 0, %v3468
    %v3470 = vrot.slane %v3466, %v3469
    %3471 = vmatprep.subr.mxu0 0.0
    %3472 = vmatpush1.msra.mxu0 %v3450
    %3473 = vmatprep.subr.mxu0 0.0
    %3474 = vmatpush1.msra.mxu0 %v3451
    %3475 = vmatprep.subr.mxu0 0.0
    %3476 = vmatpush1.msra.mxu0 %v3452
    %3477 = vmatprep.subr.mxu0 0.0
    %3478 = vmatpush1.msra.mxu0 %v3453
    %3479 = vmatprep.subr.mxu0 0.0
    %3480 = vmatpush1.msra.mxu0 %v3454
    %3481 = vmatprep.subr.mxu0 0.0
    %3482 = vmatpush1.msra.mxu0 %v3455
    %3483 = vmatprep.subr.mxu0 0.0
    %3484 = vmatpush1.msra.mxu0 %v3456
    %3485 = vmatprep.subr.mxu0 0.0
    %3486 = vmatpush1.msra.mxu0 %v3457
    %3487 = vmatprep.subr.mxu0 0.0
    %3488 = vmatpush1.msra.mxu0 %v3458
    %3489 = vmatprep.subr.mxu0 0.0
    %3490 = vmatpush1.msra.mxu0 %v3459
    %3491 = vmatprep.subr.mxu0 0.0
    %3492 = vmatpush1.msra.mxu0 %v3460
    %3493 = vmatprep.subr.mxu0 0.0
    %3494 = vmatpush1.msra.mxu0 %v3461
    %3495 = vmatprep.subr.mxu0 0.0
    %3496 = vmatpush1.msra.mxu0 %v3462
    %3497 = vmatprep.subr.mxu0 0.0
    %3498 = vmatpush1.msra.mxu0 %v3463
    %3499 = vmatprep.subr.mxu0 0.0
    %3500 = vmatpush1.msra.mxu0 %v3464
    %3501 = vmatprep.subr.mxu0 0.0
    %3502 = vmatpush1.msra.mxu0 %v3465
    %3503 = vmatprep.subr.mxu0 0.0
    %3504 = vmatpush1.msra.mxu0 0.0
    %3505 = vmatprep.subr.mxu0 0.0
    %3506 = vmatpush1.msra.mxu0 0.0
    %3507 = vmatprep.subr.mxu0 0.0
    %3508 = vmatpush1.msra.mxu0 0.0
    %3509 = vmatprep.subr.mxu0 0.0
    %3510 = vmatpush1.msra.mxu0 0.0
    %3511 = vmatprep.subr.mxu0 0.0
    %3512 = vmatpush1.msra.mxu0 0.0
    %3513 = vmatprep.subr.mxu0 0.0
    %3514 = vmatpush1.msra.mxu0 0.0
    %3515 = vmatprep.subr.mxu0 0.0
    %3516 = vmatpush1.msra.mxu0 0.0
    %3517 = vmatprep.subr.mxu0 0.0
    %3518 = vmatpush1.msra.mxu0 0.0
    %3519 = vmatprep.subr.mxu0 0.0
    %3520 = vmatpush1.msra.mxu0 0.0
    %3521 = vmatprep.subr.mxu0 0.0
    %3522 = vmatpush1.msra.mxu0 0.0
    %3523 = vmatprep.subr.mxu0 0.0
    %3524 = vmatpush1.msra.mxu0 0.0
    %3525 = vmatprep.subr.mxu0 0.0
    %3526 = vmatpush1.msra.mxu0 0.0
    %3527 = vmatprep.subr.mxu0 0.0
    %3528 = vmatpush1.msra.mxu0 0.0
    %3529 = vmatprep.subr.mxu0 0.0
    %3530 = vmatpush1.msra.mxu0 0.0
    %3531 = vmatprep.subr.mxu0 0.0
    %3532 = vmatpush1.msra.mxu0 0.0
    %3533 = vmatprep.subr.mxu0 0.0
    %3534 = vmatpush1.msra.mxu0 0.0
    %3535 = vmatprep.mubr.f32.mxu0 0.0
    %3536 = vmatmul.mubr.f32.gmra.mrb[0].mxu0 %v3448
    %v3537 = vpop.f32.mrb[0].mxu0
    %v3538 = vadd.f32 %v3470, %v3537
    %v3539 = vpop.f32.mrb[0].mxu0
    %3540 = vmatprep.mubr.f32.mxu0 0.0
    %3541 = vmatmul.mubr.f32.gmra.mrb[0].mxu0 %v3449
    %v3542 = vpop.f32.mrb[0].mxu0
    %v3543 = vadd.f32 %v3470, %v3542
    %v3544 = vpop.f32.mrb[0].mxu0
    %3545 = vdwg.mxu0
    %v3546 = vmax.f32 %v3538, 0.0
    %v3547 = vmax.f32 %v3543, 0.0
    %v3548 = vld [vmem:[%s2252 + $0x28] sm:$0xff]
    %v3549 = vld [vmem:[%s2252 + $0x58] sm:$0xff]
    %v3550 = vld [vmem:[%s2252 + $0x88] sm:$0xff]
    %v3551 = vld [vmem:[%s2252 + $0xb8] sm:$0xff]
    %v3552 = vld [vmem:[%s2252 + $0xe8] sm:$0xff]
    %v3553 = vld [vmem:[%s2252 + $0x118] sm:$0xff]
    %v3554 = vld [vmem:[%s2252 + $0x148] sm:$0xff]
    %v3555 = vld [vmem:[%s2252 + $0x178] sm:$0xff]
    %v3556 = vld [vmem:[%s2252 + $0x1a8] sm:$0xff]
    %v3557 = vld [vmem:[%s2252 + $0x1d8] sm:$0xff]
    %v3558 = vld [vmem:[%s2252 + $0x208] sm:$0xff]
    %v3559 = vld [vmem:[%s2252 + $0x238] sm:$0xff]
    %v3560 = vld [vmem:[%s2252 + $0x268] sm:$0xff]
    %v3561 = vld [vmem:[%s2252 + $0x298] sm:$0xff]
    %v3562 = vld [vmem:[%s2252 + $0x2c8] sm:$0xff]
    %v3563 = vld [vmem:[%s2252 + $0x2f8] sm:$0xff]
    %v3564 = vld [vmem:[%s9 + $0x12] sm:$0x1]
    %v3565 = vlaneseq
    %v3566 = vshrl.u32 %v3565, 7
    %v3567 = vsub.s32 0, %v3566
    %v3568 = vrot.slane %v3564, %v3567
    %3569 = vmatprep.subr.mxu0 0.0
    %3570 = vmatpush1.msra.mxu0 %v3548
    %3571 = vmatprep.subr.mxu0 0.0
    %3572 = vmatpush1.msra.mxu0 %v3549
    %3573 = vmatprep.subr.mxu0 0.0
    %3574 = vmatpush1.msra.mxu0 %v3550
    %3575 = vmatprep.subr.mxu0 0.0
    %3576 = vmatpush1.msra.mxu0 %v3551
    %3577 = vmatprep.subr.mxu0 0.0
    %3578 = vmatpush1.msra.mxu0 %v3552
    %3579 = vmatprep.subr.mxu0 0.0
    %3580 = vmatpush1.msra.mxu0 %v3553
    %3581 = vmatprep.subr.mxu0 0.0
    %3582 = vmatpush1.msra.mxu0 %v3554
    %3583 = vmatprep.subr.mxu0 0.0
    %3584 = vmatpush1.msra.mxu0 %v3555
    %3585 = vmatprep.subr.mxu0 0.0
    %3586 = vmatpush1.msra.mxu0 %v3556
    %3587 = vmatprep.subr.mxu0 0.0
    %3588 = vmatpush1.msra.mxu0 %v3557
    %3589 = vmatprep.subr.mxu0 0.0
    %3590 = vmatpush1.msra.mxu0 %v3558
    %3591 = vmatprep.subr.mxu0 0.0
    %3592 = vmatpush1.msra.mxu0 %v3559
    %3593 = vmatprep.subr.mxu0 0.0
    %3594 = vmatpush1.msra.mxu0 %v3560
    %3595 = vmatprep.subr.mxu0 0.0
    %3596 = vmatpush1.msra.mxu0 %v3561
    %3597 = vmatprep.subr.mxu0 0.0
    %3598 = vmatpush1.msra.mxu0 %v3562
    %3599 = vmatprep.subr.mxu0 0.0
    %3600 = vmatpush1.msra.mxu0 %v3563
    %3601 = vmatprep.subr.mxu0 0.0
    %3602 = vmatpush1.msra.mxu0 0.0
    %3603 = vmatprep.subr.mxu0 0.0
    %3604 = vmatpush1.msra.mxu0 0.0
    %3605 = vmatprep.subr.mxu0 0.0
    %3606 = vmatpush1.msra.mxu0 0.0
    %3607 = vmatprep.subr.mxu0 0.0
    %3608 = vmatpush1.msra.mxu0 0.0
    %3609 = vmatprep.subr.mxu0 0.0
    %3610 = vmatpush1.msra.mxu0 0.0
    %3611 = vmatprep.subr.mxu0 0.0
    %3612 = vmatpush1.msra.mxu0 0.0
    %3613 = vmatprep.subr.mxu0 0.0
    %3614 = vmatpush1.msra.mxu0 0.0
    %3615 = vmatprep.subr.mxu0 0.0
    %3616 = vmatpush1.msra.mxu0 0.0
    %3617 = vmatprep.subr.mxu0 0.0
    %3618 = vmatpush1.msra.mxu0 0.0
    %3619 = vmatprep.subr.mxu0 0.0
    %3620 = vmatpush1.msra.mxu0 0.0
    %3621 = vmatprep.subr.mxu0 0.0
    %3622 = vmatpush1.msra.mxu0 0.0
    %3623 = vmatprep.subr.mxu0 0.0
    %3624 = vmatpush1.msra.mxu0 0.0
    %3625 = vmatprep.subr.mxu0 0.0
    %3626 = vmatpush1.msra.mxu0 0.0
    %3627 = vmatprep.subr.mxu0 0.0
    %3628 = vmatpush1.msra.mxu0 0.0
    %3629 = vmatprep.subr.mxu0 0.0
    %3630 = vmatpush1.msra.mxu0 0.0
    %3631 = vmatprep.subr.mxu0 0.0
    %3632 = vmatpush1.msra.mxu0 0.0
    %3633 = vmatprep.mubr.f32.mxu0 0.0
    %3634 = vmatmul.mubr.f32.gmra.mrb[0].mxu0 %v3546
    %v3635 = vpop.f32.mrb[0].mxu0
    %v3636 = vadd.f32 %v3568, %v3635
    %v3637 = vpop.f32.mrb[0].mxu0
    %3638 = vmatprep.mubr.f32.mxu0 0.0
    %3639 = vmatmul.mubr.f32.gmra.mrb[0].mxu0 %v3547
    %v3640 = vpop.f32.mrb[0].mxu0
    %v3641 = vadd.f32 %v3568, %v3640
    %v3642 = vpop.f32.mrb[0].mxu0
    %3643 = vdwg.mxu0
    %v3644 = vadd.f32 %v3448, %v3636
    %v3645 = vadd.f32 %v3449, %v3641
    %v3646 = vld [vmem:[%s9 + $0x13] sm:$0x1]
    %v3647 = vld [vmem:[%s9 + $0x14] sm:$0x1]
    %3648 = vadd.xlane.f32.xlu0 %v3644
    %v3649 = vpop.xlane.xlu0 %3648
    %3650 = vadd.xlane.f32.xlu0 %v3645
    %v3651 = vpop.xlane.xlu0 %3650
    %v3652 = vmul.f32 %v3649, %v1989
    %v3653 = vmul.f32 %v3651, %v1989
    %v3654 = vsub.f32 %v3644, %v3652
    %v3655 = vsub.f32 %v3645, %v3653
    %v3656 = vmul.f32 %v3654, %v3654
    %v3657 = vmul.f32 %v3655, %v3655
    %3658 = vadd.xlane.f32.xlu0 %v3656
    %v3659 = vpop.xlane.xlu0 %3658
    %3660 = vadd.xlane.f32.xlu0 %v3657
    %v3661 = vpop.xlane.xlu0 %3660
    %v3662 = vmul.f32 %v3659, %v1989
    %v3663 = vmul.f32 %v3661, %v1989
    %v3664 = vadd.f32 %v3662, 1e-05
    %v3665 = vadd.f32 %v3663, 1e-05
    %v3666 = vrsqrt.pop %v3664
    %v3667 = vrsqrt.pop %v3665
    %v3668 = vmul.f32 %v3654, %v3666
    %v3669 = vmul.f32 %v3655, %v3667
    %v3670 = vlaneseq
    %v3671 = vshrl.u32 %v3670, 7
    %v3672 = vsub.s32 0, %v3671
    %v3673 = vrot.slane %v3646, %v3672
    %v3674 = vmul.f32 %v3668, %v3673
    %v3675 = vmul.f32 %v3669, %v3673
    %v3676 = vlaneseq
    %v3677 = vshrl.u32 %v3676, 7
    %v3678 = vsub.s32 0, %v3677
    %v3679 = vrot.slane %v3647, %v3678
    %v3680 = vadd.f32 %v3674, %v3679
    %v3681 = vadd.f32 %v3675, %v3679
    %v3682 = vld [vmem:[%s2] sm:$0x3]
    %vm3683 = vcmask 123904
    %v3684 = vsel %vm3683, %v3682, 0.0
    %3685 = vadd.xlane.f32.xlu0 %v3684
    %v3686 = vpop.xlane.xlu0 %3685
    %v3687 = vmax.f32 %v3686, 1.0
    %v3689 = vsel %vm358, %v3682, 0
    %3691 = vmatprep.subr.mxu0 0.0
    %3692 = vmatpush1.msra.mxu0 %v3680
    %3693 = vmatprep.subr.mxu0 0.0
    %3694 = vmatpush1.msra.mxu0 %v3681
    %3695 = vmatprep.subr.mxu0 0.0
    %3696 = vmatpush1.msra.mxu0 0.0
    %3697 = vmatprep.subr.mxu0 0.0
    %3698 = vmatpush1.msra.mxu0 0.0
    %3699 = vmatprep.subr.mxu0 0.0
    %3700 = vmatpush1.msra.mxu0 0.0
    %3701 = vmatprep.subr.mxu0 0.0
    %3702 = vmatpush1.msra.mxu0 0.0
    %3703 = vmatprep.subr.mxu0 0.0
    %3704 = vmatpush1.msra.mxu0 0.0
    %3705 = vmatprep.subr.mxu0 0.0
    %3706 = vmatpush1.msra.mxu0 0.0
    %3707 = vmatprep.subr.mxu0 0.0
    %3708 = vmatpush1.msra.mxu0 0.0
    %3709 = vmatprep.subr.mxu0 0.0
    %3710 = vmatpush1.msra.mxu0 0.0
    %3711 = vmatprep.subr.mxu0 0.0
    %3712 = vmatpush1.msra.mxu0 0.0
    %3713 = vmatprep.subr.mxu0 0.0
    %3714 = vmatpush1.msra.mxu0 0.0
    %3715 = vmatprep.subr.mxu0 0.0
    %3716 = vmatpush1.msra.mxu0 0.0
    %3717 = vmatprep.subr.mxu0 0.0
    %3718 = vmatpush1.msra.mxu0 0.0
    %3719 = vmatprep.subr.mxu0 0.0
    %3720 = vmatpush1.msra.mxu0 0.0
    %3721 = vmatprep.subr.mxu0 0.0
    %3722 = vmatpush1.msra.mxu0 0.0
    %3723 = vmatprep.subr.mxu0 0.0
    %3724 = vmatpush1.msra.mxu0 0.0
    %3725 = vmatprep.subr.mxu0 0.0
    %3726 = vmatpush1.msra.mxu0 0.0
    %3727 = vmatprep.subr.mxu0 0.0
    %3728 = vmatpush1.msra.mxu0 0.0
    %3729 = vmatprep.subr.mxu0 0.0
    %3730 = vmatpush1.msra.mxu0 0.0
    %3731 = vmatprep.subr.mxu0 0.0
    %3732 = vmatpush1.msra.mxu0 0.0
    %3733 = vmatprep.subr.mxu0 0.0
    %3734 = vmatpush1.msra.mxu0 0.0
    %3735 = vmatprep.subr.mxu0 0.0
    %3736 = vmatpush1.msra.mxu0 0.0
    %3737 = vmatprep.subr.mxu0 0.0
    %3738 = vmatpush1.msra.mxu0 0.0
    %3739 = vmatprep.subr.mxu0 0.0
    %3740 = vmatpush1.msra.mxu0 0.0
    %3741 = vmatprep.subr.mxu0 0.0
    %3742 = vmatpush1.msra.mxu0 0.0
    %3743 = vmatprep.subr.mxu0 0.0
    %3744 = vmatpush1.msra.mxu0 0.0
    %3745 = vmatprep.subr.mxu0 0.0
    %3746 = vmatpush1.msra.mxu0 0.0
    %3747 = vmatprep.subr.mxu0 0.0
    %3748 = vmatpush1.msra.mxu0 0.0
    %3749 = vmatprep.subr.mxu0 0.0
    %3750 = vmatpush1.msra.mxu0 0.0
    %3751 = vmatprep.subr.mxu0 0.0
    %3752 = vmatpush1.msra.mxu0 0.0
    %3753 = vmatprep.subr.mxu0 0.0
    %3754 = vmatpush1.msra.mxu0 0.0
    %3755 = vmatprep.mubr.f32.mxu0 0.0
    %3756 = vmatmul.mubr.f32.gmra.mrb[0].mxu0 %v3689
    %v3757 = vpop.f32.mrb[0].mxu0
    %v3758 = vadd.f32 0.0, %v3757
    %v3759 = vpop.f32.mrb[0].mxu0
    %3760 = vdwg.mxu0
    %v3761 = vrcp.pop %v3687
    %v3762 = vmul.f32 %v3758, %v3761
    %v3763 = vld [vmem:[%s10] sm:$0xff]
    %v3764 = vld [vmem:[%s10 + $0x8] sm:$0xff]
    %v3765 = vld [vmem:[%s10 + $0x10] sm:$0xff]
    %v3766 = vld [vmem:[%s10 + $0x18] sm:$0xff]
    %v3767 = vld [vmem:[%s10 + $0x20] sm:$0xff]
    %v3768 = vld [vmem:[%s10 + $0x28] sm:$0xff]
    %v3769 = vld [vmem:[%s10 + $0x30] sm:$0xff]
    %v3770 = vld [vmem:[%s10 + $0x38] sm:$0xff]
    %v3771 = vld [vmem:[%s10 + $0x40] sm:$0xff]
    %v3772 = vld [vmem:[%s10 + $0x48] sm:$0xff]
    %v3773 = vld [vmem:[%s10 + $0x50] sm:$0xff]
    %v3774 = vld [vmem:[%s10 + $0x58] sm:$0xff]
    %v3775 = vld [vmem:[%s10 + $0x60] sm:$0xff]
    %v3776 = vld [vmem:[%s10 + $0x68] sm:$0xff]
    %v3777 = vld [vmem:[%s10 + $0x70] sm:$0xff]
    %v3778 = vld [vmem:[%s10 + $0x78] sm:$0xff]
    %v3779 = vld [vmem:[%s10 + $0x80] sm:$0x1]
    %v3780 = vlaneseq
    %v3781 = vshrl.u32 %v3780, 7
    %v3782 = vsub.s32 0, %v3781
    %v3783 = vrot.slane %v3779, %v3782
    %3784 = vmatprep.subr.mxu0 0.0
    %3785 = vmatpush1.msra.mxu0 %v3763
    %3786 = vmatprep.subr.mxu0 0.0
    %3787 = vmatpush1.msra.mxu0 %v3764
    %3788 = vmatprep.subr.mxu0 0.0
    %3789 = vmatpush1.msra.mxu0 %v3765
    %3790 = vmatprep.subr.mxu0 0.0
    %3791 = vmatpush1.msra.mxu0 %v3766
    %3792 = vmatprep.subr.mxu0 0.0
    %3793 = vmatpush1.msra.mxu0 %v3767
    %3794 = vmatprep.subr.mxu0 0.0
    %3795 = vmatpush1.msra.mxu0 %v3768
    %3796 = vmatprep.subr.mxu0 0.0
    %3797 = vmatpush1.msra.mxu0 %v3769
    %3798 = vmatprep.subr.mxu0 0.0
    %3799 = vmatpush1.msra.mxu0 %v3770
    %3800 = vmatprep.subr.mxu0 0.0
    %3801 = vmatpush1.msra.mxu0 %v3771
    %3802 = vmatprep.subr.mxu0 0.0
    %3803 = vmatpush1.msra.mxu0 %v3772
    %3804 = vmatprep.subr.mxu0 0.0
    %3805 = vmatpush1.msra.mxu0 %v3773
    %3806 = vmatprep.subr.mxu0 0.0
    %3807 = vmatpush1.msra.mxu0 %v3774
    %3808 = vmatprep.subr.mxu0 0.0
    %3809 = vmatpush1.msra.mxu0 %v3775
    %3810 = vmatprep.subr.mxu0 0.0
    %3811 = vmatpush1.msra.mxu0 %v3776
    %3812 = vmatprep.subr.mxu0 0.0
    %3813 = vmatpush1.msra.mxu0 %v3777
    %3814 = vmatprep.subr.mxu0 0.0
    %3815 = vmatpush1.msra.mxu0 %v3778
    %3816 = vmatprep.subr.mxu0 0.0
    %3817 = vmatpush1.msra.mxu0 0.0
    %3818 = vmatprep.subr.mxu0 0.0
    %3819 = vmatpush1.msra.mxu0 0.0
    %3820 = vmatprep.subr.mxu0 0.0
    %3821 = vmatpush1.msra.mxu0 0.0
    %3822 = vmatprep.subr.mxu0 0.0
    %3823 = vmatpush1.msra.mxu0 0.0
    %3824 = vmatprep.subr.mxu0 0.0
    %3825 = vmatpush1.msra.mxu0 0.0
    %3826 = vmatprep.subr.mxu0 0.0
    %3827 = vmatpush1.msra.mxu0 0.0
    %3828 = vmatprep.subr.mxu0 0.0
    %3829 = vmatpush1.msra.mxu0 0.0
    %3830 = vmatprep.subr.mxu0 0.0
    %3831 = vmatpush1.msra.mxu0 0.0
    %3832 = vmatprep.subr.mxu0 0.0
    %3833 = vmatpush1.msra.mxu0 0.0
    %3834 = vmatprep.subr.mxu0 0.0
    %3835 = vmatpush1.msra.mxu0 0.0
    %3836 = vmatprep.subr.mxu0 0.0
    %3837 = vmatpush1.msra.mxu0 0.0
    %3838 = vmatprep.subr.mxu0 0.0
    %3839 = vmatpush1.msra.mxu0 0.0
    %3840 = vmatprep.subr.mxu0 0.0
    %3841 = vmatpush1.msra.mxu0 0.0
    %3842 = vmatprep.subr.mxu0 0.0
    %3843 = vmatpush1.msra.mxu0 0.0
    %3844 = vmatprep.subr.mxu0 0.0
    %3845 = vmatpush1.msra.mxu0 0.0
    %3846 = vmatprep.subr.mxu0 0.0
    %3847 = vmatpush1.msra.mxu0 0.0
    %3848 = vmatprep.mubr.f32.mxu0 0.0
    %3849 = vmatmul.mubr.f32.gmra.mrb[0].mxu0 %v3762
    %v3850 = vpop.f32.mrb[0].mxu0
    %v3851 = vadd.f32 %v3783, %v3850
    %v3852 = vpop.f32.mrb[0].mxu0
    %3853 = vdwg.mxu0
    %vm3854 = vcmask 517120
    %3855 = vst.msk [vmem:[#allocation6] sm:$0x3] %vm3854, %v3851
    %v3856 = vld [vmem:[%s10 + $0x81] sm:$0x1]
    %v3857 = vld [vmem:[%s10 + $0x82] sm:$0x1]
    %v3858 = vsel %vm3854, %v3851, 0.0
    %3859 = vadd.xlane.f32.xlu0 %v3858
    %v3860 = vpop.xlane.xlu0 %3859
    %v3861 = vrcp.pop 64.0
    %v3862 = vmul.f32 %v3860, %v3861
    %v3863 = vsub.f32 %v3851, %v3862
    %v3864 = vmul.f32 %v3863, %v3863
    %v3865 = vsel %vm3854, %v3864, 0.0
    %3866 = vadd.xlane.f32.xlu0 %v3865
    %v3867 = vpop.xlane.xlu0 %3866
    %v3868 = vmul.f32 %v3867, %v3861
    %v3869 = vadd.f32 %v3868, 1e-05
    %v3870 = vrsqrt.pop %v3869
    %v3871 = vmul.f32 %v3863, %v3870
    %v3872 = vlaneseq
    %v3873 = vshrl.u32 %v3872, 7
    %v3874 = vsub.s32 0, %v3873
    %v3875 = vrot.slane %v3856, %v3874
    %v3876 = vmul.f32 %v3871, %v3875
    %v3877 = vlaneseq
    %v3878 = vshrl.u32 %v3877, 7
    %v3879 = vsub.s32 0, %v3878
    %v3880 = vrot.slane %v3857, %v3879
    %v3881 = vadd.f32 %v3876, %v3880
    %v3882 = vld [vmem:[%s11] sm:$0xff]
    %v3883 = vld [vmem:[%s11 + $0x8] sm:$0xff]
    %v3884 = vld [vmem:[%s11 + $0x10] sm:$0xff]
    %v3885 = vld [vmem:[%s11 + $0x18] sm:$0xff]
    %v3886 = vld [vmem:[%s11 + $0x20] sm:$0xff]
    %v3887 = vld [vmem:[%s11 + $0x28] sm:$0xff]
    %v3888 = vld [vmem:[%s11 + $0x30] sm:$0xff]
    %v3889 = vld [vmem:[%s11 + $0x38] sm:$0xff]
    %v3890 = vld [vmem:[%s11 + $0x49] sm:$0x1]
    %v3891 = vlaneseq
    %v3892 = vshrl.u32 %v3891, 7
    %v3893 = vsub.s32 0, %v3892
    %v3894 = vrot.slane %v3890, %v3893
    %vm3895 = vcmask 523264
    %v3897 = vsel %vm3895, %v3881, 0
    %3899 = vmatprep.subr.mxu0 0.0
    %3900 = vmatpush1.msra.mxu0 %v3882
    %3901 = vmatprep.subr.mxu0 0.0
    %3902 = vmatpush1.msra.mxu0 %v3883
    %3903 = vmatprep.subr.mxu0 0.0
    %3904 = vmatpush1.msra.mxu0 %v3884
    %3905 = vmatprep.subr.mxu0 0.0
    %3906 = vmatpush1.msra.mxu0 %v3885
    %3907 = vmatprep.subr.mxu0 0.0
    %3908 = vmatpush1.msra.mxu0 %v3886
    %3909 = vmatprep.subr.mxu0 0.0
    %3910 = vmatpush1.msra.mxu0 %v3887
    %3911 = vmatprep.subr.mxu0 0.0
    %3912 = vmatpush1.msra.mxu0 %v3888
    %3913 = vmatprep.subr.mxu0 0.0
    %3914 = vmatpush1.msra.mxu0 %v3889
    %3915 = vmatprep.subr.mxu0 0.0
    %3916 = vmatpush1.msra.mxu0 0.0
    %3917 = vmatprep.subr.mxu0 0.0
    %3918 = vmatpush1.msra.mxu0 0.0
    %3919 = vmatprep.subr.mxu0 0.0
    %3920 = vmatpush1.msra.mxu0 0.0
    %3921 = vmatprep.subr.mxu0 0.0
    %3922 = vmatpush1.msra.mxu0 0.0
    %3923 = vmatprep.subr.mxu0 0.0
    %3924 = vmatpush1.msra.mxu0 0.0
    %3925 = vmatprep.subr.mxu0 0.0
    %3926 = vmatpush1.msra.mxu0 0.0
    %3927 = vmatprep.subr.mxu0 0.0
    %3928 = vmatpush1.msra.mxu0 0.0
    %3929 = vmatprep.subr.mxu0 0.0
    %3930 = vmatpush1.msra.mxu0 0.0
    %3931 = vmatprep.subr.mxu0 0.0
    %3932 = vmatpush1.msra.mxu0 0.0
    %3933 = vmatprep.subr.mxu0 0.0
    %3934 = vmatpush1.msra.mxu0 0.0
    %3935 = vmatprep.subr.mxu0 0.0
    %3936 = vmatpush1.msra.mxu0 0.0
    %3937 = vmatprep.subr.mxu0 0.0
    %3938 = vmatpush1.msra.mxu0 0.0
    %3939 = vmatprep.subr.mxu0 0.0
    %3940 = vmatpush1.msra.mxu0 0.0
    %3941 = vmatprep.subr.mxu0 0.0
    %3942 = vmatpush1.msra.mxu0 0.0
    %3943 = vmatprep.subr.mxu0 0.0
    %3944 = vmatpush1.msra.mxu0 0.0
    %3945 = vmatprep.subr.mxu0 0.0
    %3946 = vmatpush1.msra.mxu0 0.0
    %3947 = vmatprep.subr.mxu0 0.0
    %3948 = vmatpush1.msra.mxu0 0.0
    %3949 = vmatprep.subr.mxu0 0.0
    %3950 = vmatpush1.msra.mxu0 0.0
    %3951 = vmatprep.subr.mxu0 0.0
    %3952 = vmatpush1.msra.mxu0 0.0
    %3953 = vmatprep.subr.mxu0 0.0
    %3954 = vmatpush1.msra.mxu0 0.0
    %3955 = vmatprep.subr.mxu0 0.0
    %3956 = vmatpush1.msra.mxu0 0.0
    %3957 = vmatprep.subr.mxu0 0.0
    %3958 = vmatpush1.msra.mxu0 0.0
    %3959 = vmatprep.subr.mxu0 0.0
    %3960 = vmatpush1.msra.mxu0 0.0
    %3961 = vmatprep.subr.mxu0 0.0
    %3962 = vmatpush1.msra.mxu0 0.0
    %3963 = vmatprep.mubr.f32.mxu0 0.0
    %3964 = vmatmul.mubr.f32.gmra.mrb[0].mxu0 %v3897
    %v3965 = vpop.f32.mrb[0].mxu0
    %v3966 = vadd.f32 %v3894, %v3965
    %v3967 = vpop.f32.mrb[0].mxu0
    %3968 = vdwg.mxu0
    %v3969 = vld [vmem:[%s5] sm:$0x3]
    %v3970 = vld [vmem:[%s11 + $0x40] sm:$0xff]
    %v3971 = vld [vmem:[%s11 + $0x48] sm:$0x1]
    %vm3972 = vcmask 72704
    %v3974 = vsel %vm3972, %v3969, 0
    %vm3976 = vcmask 1040384
    %v3978 = vsel %vm3976, %v3971, 0
    %3980 = vmatprep.subr.mxu0 0.0
    %3981 = vmatpush1.msra.mxu0 %v3970
    %3982 = vmatprep.subr.mxu0 0.0
    %3983 = vmatpush1.msra.mxu0 %v3978
    %3984 = vmatprep.subr.mxu0 0.0
    %3985 = vmatpush1.msra.mxu0 0.0
    %3986 = vmatprep.subr.mxu0 0.0
    %3987 = vmatpush1.msra.mxu0 0.0
    %3988 = vmatprep.subr.mxu0 0.0
    %3989 = vmatpush1.msra.mxu0 0.0
    %3990 = vmatprep.subr.mxu0 0.0
    %3991 = vmatpush1.msra.mxu0 0.0
    %3992 = vmatprep.subr.mxu0 0.0
    %3993 = vmatpush1.msra.mxu0 0.0
    %3994 = vmatprep.subr.mxu0 0.0
    %3995 = vmatpush1.msra.mxu0 0.0
    %3996 = vmatprep.subr.mxu0 0.0
    %3997 = vmatpush1.msra.mxu0 0.0
    %3998 = vmatprep.subr.mxu0 0.0
    %3999 = vmatpush1.msra.mxu0 0.0
    %4000 = vmatprep.subr.mxu0 0.0
    %4001 = vmatpush1.msra.mxu0 0.0
    %4002 = vmatprep.subr.mxu0 0.0
    %4003 = vmatpush1.msra.mxu0 0.0
    %4004 = vmatprep.subr.mxu0 0.0
    %4005 = vmatpush1.msra.mxu0 0.0
    %4006 = vmatprep.subr.mxu0 0.0
    %4007 = vmatpush1.msra.mxu0 0.0
    %4008 = vmatprep.subr.mxu0 0.0
    %4009 = vmatpush1.msra.mxu0 0.0
    %4010 = vmatprep.subr.mxu0 0.0
    %4011 = vmatpush1.msra.mxu0 0.0
    %4012 = vmatprep.subr.mxu0 0.0
    %4013 = vmatpush1.msra.mxu0 0.0
    %4014 = vmatprep.subr.mxu0 0.0
    %4015 = vmatpush1.msra.mxu0 0.0
    %4016 = vmatprep.subr.mxu0 0.0
    %4017 = vmatpush1.msra.mxu0 0.0
    %4018 = vmatprep.subr.mxu0 0.0
    %4019 = vmatpush1.msra.mxu0 0.0
    %4020 = vmatprep.subr.mxu0 0.0
    %4021 = vmatpush1.msra.mxu0 0.0
    %4022 = vmatprep.subr.mxu0 0.0
    %4023 = vmatpush1.msra.mxu0 0.0
    %4024 = vmatprep.subr.mxu0 0.0
    %4025 = vmatpush1.msra.mxu0 0.0
    %4026 = vmatprep.subr.mxu0 0.0
    %4027 = vmatpush1.msra.mxu0 0.0
    %4028 = vmatprep.subr.mxu0 0.0
    %4029 = vmatpush1.msra.mxu0 0.0
    %4030 = vmatprep.subr.mxu0 0.0
    %4031 = vmatpush1.msra.mxu0 0.0
    %4032 = vmatprep.subr.mxu0 0.0
    %4033 = vmatpush1.msra.mxu0 0.0
    %4034 = vmatprep.subr.mxu0 0.0
    %4035 = vmatpush1.msra.mxu0 0.0
    %4036 = vmatprep.subr.mxu0 0.0
    %4037 = vmatpush1.msra.mxu0 0.0
    %4038 = vmatprep.subr.mxu0 0.0
    %4039 = vmatpush1.msra.mxu0 0.0
    %4040 = vmatprep.subr.mxu0 0.0
    %4041 = vmatpush1.msra.mxu0 0.0
    %4042 = vmatprep.subr.mxu0 0.0
    %4043 = vmatpush1.msra.mxu0 0.0
    %4044 = vmatprep.mubr.f32.mxu0 0.0
    %4045 = vmatmul.mubr.f32.gmra.mrb[0].mxu0 %v3974
    %v4046 = vpop.f32.mrb[0].mxu0
    %v4047 = vadd.f32 0.0, %v4046
    %v4048 = vpop.f32.mrb[0].mxu0
    %4049 = vdwg.mxu0
    %v4050 = vld [vmem:[%s3] sm:$0xf]
    %v4051 = vld [vmem:[%s4] sm:$0xf]
    %vm4052 = vcmask 15360
    %v4054 = vsel %vm4052, %v4051, 0
    %vm4056 = vcmask 1041408
    %v4058 = vsel %vm4056, %v4047, 0
    %4060 = vmatprep.subr.mxu0 0.0
    %4061 = vmatpush1.msra.mxu0 %v4058
    %4062 = vmatprep.subr.mxu0 0.0
    %4063 = vmatpush1.msra.mxu0 0.0
    %4064 = vmatprep.subr.mxu0 0.0
    %4065 = vmatpush1.msra.mxu0 0.0
    %4066 = vmatprep.subr.mxu0 0.0
    %4067 = vmatpush1.msra.mxu0 0.0
    %4068 = vmatprep.subr.mxu0 0.0
    %4069 = vmatpush1.msra.mxu0 0.0
    %4070 = vmatprep.subr.mxu0 0.0
    %4071 = vmatpush1.msra.mxu0 0.0
    %4072 = vmatprep.subr.mxu0 0.0
    %4073 = vmatpush1.msra.mxu0 0.0
    %4074 = vmatprep.subr.mxu0 0.0
    %4075 = vmatpush1.msra.mxu0 0.0
    %4076 = vmatprep.subr.mxu0 0.0
    %4077 = vmatpush1.msra.mxu0 0.0
    %4078 = vmatprep.subr.mxu0 0.0
    %4079 = vmatpush1.msra.mxu0 0.0
    %4080 = vmatprep.subr.mxu0 0.0
    %4081 = vmatpush1.msra.mxu0 0.0
    %4082 = vmatprep.subr.mxu0 0.0
    %4083 = vmatpush1.msra.mxu0 0.0
    %4084 = vmatprep.subr.mxu0 0.0
    %4085 = vmatpush1.msra.mxu0 0.0
    %4086 = vmatprep.subr.mxu0 0.0
    %4087 = vmatpush1.msra.mxu0 0.0
    %4088 = vmatprep.subr.mxu0 0.0
    %4089 = vmatpush1.msra.mxu0 0.0
    %4090 = vmatprep.subr.mxu0 0.0
    %4091 = vmatpush1.msra.mxu0 0.0
    %4092 = vmatprep.subr.mxu0 0.0
    %4093 = vmatpush1.msra.mxu0 0.0
    %4094 = vmatprep.subr.mxu0 0.0
    %4095 = vmatpush1.msra.mxu0 0.0
    %4096 = vmatprep.subr.mxu0 0.0
    %4097 = vmatpush1.msra.mxu0 0.0
    %4098 = vmatprep.subr.mxu0 0.0
    %4099 = vmatpush1.msra.mxu0 0.0
    %4100 = vmatprep.subr.mxu0 0.0
    %4101 = vmatpush1.msra.mxu0 0.0
    %4102 = vmatprep.subr.mxu0 0.0
    %4103 = vmatpush1.msra.mxu0 0.0
    %4104 = vmatprep.subr.mxu0 0.0
    %4105 = vmatpush1.msra.mxu0 0.0
    %4106 = vmatprep.subr.mxu0 0.0
    %4107 = vmatpush1.msra.mxu0 0.0
    %4108 = vmatprep.subr.mxu0 0.0
    %4109 = vmatpush1.msra.mxu0 0.0
    %4110 = vmatprep.subr.mxu0 0.0
    %4111 = vmatpush1.msra.mxu0 0.0
    %4112 = vmatprep.subr.mxu0 0.0
    %4113 = vmatpush1.msra.mxu0 0.0
    %4114 = vmatprep.subr.mxu0 0.0
    %4115 = vmatpush1.msra.mxu0 0.0
    %4116 = vmatprep.subr.mxu0 0.0
    %4117 = vmatpush1.msra.mxu0 0.0
    %4118 = vmatprep.subr.mxu0 0.0
    %4119 = vmatpush1.msra.mxu0 0.0
    %4120 = vmatprep.subr.mxu0 0.0
    %4121 = vmatpush1.msra.mxu0 0.0
    %4122 = vmatprep.subr.mxu0 0.0
    %4123 = vmatpush1.msra.mxu0 0.0
    %4124 = vmatprep.mubr.f32.mxu0 0.0
    %4125 = vmatmul.mubr.f32.gmra.mrb[0].mxu0 %v4054
    %v4126 = vpop.f32.mrb[0].mxu0
    %v4127 = vadd.f32 0.0, %v4126
    %v4128 = vpop.f32.mrb[0].mxu0
    %4129 = vdwg.mxu0
    %v4131 = vsel %vm4052, %v4050, 0
    %v4134 = vsel %vm4056, %v3966, 0
    %4136 = vmatprep.subr.mxu0 0.0
    %4137 = vmatpush1.msra.mxu0 %v4134
    %4138 = vmatprep.subr.mxu0 0.0
    %4139 = vmatpush1.msra.mxu0 0.0
    %4140 = vmatprep.subr.mxu0 0.0
    %4141 = vmatpush1.msra.mxu0 0.0
    %4142 = vmatprep.subr.mxu0 0.0
    %4143 = vmatpush1.msra.mxu0 0.0
    %4144 = vmatprep.subr.mxu0 0.0
    %4145 = vmatpush1.msra.mxu0 0.0
    %4146 = vmatprep.subr.mxu0 0.0
    %4147 = vmatpush1.msra.mxu0 0.0
    %4148 = vmatprep.subr.mxu0 0.0
    %4149 = vmatpush1.msra.mxu0 0.0
    %4150 = vmatprep.subr.mxu0 0.0
    %4151 = vmatpush1.msra.mxu0 0.0
    %4152 = vmatprep.subr.mxu0 0.0
    %4153 = vmatpush1.msra.mxu0 0.0
    %4154 = vmatprep.subr.mxu0 0.0
    %4155 = vmatpush1.msra.mxu0 0.0
    %4156 = vmatprep.subr.mxu0 0.0
    %4157 = vmatpush1.msra.mxu0 0.0
    %4158 = vmatprep.subr.mxu0 0.0
    %4159 = vmatpush1.msra.mxu0 0.0
    %4160 = vmatprep.subr.mxu0 0.0
    %4161 = vmatpush1.msra.mxu0 0.0
    %4162 = vmatprep.subr.mxu0 0.0
    %4163 = vmatpush1.msra.mxu0 0.0
    %4164 = vmatprep.subr.mxu0 0.0
    %4165 = vmatpush1.msra.mxu0 0.0
    %4166 = vmatprep.subr.mxu0 0.0
    %4167 = vmatpush1.msra.mxu0 0.0
    %4168 = vmatprep.subr.mxu0 0.0
    %4169 = vmatpush1.msra.mxu0 0.0
    %4170 = vmatprep.subr.mxu0 0.0
    %4171 = vmatpush1.msra.mxu0 0.0
    %4172 = vmatprep.subr.mxu0 0.0
    %4173 = vmatpush1.msra.mxu0 0.0
    %4174 = vmatprep.subr.mxu0 0.0
    %4175 = vmatpush1.msra.mxu0 0.0
    %4176 = vmatprep.subr.mxu0 0.0
    %4177 = vmatpush1.msra.mxu0 0.0
    %4178 = vmatprep.subr.mxu0 0.0
    %4179 = vmatpush1.msra.mxu0 0.0
    %4180 = vmatprep.subr.mxu0 0.0
    %4181 = vmatpush1.msra.mxu0 0.0
    %4182 = vmatprep.subr.mxu0 0.0
    %4183 = vmatpush1.msra.mxu0 0.0
    %4184 = vmatprep.subr.mxu0 0.0
    %4185 = vmatpush1.msra.mxu0 0.0
    %4186 = vmatprep.subr.mxu0 0.0
    %4187 = vmatpush1.msra.mxu0 0.0
    %4188 = vmatprep.subr.mxu0 0.0
    %4189 = vmatpush1.msra.mxu0 0.0
    %4190 = vmatprep.subr.mxu0 0.0
    %4191 = vmatpush1.msra.mxu0 0.0
    %4192 = vmatprep.subr.mxu0 0.0
    %4193 = vmatpush1.msra.mxu0 0.0
    %4194 = vmatprep.subr.mxu0 0.0
    %4195 = vmatpush1.msra.mxu0 0.0
    %4196 = vmatprep.subr.mxu0 0.0
    %4197 = vmatpush1.msra.mxu0 0.0
    %4198 = vmatprep.subr.mxu0 0.0
    %4199 = vmatpush1.msra.mxu0 0.0
    %4200 = vmatprep.mubr.f32.mxu0 0.0
    %4201 = vmatmul.mubr.f32.gmra.mrb[0].mxu0 %v4131
    %v4202 = vpop.f32.mrb[0].mxu0
    %v4203 = vadd.f32 %v4127, %v4202
    %v4204 = vpop.f32.mrb[0].mxu0
    %4205 = vdwg.mxu0
    %v4206 = vmax.f32 %v4203, 0.0
    %v4207 = vld [vmem:[%s11 + $0x4a] sm:$0xff]
    %v4208 = vld [vmem:[%s11 + $0x52] sm:$0xff]
    %v4209 = vld [vmem:[%s11 + $0x5a] sm:$0xff]
    %v4210 = vld [vmem:[%s11 + $0x62] sm:$0xff]
    %v4211 = vld [vmem:[%s11 + $0x6a] sm:$0xff]
    %v4212 = vld [vmem:[%s11 + $0x72] sm:$0xff]
    %v4213 = vld [vmem:[%s11 + $0x7a] sm:$0xff]
    %v4214 = vld [vmem:[%s11 + $0x82] sm:$0xff]
    %v4215 = vld [vmem:[%s11 + $0x8a] sm:$0xff]
    %v4216 = vld [vmem:[%s11 + $0x92] sm:$0xff]
    %v4217 = vld [vmem:[%s11 + $0x9a] sm:$0xff]
    %v4218 = vld [vmem:[%s11 + $0xa2] sm:$0xff]
    %v4219 = vld [vmem:[%s11 + $0xaa] sm:$0xff]
    %v4220 = vld [vmem:[%s11 + $0xb2] sm:$0xff]
    %v4221 = vld [vmem:[%s11 + $0xba] sm:$0xff]
    %v4222 = vld [vmem:[%s11 + $0xc2] sm:$0xff]
    %v4223 = vld [vmem:[%s11 + $0xca] sm:$0x1]
    %v4224 = vlaneseq
    %v4225 = vshrl.u32 %v4224, 7
    %v4226 = vsub.s32 0, %v4225
    %v4227 = vrot.slane %v4223, %v4226
    %4228 = vmatprep.subr.mxu0 0.0
    %4229 = vmatpush1.msra.mxu0 %v4207
    %4230 = vmatprep.subr.mxu0 0.0
    %4231 = vmatpush1.msra.mxu0 %v4208
    %4232 = vmatprep.subr.mxu0 0.0
    %4233 = vmatpush1.msra.mxu0 %v4209
    %4234 = vmatprep.subr.mxu0 0.0
    %4235 = vmatpush1.msra.mxu0 %v4210
    %4236 = vmatprep.subr.mxu0 0.0
    %4237 = vmatpush1.msra.mxu0 %v4211
    %4238 = vmatprep.subr.mxu0 0.0
    %4239 = vmatpush1.msra.mxu0 %v4212
    %4240 = vmatprep.subr.mxu0 0.0
    %4241 = vmatpush1.msra.mxu0 %v4213
    %4242 = vmatprep.subr.mxu0 0.0
    %4243 = vmatpush1.msra.mxu0 %v4214
    %4244 = vmatprep.subr.mxu0 0.0
    %4245 = vmatpush1.msra.mxu0 %v4215
    %4246 = vmatprep.subr.mxu0 0.0
    %4247 = vmatpush1.msra.mxu0 %v4216
    %4248 = vmatprep.subr.mxu0 0.0
    %4249 = vmatpush1.msra.mxu0 %v4217
    %4250 = vmatprep.subr.mxu0 0.0
    %4251 = vmatpush1.msra.mxu0 %v4218
    %4252 = vmatprep.subr.mxu0 0.0
    %4253 = vmatpush1.msra.mxu0 %v4219
    %4254 = vmatprep.subr.mxu0 0.0
    %4255 = vmatpush1.msra.mxu0 %v4220
    %4256 = vmatprep.subr.mxu0 0.0
    %4257 = vmatpush1.msra.mxu0 %v4221
    %4258 = vmatprep.subr.mxu0 0.0
    %4259 = vmatpush1.msra.mxu0 %v4222
    %4260 = vmatprep.subr.mxu0 0.0
    %4261 = vmatpush1.msra.mxu0 0.0
    %4262 = vmatprep.subr.mxu0 0.0
    %4263 = vmatpush1.msra.mxu0 0.0
    %4264 = vmatprep.subr.mxu0 0.0
    %4265 = vmatpush1.msra.mxu0 0.0
    %4266 = vmatprep.subr.mxu0 0.0
    %4267 = vmatpush1.msra.mxu0 0.0
    %4268 = vmatprep.subr.mxu0 0.0
    %4269 = vmatpush1.msra.mxu0 0.0
    %4270 = vmatprep.subr.mxu0 0.0
    %4271 = vmatpush1.msra.mxu0 0.0
    %4272 = vmatprep.subr.mxu0 0.0
    %4273 = vmatpush1.msra.mxu0 0.0
    %4274 = vmatprep.subr.mxu0 0.0
    %4275 = vmatpush1.msra.mxu0 0.0
    %4276 = vmatprep.subr.mxu0 0.0
    %4277 = vmatpush1.msra.mxu0 0.0
    %4278 = vmatprep.subr.mxu0 0.0
    %4279 = vmatpush1.msra.mxu0 0.0
    %4280 = vmatprep.subr.mxu0 0.0
    %4281 = vmatpush1.msra.mxu0 0.0
    %4282 = vmatprep.subr.mxu0 0.0
    %4283 = vmatpush1.msra.mxu0 0.0
    %4284 = vmatprep.subr.mxu0 0.0
    %4285 = vmatpush1.msra.mxu0 0.0
    %4286 = vmatprep.subr.mxu0 0.0
    %4287 = vmatpush1.msra.mxu0 0.0
    %4288 = vmatprep.subr.mxu0 0.0
    %4289 = vmatpush1.msra.mxu0 0.0
    %4290 = vmatprep.subr.mxu0 0.0
    %4291 = vmatpush1.msra.mxu0 0.0
    %4292 = vmatprep.mubr.f32.mxu0 0.0
    %4293 = vmatmul.mubr.f32.gmra.mrb[0].mxu0 %v4206
    %v4294 = vpop.f32.mrb[0].mxu0
    %v4295 = vadd.f32 %v4227, %v4294
    %v4296 = vpop.f32.mrb[0].mxu0
    %4297 = vdwg.mxu0
    %4298 = vst [vmem:[%s13] sm:$0xf] %v4295
    // Predicated region
    $region54: #{qtor_forward.1} parent=1 // pred_check
      _
    $region55: #{qtor_forward.1} parent=1 // pred_check_branch
      %4300 = sbr.rel (0) target = $region57
    $region56: #{qtor_forward.1} parent=1 // pred_region
      %s4302 = ssub.s32 32, 32
      %4303 = vsyncadd [#allocation5], %s4302
      %s4305 = sshll.u32 [#allocation6], 4
      %s4306 = int_to_ptr.vmem [resolvable:$true] %s4305
      %4308 = dma.vmem_to_hbm [thread:$0]  %s4306, 32, %s12, [#allocation5]
    $region57: #{qtor_forward.1} parent=1 // pred_fallthru
      _
    // Predicated region
    $region58: #{qtor_forward.1} parent=1 // pred_check
      _
    $region59: #{qtor_forward.1} parent=1 // pred_check_branch
      %4310 = sbr.rel (0) target = $region61
    $region60: #{qtor_forward.1} parent=1 // pred_region
      _
    $region61: #{qtor_forward.1} parent=1 // pred_fallthru
      _
    // Predicated region
    $region62: #{qtor_forward.1} parent=1 // pred_check
      _
    $region63: #{qtor_forward.1} parent=1 // pred_check_branch
      %4312 = sbr.rel (0) target = $region65
    $region64: #{qtor_forward.1} parent=1 // pred_region
      %4313 = dma.done [#allocation5], 32
    $region65: #{qtor_forward.1} parent=1 // pred_fallthru
      _
    // Predicated region
    $region66: #{qtor_forward.1} parent=1 // pred_check
      _
    $region67: #{qtor_forward.1} parent=1 // pred_check_branch
      %4315 = sbr.rel (0) target = $region69
    $region68: #{qtor_forward.1} parent=1 // pred_region
      _
    $region69: #{qtor_forward.1} parent=1 // pred_fallthru
      _
    %4316 = vsyncpa [#allocation4], 1
    %4317 = vsyncpa [#allocation5], 1

</llo_original>
